<compile_context>
chip_gen: v6e
topology: v6e:2x2x1
jax: 0.10.0
libtpu: 0.0.40
codegen_flags: <defaults>
</compile_context>

<pallas_src>
import jax
import jax.numpy as jnp
from jax import lax
from jax.experimental import pallas as pl
from jax.experimental.pallas import tpu as pltpu

H = 100    # PyTorch hidden_size / LSTM input_size
E = 100    # embedding dim
HP = 128   # lane-padded hidden
EP = 128   # lane-padded embedding
G = 4 * HP # padded gate width (512)


def _round_up(x, m):
    return (x + m - 1) // m * m


# --------------------- Kernel 1: two stacked LSTMs -------------------------
def lstm_stack_kernel(x_ref, wih1_ref, whh1_ref, b1_ref,
                      wih2_ref, whh2_ref, b2_ref,
                      h2_ref, xg_ref, h1_ref):
    """x_ref: (T, TB, EP) time-major padded embeddings.
    h2_ref: (T, TB, HP) layer-2 hidden states (output).
    xg_ref: (T, TB, G)  scratch for precomputed input-gate projections.
    h1_ref: (T, TB, HP) scratch for layer-1 hidden states."""
    T, TB, _ = x_ref.shape
    unroll = True if T <= 32 else 4
    zeros = jnp.zeros((TB, HP), jnp.float32)

    def gates_to_hc(gates, c):
        # lane-aligned static slices (HP = 128)
        i = jax.nn.sigmoid(gates[:, 0 * HP:1 * HP])
        f = jax.nn.sigmoid(gates[:, 1 * HP:2 * HP])
        g = jnp.tanh(gates[:, 2 * HP:3 * HP])
        o = jax.nn.sigmoid(gates[:, 3 * HP:4 * HP])
        c_new = f * c + i * g
        h_new = o * jnp.tanh(c_new)
        return h_new, c_new

    # ---- layer 1: batched input projection (hoisted, bias folded in) ----
    x_flat = x_ref[...].reshape(T * TB, EP)
    xg_ref[...] = (jnp.dot(x_flat, wih1_ref[...],
                           preferred_element_type=jnp.float32)
                   + b1_ref[...]).reshape(T, TB, G)

    def step1(t, carry):
        h, c = carry
        gates = xg_ref[t] + jnp.dot(h, whh1_ref[...],
                                    preferred_element_type=jnp.float32)
        h, c = gates_to_hc(gates, c)
        h1_ref[t] = h
        return (h, c)

    lax.fori_loop(0, T, step1, (zeros, zeros), unroll=unroll)

    # ---- layer 2: batched input projection over layer-1 hidden sequence ----
    h1_flat = h1_ref[...].reshape(T * TB, HP)
    xg_ref[...] = (jnp.dot(h1_flat, wih2_ref[...],
                           preferred_element_type=jnp.float32)
                   + b2_ref[...]).reshape(T, TB, G)

    def step2(t, carry):
        h, c = carry
        gates = xg_ref[t] + jnp.dot(h, whh2_ref[...],
                                    preferred_element_type=jnp.float32)
        h, c = gates_to_hc(gates, c)
        h2_ref[t] = h
        return (h, c)

    lax.fori_loop(0, T, step2, (zeros, zeros), unroll=unroll)


# --------------------- Kernel 2: output projection --------------------------
def proj_kernel(h_ref, w_ref, b_ref, o_ref):
    o_ref[...] = (jnp.dot(h_ref[...], w_ref[...],
                          preferred_element_type=jnp.float32) + b_ref[...])


# --------------------------- padding helpers -------------------------------
def _pad_gate_matrix(w, rows_p):
    """w: (rows, 4H) gate-blocked [i|f|g|o] -> (rows_p, 4*HP), zero-padded per gate."""
    rows = w.shape[0]
    blocks = []
    for k in range(4):
        blk = w[:, k * H:(k + 1) * H]
        blocks.append(jnp.pad(blk, ((0, rows_p - rows), (0, HP - H))))
    return jnp.concatenate(blocks, axis=1)


def _pad_gate_bias(b):
    """b: (1, 4H) -> (1, 4*HP), zero-padded per gate."""
    blocks = [jnp.pad(b[:, k * H:(k + 1) * H], ((0, 0), (0, HP - H)))
              for k in range(4)]
    return jnp.concatenate(blocks, axis=1)


# ------------------------------- wrapper ------------------------------------
def forward_language_model(tokens, params):
    """tokens: (B, T) int32 -> logits (B, T, vocab_size) float32."""
    B, T = tokens.shape
    V = params["wo"].shape[1]

    # Embedding gather (frozen pretrained table) -- glue, stays in plain JAX.
    emb = jnp.take(params["embedding"], tokens, axis=0).astype(jnp.float32)  # (B,T,E)

    # ---- pad to TPU-friendly shapes ----
    BP = _round_up(B, 8)
    TB = BP if BP <= 64 else 64          # batch tile (sublane-aligned)
    BP = _round_up(BP, TB)
    Vp = _round_up(V, 128)

    x_tm = jnp.transpose(emb, (1, 0, 2))                        # (T,B,E) time-major
    x_tm = jnp.pad(x_tm, ((0, 0), (0, BP - B), (0, EP - E)))    # (T,BP,EP)

    wih1 = _pad_gate_matrix(params["wih1"], EP)   # (EP, G)
    whh1 = _pad_gate_matrix(params["whh1"], HP)   # (HP, G)
    b1 = _pad_gate_bias(params["b1"])             # (1, G)
    wih2 = _pad_gate_matrix(params["wih2"], HP)
    whh2 = _pad_gate_matrix(params["whh2"], HP)
    b2 = _pad_gate_bias(params["b2"])
    wo = jnp.pad(params["wo"], ((0, HP - H), (0, Vp - V)))      # (HP, Vp)
    bo = jnp.pad(params["bo"], ((0, 0), (0, Vp - V)))           # (1, Vp)

    # ---- recurrent kernel: grid over batch tiles (megacore-parallel) ----
    h2 = pl.pallas_call(
        lstm_stack_kernel,
        out_shape=jax.ShapeDtypeStruct((T, BP, HP), jnp.float32),
        grid=(BP // TB,),
        in_specs=[
            pl.BlockSpec((T, TB, EP), lambda b: (0, b, 0)),   # x
            pl.BlockSpec((EP, G), lambda b: (0, 0)),          # wih1
            pl.BlockSpec((HP, G), lambda b: (0, 0)),          # whh1
            pl.BlockSpec((1, G), lambda b: (0, 0)),           # b1
            pl.BlockSpec((HP, G), lambda b: (0, 0)),          # wih2
            pl.BlockSpec((HP, G), lambda b: (0, 0)),          # whh2
            pl.BlockSpec((1, G), lambda b: (0, 0)),           # b2
        ],
        out_specs=pl.BlockSpec((T, TB, HP), lambda b: (0, b, 0)),
        scratch_shapes=[pltpu.VMEM((T, TB, G), jnp.float32),   # xg
                        pltpu.VMEM((T, TB, HP), jnp.float32)], # h1 sequence
        compiler_params=pltpu.CompilerParams(
            dimension_semantics=("parallel",)),
    )(x_tm, wih1, whh1, b1, wih2, whh2, b2)

    # ---- output projection: tiled (rows x V) matmul, logits never fully in VMEM ----
    R = T * BP
    h2_flat = h2.reshape(R, HP)
    if R <= 256:
        TR, Rp = R, R
    else:
        TR = 256
        Rp = _round_up(R, TR)
        h2_flat = jnp.pad(h2_flat, ((0, Rp - R), (0, 0)))
    if Vp % 512 == 0:
        TV = 512
    elif Vp % 256 == 0:
        TV = 256
    else:
        TV = 128

    logits_flat = pl.pallas_call(
        proj_kernel,
        out_shape=jax.ShapeDtypeStruct((Rp, Vp), jnp.float32),
        grid=(Rp // TR, Vp // TV),
        in_specs=[
            pl.BlockSpec((TR, HP), lambda i, j: (i, 0)),
            pl.BlockSpec((HP, TV), lambda i, j: (0, j)),
            pl.BlockSpec((1, TV), lambda i, j: (0, j)),
        ],
        out_specs=pl.BlockSpec((TR, TV), lambda i, j: (i, j)),
        compiler_params=pltpu.CompilerParams(
            dimension_semantics=("parallel", "parallel")),
    )(h2_flat, wo, bo)

    logits_tm = logits_flat[:R].reshape(T, BP, Vp)[:, :B, :V]   # (T,B,V)
    return jnp.transpose(logits_tm, (1, 0, 2))                  # (B,T,V) batch_first


# --------------------------- params / reference -----------------------------
def init_params(key, vocab_size):
    """Deterministic synthetic parameters matching PyTorch module shapes."""
    ks = jax.random.split(key, 12)
    s = 1.0 / jnp.sqrt(jnp.float32(H))

    def unif(k, shape):
        return jax.random.uniform(k, shape, jnp.float32, -s, s)

    embedding = 0.1 * jax.random.normal(ks[0], (vocab_size, E), jnp.float32)

    wih1 = unif(ks[1], (4 * H, E))
    whh1 = unif(ks[2], (4 * H, H))
    b1 = unif(ks[3], (4 * H,)) + unif(ks[4], (4 * H,))   # b_ih + b_hh
    wih2 = unif(ks[5], (4 * H, E))
    whh2 = unif(ks[6], (4 * H, H))
    b2 = unif(ks[7], (4 * H,)) + unif(ks[8], (4 * H,))
    wo = unif(ks[9], (vocab_size, H))
    bo = unif(ks[10], (vocab_size,))

    return {
        "embedding": embedding,
        # transpose so kernels compute  x @ W^T  directly
        "wih1": wih1.T, "whh1": whh1.T, "b1": b1.reshape(1, 4 * H),
        "wih2": wih2.T, "whh2": whh2.T, "b2": b2.reshape(1, 4 * H),
        "wo": wo.T, "bo": bo.reshape(1, vocab_size),
    }


def _ref_lstm_cell(x_t, h, c, w_ih, w_hh, b):
    gates = x_t @ w_ih + h @ w_hh + b
    i = jax.nn.sigmoid(gates[:, 0 * H:1 * H])
    f = jax.nn.sigmoid(gates[:, 1 * H:2 * H])
    g = jnp.tanh(gates[:, 2 * H:3 * H])
    o = jax.nn.sigmoid(gates[:, 3 * H:4 * H])
    c_new = f * c + i * g
    return o * jnp.tanh(c_new), c_new


def reference_forward(tokens, params):
    """Pure-JAX reference of the PyTorch forward."""
    emb = jnp.take(params["embedding"], tokens, axis=0)

    def lstm(x, wih, whh, b):
        B = x.shape[0]

        def step(carry, x_t):
            h, c = carry
            h, c = _ref_lstm_cell(x_t, h, c, wih, whh, b)
            return (h, c), h

        zeros = jnp.zeros((B, H), jnp.float32)
        _, hs = lax.scan(step, (zeros, zeros), jnp.transpose(x, (1, 0, 2)))
        return jnp.transpose(hs, (1, 0, 2))

    x1 = lstm(emb, params["wih1"], params["whh1"], params["b1"])
    x2 = lstm(x1, params["wih2"], params["whh2"], params["b2"])
    return x2 @ params["wo"] + params["bo"]


if __name__ == "__main__":
    VOCAB = 50
    B, T = 2, 8

    key = jax.random.PRNGKey(0)
    k_tok, k_par = jax.random.split(key)
    params = init_params(k_par, VOCAB)
    tokens = jax.random.randint(k_tok, (B, T), 0, VOCAB, dtype=jnp.int32)

    logits = jax.block_until_ready(forward_language_model(tokens, params))
    assert logits.shape == (B, T, VOCAB)
    assert logits.dtype == jnp.float32

    ref = jax.block_until_ready(reference_forward(tokens, params))
    assert jnp.allclose(logits, ref, atol=2e-3, rtol=2e-3), "mismatch vs JAX reference"

    print("KERNEL_OK")
</pallas_src>

<mosaic_0001>
module attributes {stable_mosaic.version = 11 : i64} {
  func.func @lstm_stack_kernel(%arg0: i32, %arg1: memref<8x8x128xf32, #tpu.memory_space<vmem>>, %arg2: memref<128x512xf32, #tpu.memory_space<vmem>>, %arg3: memref<128x512xf32, #tpu.memory_space<vmem>>, %arg4: memref<1x512xf32, #tpu.memory_space<vmem>>, %arg5: memref<128x512xf32, #tpu.memory_space<vmem>>, %arg6: memref<128x512xf32, #tpu.memory_space<vmem>>, %arg7: memref<1x512xf32, #tpu.memory_space<vmem>>, %arg8: memref<8x8x128xf32, #tpu.memory_space<vmem>>, %arg9: memref<8x8x512xf32, #tpu.memory_space<vmem>>, %arg10: memref<8x8x128xf32, #tpu.memory_space<vmem>>) attributes {dimension_semantics = [#tpu.dimension_semantics<parallel>], iteration_bounds = array<i64: 1>, scalar_prefetch = 0 : i64, scratch_operands = 2 : i64, tpu.core_type = #tpu.core_type<tc>, window_params = [{transform_indices = @transform_0, window_bounds = array<i64: 8, 8, 128>}, {pipeline_mode = #tpu.pipeline_mode<synchronous>, transform_indices = @transform_1, window_bounds = array<i64: 128, 512>}, {pipeline_mode = #tpu.pipeline_mode<synchronous>, transform_indices = @transform_2, window_bounds = array<i64: 128, 512>}, {pipeline_mode = #tpu.pipeline_mode<synchronous>, transform_indices = @transform_3, window_bounds = array<i64: 1, 512>}, {pipeline_mode = #tpu.pipeline_mode<synchronous>, transform_indices = @transform_4, window_bounds = array<i64: 128, 512>}, {pipeline_mode = #tpu.pipeline_mode<synchronous>, transform_indices = @transform_5, window_bounds = array<i64: 128, 512>}, {pipeline_mode = #tpu.pipeline_mode<synchronous>, transform_indices = @transform_6, window_bounds = array<i64: 1, 512>}, {transform_indices = @transform_7, window_bounds = array<i64: 8, 8, 128>}]} {
    %cst = arith.constant 0.000000e+00 : f32
    %0 = vector.broadcast %cst : f32 to vector<8x128xf32>
    %c0 = arith.constant 0 : index
    %c0_0 = arith.constant 0 : index
    %c0_1 = arith.constant 0 : index
    %1 = vector.load %arg1[%c0, %c0_0, %c0_1] : memref<8x8x128xf32, #tpu.memory_space<vmem>>, vector<8x8x128xf32>
    %2 = vector.shape_cast %1 : vector<8x8x128xf32> to vector<64x128xf32>
    %c0_2 = arith.constant 0 : index
    %c0_3 = arith.constant 0 : index
    %3 = vector.load %arg2[%c0_2, %c0_3] : memref<128x512xf32, #tpu.memory_space<vmem>>, vector<128x512xf32>
    %cst_4 = arith.constant dense<0.000000e+00> : vector<64x512xf32>
    %4 = tpu.matmul %2, %3, %cst_4 {dimension_numbers = #tpu.dot_dimension_numbers<[1], [0], [0], [1], [0, 0, 1, 1], [], []>} : vector<64x128xf32>, vector<128x512xf32>, vector<64x512xf32> -> vector<64x512xf32>
    %c0_5 = arith.constant 0 : index
    %c0_6 = arith.constant 0 : index
    %5 = vector.load %arg4[%c0_5, %c0_6] : memref<1x512xf32, #tpu.memory_space<vmem>>, vector<1x512xf32>
    %6 = vector.broadcast %5 : vector<1x512xf32> to vector<64x512xf32>
    %7 = arith.addf %4, %6 : vector<64x512xf32>
    %8 = vector.shape_cast %7 : vector<64x512xf32> to vector<8x8x512xf32>
    %c0_7 = arith.constant 0 : index
    %c0_8 = arith.constant 0 : index
    %c0_9 = arith.constant 0 : index
    %9 = vector.load %arg9[%c0_7, %c0_8, %c0_9] : memref<8x8x512xf32, #tpu.memory_space<vmem>>, vector<8x8x512xf32>
    tpu.vector_store %arg9[%c0_7, %c0_8, %c0_9], %8 {strides = array<i32>} : memref<8x8x512xf32, #tpu.memory_space<vmem>>, vector<8x8x512xf32>,
    %c0_i32 = arith.constant 0 : i32
    %10 = arith.index_cast %c0_i32 : i32 to index
    %c0_10 = arith.constant 0 : index
    %c0_11 = arith.constant 0 : index
    %11 = vector.load %arg9[%10, %c0_10, %c0_11] : memref<8x8x512xf32, #tpu.memory_space<vmem>>, vector<1x8x512xf32>
    %12 = vector.shape_cast %11 : vector<1x8x512xf32> to vector<8x512xf32>
    %c0_12 = arith.constant 0 : index
    %c0_13 = arith.constant 0 : index
    %13 = vector.load %arg3[%c0_12, %c0_13] : memref<128x512xf32, #tpu.memory_space<vmem>>, vector<128x512xf32>
    %cst_14 = arith.constant dense<0.000000e+00> : vector<8x512xf32>
    %14 = tpu.matmul %0, %13, %cst_14 {dimension_numbers = #tpu.dot_dimension_numbers<[1], [0], [0], [1], [0, 0, 1, 1], [], []>} : vector<8x128xf32>, vector<128x512xf32>, vector<8x512xf32> -> vector<8x512xf32>
    %15 = arith.addf %12, %14 : vector<8x512xf32>
    %16 = vector.extract_strided_slice %15 {offsets = [0, 0], sizes = [8, 128], strides = [1, 1]} : vector<8x512xf32> to vector<8x128xf32>
    %17 = arith.negf %16 : vector<8x128xf32>
    %18 = math.exp %17 : vector<8x128xf32>
    %cst_15 = arith.constant 1.000000e+00 : f32
    %19 = vector.broadcast %cst_15 : f32 to vector<8x128xf32>
    %20 = arith.addf %19, %18 : vector<8x128xf32>
    %21 = arith.divf %19, %20 : vector<8x128xf32>
    %22 = vector.extract_strided_slice %15 {offsets = [0, 128], sizes = [8, 128], strides = [1, 1]} : vector<8x512xf32> to vector<8x128xf32>
    %23 = arith.negf %22 : vector<8x128xf32>
    %24 = math.exp %23 : vector<8x128xf32>
    %cst_16 = arith.constant 1.000000e+00 : f32
    %25 = vector.broadcast %cst_16 : f32 to vector<8x128xf32>
    %26 = arith.addf %25, %24 : vector<8x128xf32>
    %27 = arith.divf %25, %26 : vector<8x128xf32>
    %28 = vector.extract_strided_slice %15 {offsets = [0, 256], sizes = [8, 128], strides = [1, 1]} : vector<8x512xf32> to vector<8x128xf32>
    %29 = math.tanh %28 : vector<8x128xf32>
    %30 = vector.extract_strided_slice %15 {offsets = [0, 384], sizes = [8, 128], strides = [1, 1]} : vector<8x512xf32> to vector<8x128xf32>
    %31 = arith.negf %30 : vector<8x128xf32>
    %32 = math.exp %31 : vector<8x128xf32>
    %cst_17 = arith.constant 1.000000e+00 : f32
    %33 = vector.broadcast %cst_17 : f32 to vector<8x128xf32>
    %34 = arith.addf %33, %32 : vector<8x128xf32>
    %35 = arith.divf %33, %34 : vector<8x128xf32>
    %36 = arith.mulf %27, %0 : vector<8x128xf32>
    %37 = arith.mulf %21, %29 : vector<8x128xf32>
    %38 = arith.addf %36, %37 : vector<8x128xf32>
    %39 = math.tanh %38 : vector<8x128xf32>
    %40 = arith.mulf %35, %39 : vector<8x128xf32>
    %41 = arith.index_cast %c0_i32 : i32 to index
    %c0_18 = arith.constant 0 : index
    %c0_19 = arith.constant 0 : index
    %42 = vector.load %arg10[%41, %c0_18, %c0_19] : memref<8x8x128xf32, #tpu.memory_space<vmem>>, vector<1x8x128xf32>
    %43 = vector.shape_cast %42 : vector<1x8x128xf32> to vector<8x128xf32>
    %44 = vector.shape_cast %40 : vector<8x128xf32> to vector<1x8x128xf32>
    tpu.vector_store %arg10[%41, %c0_18, %c0_19], %44 {strides = array<i32>} : memref<8x8x128xf32, #tpu.memory_space<vmem>>, vector<1x8x128xf32>,
    %c1_i32 = arith.constant 1 : i32
    %45 = arith.index_cast %c1_i32 : i32 to index
    %c0_20 = arith.constant 0 : index
    %c0_21 = arith.constant 0 : index
    %46 = vector.load %arg9[%45, %c0_20, %c0_21] : memref<8x8x512xf32, #tpu.memory_space<vmem>>, vector<1x8x512xf32>
    %47 = vector.shape_cast %46 : vector<1x8x512xf32> to vector<8x512xf32>
    %c0_22 = arith.constant 0 : index
    %c0_23 = arith.constant 0 : index
    %48 = vector.load %arg3[%c0_22, %c0_23] : memref<128x512xf32, #tpu.memory_space<vmem>>, vector<128x512xf32>
    %cst_24 = arith.constant dense<0.000000e+00> : vector<8x512xf32>
    %49 = tpu.matmul %40, %48, %cst_24 {dimension_numbers = #tpu.dot_dimension_numbers<[1], [0], [0], [1], [0, 0, 1, 1], [], []>} : vector<8x128xf32>, vector<128x512xf32>, vector<8x512xf32> -> vector<8x512xf32>
    %50 = arith.addf %47, %49 : vector<8x512xf32>
    %51 = vector.extract_strided_slice %50 {offsets = [0, 0], sizes = [8, 128], strides = [1, 1]} : vector<8x512xf32> to vector<8x128xf32>
    %52 = arith.negf %51 : vector<8x128xf32>
    %53 = math.exp %52 : vector<8x128xf32>
    %cst_25 = arith.constant 1.000000e+00 : f32
    %54 = vector.broadcast %cst_25 : f32 to vector<8x128xf32>
    %55 = arith.addf %54, %53 : vector<8x128xf32>
    %56 = arith.divf %54, %55 : vector<8x128xf32>
    %57 = vector.extract_strided_slice %50 {offsets = [0, 128], sizes = [8, 128], strides = [1, 1]} : vector<8x512xf32> to vector<8x128xf32>
    %58 = arith.negf %57 : vector<8x128xf32>
    %59 = math.exp %58 : vector<8x128xf32>
    %cst_26 = arith.constant 1.000000e+00 : f32
    %60 = vector.broadcast %cst_26 : f32 to vector<8x128xf32>
    %61 = arith.addf %60, %59 : vector<8x128xf32>
    %62 = arith.divf %60, %61 : vector<8x128xf32>
    %63 = vector.extract_strided_slice %50 {offsets = [0, 256], sizes = [8, 128], strides = [1, 1]} : vector<8x512xf32> to vector<8x128xf32>
    %64 = math.tanh %63 : vector<8x128xf32>
    %65 = vector.extract_strided_slice %50 {offsets = [0, 384], sizes = [8, 128], strides = [1, 1]} : vector<8x512xf32> to vector<8x128xf32>
    %66 = arith.negf %65 : vector<8x128xf32>
    %67 = math.exp %66 : vector<8x128xf32>
    %cst_27 = arith.constant 1.000000e+00 : f32
    %68 = vector.broadcast %cst_27 : f32 to vector<8x128xf32>
    %69 = arith.addf %68, %67 : vector<8x128xf32>
    %70 = arith.divf %68, %69 : vector<8x128xf32>
    %71 = arith.mulf %62, %38 : vector<8x128xf32>
    %72 = arith.mulf %56, %64 : vector<8x128xf32>
    %73 = arith.addf %71, %72 : vector<8x128xf32>
    %74 = math.tanh %73 : vector<8x128xf32>
    %75 = arith.mulf %70, %74 : vector<8x128xf32>
    %76 = arith.index_cast %c1_i32 : i32 to index
    %c0_28 = arith.constant 0 : index
    %c0_29 = arith.constant 0 : index
    %77 = vector.load %arg10[%76, %c0_28, %c0_29] : memref<8x8x128xf32, #tpu.memory_space<vmem>>, vector<1x8x128xf32>
    %78 = vector.shape_cast %77 : vector<1x8x128xf32> to vector<8x128xf32>
    %79 = vector.shape_cast %75 : vector<8x128xf32> to vector<1x8x128xf32>
    tpu.vector_store %arg10[%76, %c0_28, %c0_29], %79 {strides = array<i32>} : memref<8x8x128xf32, #tpu.memory_space<vmem>>, vector<1x8x128xf32>,
    %c2_i32 = arith.constant 2 : i32
    %80 = arith.index_cast %c2_i32 : i32 to index
    %c0_30 = arith.constant 0 : index
    %c0_31 = arith.constant 0 : index
    %81 = vector.load %arg9[%80, %c0_30, %c0_31] : memref<8x8x512xf32, #tpu.memory_space<vmem>>, vector<1x8x512xf32>
    %82 = vector.shape_cast %81 : vector<1x8x512xf32> to vector<8x512xf32>
    %c0_32 = arith.constant 0 : index
    %c0_33 = arith.constant 0 : index
    %83 = vector.load %arg3[%c0_32, %c0_33] : memref<128x512xf32, #tpu.memory_space<vmem>>, vector<128x512xf32>
    %cst_34 = arith.constant dense<0.000000e+00> : vector<8x512xf32>
    %84 = tpu.matmul %75, %83, %cst_34 {dimension_numbers = #tpu.dot_dimension_numbers<[1], [0], [0], [1], [0, 0, 1, 1], [], []>} : vector<8x128xf32>, vector<128x512xf32>, vector<8x512xf32> -> vector<8x512xf32>
    %85 = arith.addf %82, %84 : vector<8x512xf32>
    %86 = vector.extract_strided_slice %85 {offsets = [0, 0], sizes = [8, 128], strides = [1, 1]} : vector<8x512xf32> to vector<8x128xf32>
    %87 = arith.negf %86 : vector<8x128xf32>
    %88 = math.exp %87 : vector<8x128xf32>
    %cst_35 = arith.constant 1.000000e+00 : f32
    %89 = vector.broadcast %cst_35 : f32 to vector<8x128xf32>
    %90 = arith.addf %89, %88 : vector<8x128xf32>
    %91 = arith.divf %89, %90 : vector<8x128xf32>
    %92 = vector.extract_strided_slice %85 {offsets = [0, 128], sizes = [8, 128], strides = [1, 1]} : vector<8x512xf32> to vector<8x128xf32>
    %93 = arith.negf %92 : vector<8x128xf32>
    %94 = math.exp %93 : vector<8x128xf32>
    %cst_36 = arith.constant 1.000000e+00 : f32
    %95 = vector.broadcast %cst_36 : f32 to vector<8x128xf32>
    %96 = arith.addf %95, %94 : vector<8x128xf32>
    %97 = arith.divf %95, %96 : vector<8x128xf32>
    %98 = vector.extract_strided_slice %85 {offsets = [0, 256], sizes = [8, 128], strides = [1, 1]} : vector<8x512xf32> to vector<8x128xf32>
    %99 = math.tanh %98 : vector<8x128xf32>
    %100 = vector.extract_strided_slice %85 {offsets = [0, 384], sizes = [8, 128], strides = [1, 1]} : vector<8x512xf32> to vector<8x128xf32>
    %101 = arith.negf %100 : vector<8x128xf32>
    %102 = math.exp %101 : vector<8x128xf32>
    %cst_37 = arith.constant 1.000000e+00 : f32
    %103 = vector.broadcast %cst_37 : f32 to vector<8x128xf32>
    %104 = arith.addf %103, %102 : vector<8x128xf32>
    %105 = arith.divf %103, %104 : vector<8x128xf32>
    %106 = arith.mulf %97, %73 : vector<8x128xf32>
    %107 = arith.mulf %91, %99 : vector<8x128xf32>
    %108 = arith.addf %106, %107 : vector<8x128xf32>
    %109 = math.tanh %108 : vector<8x128xf32>
    %110 = arith.mulf %105, %109 : vector<8x128xf32>
    %111 = arith.index_cast %c2_i32 : i32 to index
    %c0_38 = arith.constant 0 : index
    %c0_39 = arith.constant 0 : index
    %112 = vector.load %arg10[%111, %c0_38, %c0_39] : memref<8x8x128xf32, #tpu.memory_space<vmem>>, vector<1x8x128xf32>
    %113 = vector.shape_cast %112 : vector<1x8x128xf32> to vector<8x128xf32>
    %114 = vector.shape_cast %110 : vector<8x128xf32> to vector<1x8x128xf32>
    tpu.vector_store %arg10[%111, %c0_38, %c0_39], %114 {strides = array<i32>} : memref<8x8x128xf32, #tpu.memory_space<vmem>>, vector<1x8x128xf32>,
    %c3_i32 = arith.constant 3 : i32
    %115 = arith.index_cast %c3_i32 : i32 to index
    %c0_40 = arith.constant 0 : index
    %c0_41 = arith.constant 0 : index
    %116 = vector.load %arg9[%115, %c0_40, %c0_41] : memref<8x8x512xf32, #tpu.memory_space<vmem>>, vector<1x8x512xf32>
    %117 = vector.shape_cast %116 : vector<1x8x512xf32> to vector<8x512xf32>
    %c0_42 = arith.constant 0 : index
    %c0_43 = arith.constant 0 : index
    %118 = vector.load %arg3[%c0_42, %c0_43] : memref<128x512xf32, #tpu.memory_space<vmem>>, vector<128x512xf32>
    %cst_44 = arith.constant dense<0.000000e+00> : vector<8x512xf32>
    %119 = tpu.matmul %110, %118, %cst_44 {dimension_numbers = #tpu.dot_dimension_numbers<[1], [0], [0], [1], [0, 0, 1, 1], [], []>} : vector<8x128xf32>, vector<128x512xf32>, vector<8x512xf32> -> vector<8x512xf32>
    %120 = arith.addf %117, %119 : vector<8x512xf32>
    %121 = vector.extract_strided_slice %120 {offsets = [0, 0], sizes = [8, 128], strides = [1, 1]} : vector<8x512xf32> to vector<8x128xf32>
    %122 = arith.negf %121 : vector<8x128xf32>
    %123 = math.exp %122 : vector<8x128xf32>
    %cst_45 = arith.constant 1.000000e+00 : f32
    %124 = vector.broadcast %cst_45 : f32 to vector<8x128xf32>
    %125 = arith.addf %124, %123 : vector<8x128xf32>
    %126 = arith.divf %124, %125 : vector<8x128xf32>
    %127 = vector.extract_strided_slice %120 {offsets = [0, 128], sizes = [8, 128], strides = [1, 1]} : vector<8x512xf32> to vector<8x128xf32>
    %128 = arith.negf %127 : vector<8x128xf32>
    %129 = math.exp %128 : vector<8x128xf32>
    %cst_46 = arith.constant 1.000000e+00 : f32
    %130 = vector.broadcast %cst_46 : f32 to vector<8x128xf32>
    %131 = arith.addf %130, %129 : vector<8x128xf32>
    %132 = arith.divf %130, %131 : vector<8x128xf32>
    %133 = vector.extract_strided_slice %120 {offsets = [0, 256], sizes = [8, 128], strides = [1, 1]} : vector<8x512xf32> to vector<8x128xf32>
    %134 = math.tanh %133 : vector<8x128xf32>
    %135 = vector.extract_strided_slice %120 {offsets = [0, 384], sizes = [8, 128], strides = [1, 1]} : vector<8x512xf32> to vector<8x128xf32>
    %136 = arith.negf %135 : vector<8x128xf32>
    %137 = math.exp %136 : vector<8x128xf32>
    %cst_47 = arith.constant 1.000000e+00 : f32
    %138 = vector.broadcast %cst_47 : f32 to vector<8x128xf32>
    %139 = arith.addf %138, %137 : vector<8x128xf32>
    %140 = arith.divf %138, %139 : vector<8x128xf32>
    %141 = arith.mulf %132, %108 : vector<8x128xf32>
    %142 = arith.mulf %126, %134 : vector<8x128xf32>
    %143 = arith.addf %141, %142 : vector<8x128xf32>
    %144 = math.tanh %143 : vector<8x128xf32>
    %145 = arith.mulf %140, %144 : vector<8x128xf32>
    %146 = arith.index_cast %c3_i32 : i32 to index
    %c0_48 = arith.constant 0 : index
    %c0_49 = arith.constant 0 : index
    %147 = vector.load %arg10[%146, %c0_48, %c0_49] : memref<8x8x128xf32, #tpu.memory_space<vmem>>, vector<1x8x128xf32>
    %148 = vector.shape_cast %147 : vector<1x8x128xf32> to vector<8x128xf32>
    %149 = vector.shape_cast %145 : vector<8x128xf32> to vector<1x8x128xf32>
    tpu.vector_store %arg10[%146, %c0_48, %c0_49], %149 {strides = array<i32>} : memref<8x8x128xf32, #tpu.memory_space<vmem>>, vector<1x8x128xf32>,
    %c4_i32 = arith.constant 4 : i32
    %150 = arith.index_cast %c4_i32 : i32 to index
    %c0_50 = arith.constant 0 : index
    %c0_51 = arith.constant 0 : index
    %151 = vector.load %arg9[%150, %c0_50, %c0_51] : memref<8x8x512xf32, #tpu.memory_space<vmem>>, vector<1x8x512xf32>
    %152 = vector.shape_cast %151 : vector<1x8x512xf32> to vector<8x512xf32>
    %c0_52 = arith.constant 0 : index
    %c0_53 = arith.constant 0 : index
    %153 = vector.load %arg3[%c0_52, %c0_53] : memref<128x512xf32, #tpu.memory_space<vmem>>, vector<128x512xf32>
    %cst_54 = arith.constant dense<0.000000e+00> : vector<8x512xf32>
    %154 = tpu.matmul %145, %153, %cst_54 {dimension_numbers = #tpu.dot_dimension_numbers<[1], [0], [0], [1], [0, 0, 1, 1], [], []>} : vector<8x128xf32>, vector<128x512xf32>, vector<8x512xf32> -> vector<8x512xf32>
    %155 = arith.addf %152, %154 : vector<8x512xf32>
    %156 = vector.extract_strided_slice %155 {offsets = [0, 0], sizes = [8, 128], strides = [1, 1]} : vector<8x512xf32> to vector<8x128xf32>
    %157 = arith.negf %156 : vector<8x128xf32>
    %158 = math.exp %157 : vector<8x128xf32>
    %cst_55 = arith.constant 1.000000e+00 : f32
    %159 = vector.broadcast %cst_55 : f32 to vector<8x128xf32>
    %160 = arith.addf %159, %158 : vector<8x128xf32>
    %161 = arith.divf %159, %160 : vector<8x128xf32>
    %162 = vector.extract_strided_slice %155 {offsets = [0, 128], sizes = [8, 128], strides = [1, 1]} : vector<8x512xf32> to vector<8x128xf32>
    %163 = arith.negf %162 : vector<8x128xf32>
    %164 = math.exp %163 : vector<8x128xf32>
    %cst_56 = arith.constant 1.000000e+00 : f32
    %165 = vector.broadcast %cst_56 : f32 to vector<8x128xf32>
    %166 = arith.addf %165, %164 : vector<8x128xf32>
    %167 = arith.divf %165, %166 : vector<8x128xf32>
    %168 = vector.extract_strided_slice %155 {offsets = [0, 256], sizes = [8, 128], strides = [1, 1]} : vector<8x512xf32> to vector<8x128xf32>
    %169 = math.tanh %168 : vector<8x128xf32>
    %170 = vector.extract_strided_slice %155 {offsets = [0, 384], sizes = [8, 128], strides = [1, 1]} : vector<8x512xf32> to vector<8x128xf32>
    %171 = arith.negf %170 : vector<8x128xf32>
    %172 = math.exp %171 : vector<8x128xf32>
    %cst_57 = arith.constant 1.000000e+00 : f32
    %173 = vector.broadcast %cst_57 : f32 to vector<8x128xf32>
    %174 = arith.addf %173, %172 : vector<8x128xf32>
    %175 = arith.divf %173, %174 : vector<8x128xf32>
    %176 = arith.mulf %167, %143 : vector<8x128xf32>
    %177 = arith.mulf %161, %169 : vector<8x128xf32>
    %178 = arith.addf %176, %177 : vector<8x128xf32>
    %179 = math.tanh %178 : vector<8x128xf32>
    %180 = arith.mulf %175, %179 : vector<8x128xf32>
    %181 = arith.index_cast %c4_i32 : i32 to index
    %c0_58 = arith.constant 0 : index
    %c0_59 = arith.constant 0 : index
    %182 = vector.load %arg10[%181, %c0_58, %c0_59] : memref<8x8x128xf32, #tpu.memory_space<vmem>>, vector<1x8x128xf32>
    %183 = vector.shape_cast %182 : vector<1x8x128xf32> to vector<8x128xf32>
    %184 = vector.shape_cast %180 : vector<8x128xf32> to vector<1x8x128xf32>
    tpu.vector_store %arg10[%181, %c0_58, %c0_59], %184 {strides = array<i32>} : memref<8x8x128xf32, #tpu.memory_space<vmem>>, vector<1x8x128xf32>,
    %c5_i32 = arith.constant 5 : i32
    %185 = arith.index_cast %c5_i32 : i32 to index
    %c0_60 = arith.constant 0 : index
    %c0_61 = arith.constant 0 : index
    %186 = vector.load %arg9[%185, %c0_60, %c0_61] : memref<8x8x512xf32, #tpu.memory_space<vmem>>, vector<1x8x512xf32>
    %187 = vector.shape_cast %186 : vector<1x8x512xf32> to vector<8x512xf32>
    %c0_62 = arith.constant 0 : index
    %c0_63 = arith.constant 0 : index
    %188 = vector.load %arg3[%c0_62, %c0_63] : memref<128x512xf32, #tpu.memory_space<vmem>>, vector<128x512xf32>
    %cst_64 = arith.constant dense<0.000000e+00> : vector<8x512xf32>
    %189 = tpu.matmul %180, %188, %cst_64 {dimension_numbers = #tpu.dot_dimension_numbers<[1], [0], [0], [1], [0, 0, 1, 1], [], []>} : vector<8x128xf32>, vector<128x512xf32>, vector<8x512xf32> -> vector<8x512xf32>
    %190 = arith.addf %187, %189 : vector<8x512xf32>
    %191 = vector.extract_strided_slice %190 {offsets = [0, 0], sizes = [8, 128], strides = [1, 1]} : vector<8x512xf32> to vector<8x128xf32>
    %192 = arith.negf %191 : vector<8x128xf32>
    %193 = math.exp %192 : vector<8x128xf32>
    %cst_65 = arith.constant 1.000000e+00 : f32
    %194 = vector.broadcast %cst_65 : f32 to vector<8x128xf32>
    %195 = arith.addf %194, %193 : vector<8x128xf32>
    %196 = arith.divf %194, %195 : vector<8x128xf32>
    %197 = vector.extract_strided_slice %190 {offsets = [0, 128], sizes = [8, 128], strides = [1, 1]} : vector<8x512xf32> to vector<8x128xf32>
    %198 = arith.negf %197 : vector<8x128xf32>
    %199 = math.exp %198 : vector<8x128xf32>
    %cst_66 = arith.constant 1.000000e+00 : f32
    %200 = vector.broadcast %cst_66 : f32 to vector<8x128xf32>
    %201 = arith.addf %200, %199 : vector<8x128xf32>
    %202 = arith.divf %200, %201 : vector<8x128xf32>
    %203 = vector.extract_strided_slice %190 {offsets = [0, 256], sizes = [8, 128], strides = [1, 1]} : vector<8x512xf32> to vector<8x128xf32>
    %204 = math.tanh %203 : vector<8x128xf32>
    %205 = vector.extract_strided_slice %190 {offsets = [0, 384], sizes = [8, 128], strides = [1, 1]} : vector<8x512xf32> to vector<8x128xf32>
    %206 = arith.negf %205 : vector<8x128xf32>
    %207 = math.exp %206 : vector<8x128xf32>
    %cst_67 = arith.constant 1.000000e+00 : f32
    %208 = vector.broadcast %cst_67 : f32 to vector<8x128xf32>
    %209 = arith.addf %208, %207 : vector<8x128xf32>
    %210 = arith.divf %208, %209 : vector<8x128xf32>
    %211 = arith.mulf %202, %178 : vector<8x128xf32>
    %212 = arith.mulf %196, %204 : vector<8x128xf32>
    %213 = arith.addf %211, %212 : vector<8x128xf32>
    %214 = math.tanh %213 : vector<8x128xf32>
    %215 = arith.mulf %210, %214 : vector<8x128xf32>
    %216 = arith.index_cast %c5_i32 : i32 to index
    %c0_68 = arith.constant 0 : index
    %c0_69 = arith.constant 0 : index
    %217 = vector.load %arg10[%216, %c0_68, %c0_69] : memref<8x8x128xf32, #tpu.memory_space<vmem>>, vector<1x8x128xf32>
    %218 = vector.shape_cast %217 : vector<1x8x128xf32> to vector<8x128xf32>
    %219 = vector.shape_cast %215 : vector<8x128xf32> to vector<1x8x128xf32>
    tpu.vector_store %arg10[%216, %c0_68, %c0_69], %219 {strides = array<i32>} : memref<8x8x128xf32, #tpu.memory_space<vmem>>, vector<1x8x128xf32>,
    %c6_i32 = arith.constant 6 : i32
    %220 = arith.index_cast %c6_i32 : i32 to index
    %c0_70 = arith.constant 0 : index
    %c0_71 = arith.constant 0 : index
    %221 = vector.load %arg9[%220, %c0_70, %c0_71] : memref<8x8x512xf32, #tpu.memory_space<vmem>>, vector<1x8x512xf32>
    %222 = vector.shape_cast %221 : vector<1x8x512xf32> to vector<8x512xf32>
    %c0_72 = arith.constant 0 : index
    %c0_73 = arith.constant 0 : index
    %223 = vector.load %arg3[%c0_72, %c0_73] : memref<128x512xf32, #tpu.memory_space<vmem>>, vector<128x512xf32>
    %cst_74 = arith.constant dense<0.000000e+00> : vector<8x512xf32>
    %224 = tpu.matmul %215, %223, %cst_74 {dimension_numbers = #tpu.dot_dimension_numbers<[1], [0], [0], [1], [0, 0, 1, 1], [], []>} : vector<8x128xf32>, vector<128x512xf32>, vector<8x512xf32> -> vector<8x512xf32>
    %225 = arith.addf %222, %224 : vector<8x512xf32>
    %226 = vector.extract_strided_slice %225 {offsets = [0, 0], sizes = [8, 128], strides = [1, 1]} : vector<8x512xf32> to vector<8x128xf32>
    %227 = arith.negf %226 : vector<8x128xf32>
    %228 = math.exp %227 : vector<8x128xf32>
    %cst_75 = arith.constant 1.000000e+00 : f32
    %229 = vector.broadcast %cst_75 : f32 to vector<8x128xf32>
    %230 = arith.addf %229, %228 : vector<8x128xf32>
    %231 = arith.divf %229, %230 : vector<8x128xf32>
    %232 = vector.extract_strided_slice %225 {offsets = [0, 128], sizes = [8, 128], strides = [1, 1]} : vector<8x512xf32> to vector<8x128xf32>
    %233 = arith.negf %232 : vector<8x128xf32>
    %234 = math.exp %233 : vector<8x128xf32>
    %cst_76 = arith.constant 1.000000e+00 : f32
    %235 = vector.broadcast %cst_76 : f32 to vector<8x128xf32>
    %236 = arith.addf %235, %234 : vector<8x128xf32>
    %237 = arith.divf %235, %236 : vector<8x128xf32>
    %238 = vector.extract_strided_slice %225 {offsets = [0, 256], sizes = [8, 128], strides = [1, 1]} : vector<8x512xf32> to vector<8x128xf32>
    %239 = math.tanh %238 : vector<8x128xf32>
    %240 = vector.extract_strided_slice %225 {offsets = [0, 384], sizes = [8, 128], strides = [1, 1]} : vector<8x512xf32> to vector<8x128xf32>
    %241 = arith.negf %240 : vector<8x128xf32>
    %242 = math.exp %241 : vector<8x128xf32>
    %cst_77 = arith.constant 1.000000e+00 : f32
    %243 = vector.broadcast %cst_77 : f32 to vector<8x128xf32>
    %244 = arith.addf %243, %242 : vector<8x128xf32>
    %245 = arith.divf %243, %244 : vector<8x128xf32>
    %246 = arith.mulf %237, %213 : vector<8x128xf32>
    %247 = arith.mulf %231, %239 : vector<8x128xf32>
    %248 = arith.addf %246, %247 : vector<8x128xf32>
    %249 = math.tanh %248 : vector<8x128xf32>
    %250 = arith.mulf %245, %249 : vector<8x128xf32>
    %251 = arith.index_cast %c6_i32 : i32 to index
    %c0_78 = arith.constant 0 : index
    %c0_79 = arith.constant 0 : index
    %252 = vector.load %arg10[%251, %c0_78, %c0_79] : memref<8x8x128xf32, #tpu.memory_space<vmem>>, vector<1x8x128xf32>
    %253 = vector.shape_cast %252 : vector<1x8x128xf32> to vector<8x128xf32>
    %254 = vector.shape_cast %250 : vector<8x128xf32> to vector<1x8x128xf32>
    tpu.vector_store %arg10[%251, %c0_78, %c0_79], %254 {strides = array<i32>} : memref<8x8x128xf32, #tpu.memory_space<vmem>>, vector<1x8x128xf32>,
    %c7_i32 = arith.constant 7 : i32
    %255 = arith.index_cast %c7_i32 : i32 to index
    %c0_80 = arith.constant 0 : index
    %c0_81 = arith.constant 0 : index
    %256 = vector.load %arg9[%255, %c0_80, %c0_81] : memref<8x8x512xf32, #tpu.memory_space<vmem>>, vector<1x8x512xf32>
    %257 = vector.shape_cast %256 : vector<1x8x512xf32> to vector<8x512xf32>
    %c0_82 = arith.constant 0 : index
    %c0_83 = arith.constant 0 : index
    %258 = vector.load %arg3[%c0_82, %c0_83] : memref<128x512xf32, #tpu.memory_space<vmem>>, vector<128x512xf32>
    %cst_84 = arith.constant dense<0.000000e+00> : vector<8x512xf32>
    %259 = tpu.matmul %250, %258, %cst_84 {dimension_numbers = #tpu.dot_dimension_numbers<[1], [0], [0], [1], [0, 0, 1, 1], [], []>} : vector<8x128xf32>, vector<128x512xf32>, vector<8x512xf32> -> vector<8x512xf32>
    %260 = arith.addf %257, %259 : vector<8x512xf32>
    %261 = vector.extract_strided_slice %260 {offsets = [0, 0], sizes = [8, 128], strides = [1, 1]} : vector<8x512xf32> to vector<8x128xf32>
    %262 = arith.negf %261 : vector<8x128xf32>
    %263 = math.exp %262 : vector<8x128xf32>
    %cst_85 = arith.constant 1.000000e+00 : f32
    %264 = vector.broadcast %cst_85 : f32 to vector<8x128xf32>
    %265 = arith.addf %264, %263 : vector<8x128xf32>
    %266 = arith.divf %264, %265 : vector<8x128xf32>
    %267 = vector.extract_strided_slice %260 {offsets = [0, 128], sizes = [8, 128], strides = [1, 1]} : vector<8x512xf32> to vector<8x128xf32>
    %268 = arith.negf %267 : vector<8x128xf32>
    %269 = math.exp %268 : vector<8x128xf32>
    %cst_86 = arith.constant 1.000000e+00 : f32
    %270 = vector.broadcast %cst_86 : f32 to vector<8x128xf32>
    %271 = arith.addf %270, %269 : vector<8x128xf32>
    %272 = arith.divf %270, %271 : vector<8x128xf32>
    %273 = vector.extract_strided_slice %260 {offsets = [0, 256], sizes = [8, 128], strides = [1, 1]} : vector<8x512xf32> to vector<8x128xf32>
    %274 = math.tanh %273 : vector<8x128xf32>
    %275 = vector.extract_strided_slice %260 {offsets = [0, 384], sizes = [8, 128], strides = [1, 1]} : vector<8x512xf32> to vector<8x128xf32>
    %276 = arith.negf %275 : vector<8x128xf32>
    %277 = math.exp %276 : vector<8x128xf32>
    %cst_87 = arith.constant 1.000000e+00 : f32
    %278 = vector.broadcast %cst_87 : f32 to vector<8x128xf32>
    %279 = arith.addf %278, %277 : vector<8x128xf32>
    %280 = arith.divf %278, %279 : vector<8x128xf32>
    %281 = arith.mulf %272, %248 : vector<8x128xf32>
    %282 = arith.mulf %266, %274 : vector<8x128xf32>
    %283 = arith.addf %281, %282 : vector<8x128xf32>
    %284 = math.tanh %283 : vector<8x128xf32>
    %285 = arith.mulf %280, %284 : vector<8x128xf32>
    %286 = arith.index_cast %c7_i32 : i32 to index
    %c0_88 = arith.constant 0 : index
    %c0_89 = arith.constant 0 : index
    %287 = vector.load %arg10[%286, %c0_88, %c0_89] : memref<8x8x128xf32, #tpu.memory_space<vmem>>, vector<1x8x128xf32>
    %288 = vector.shape_cast %287 : vector<1x8x128xf32> to vector<8x128xf32>
    %289 = vector.shape_cast %285 : vector<8x128xf32> to vector<1x8x128xf32>
    tpu.vector_store %arg10[%286, %c0_88, %c0_89], %289 {strides = array<i32>} : memref<8x8x128xf32, #tpu.memory_space<vmem>>, vector<1x8x128xf32>,
    %c8_i32 = arith.constant 8 : i32
    %c0_90 = arith.constant 0 : index
    %c0_91 = arith.constant 0 : index
    %c0_92 = arith.constant 0 : index
    %290 = vector.load %arg10[%c0_90, %c0_91, %c0_92] : memref<8x8x128xf32, #tpu.memory_space<vmem>>, vector<8x8x128xf32>
    %291 = vector.shape_cast %290 : vector<8x8x128xf32> to vector<64x128xf32>
    %c0_93 = arith.constant 0 : index
    %c0_94 = arith.constant 0 : index
    %292 = vector.load %arg5[%c0_93, %c0_94] : memref<128x512xf32, #tpu.memory_space<vmem>>, vector<128x512xf32>
    %cst_95 = arith.constant dense<0.000000e+00> : vector<64x512xf32>
    %293 = tpu.matmul %291, %292, %cst_95 {dimension_numbers = #tpu.dot_dimension_numbers<[1], [0], [0], [1], [0, 0, 1, 1], [], []>} : vector<64x128xf32>, vector<128x512xf32>, vector<64x512xf32> -> vector<64x512xf32>
    %c0_96 = arith.constant 0 : index
    %c0_97 = arith.constant 0 : index
    %294 = vector.load %arg7[%c0_96, %c0_97] : memref<1x512xf32, #tpu.memory_space<vmem>>, vector<1x512xf32>
    %295 = vector.broadcast %294 : vector<1x512xf32> to vector<64x512xf32>
    %296 = arith.addf %293, %295 : vector<64x512xf32>
    %297 = vector.shape_cast %296 : vector<64x512xf32> to vector<8x8x512xf32>
    %c0_98 = arith.constant 0 : index
    %c0_99 = arith.constant 0 : index
    %c0_100 = arith.constant 0 : index
    %298 = vector.load %arg9[%c0_98, %c0_99, %c0_100] : memref<8x8x512xf32, #tpu.memory_space<vmem>>, vector<8x8x512xf32>
    tpu.vector_store %arg9[%c0_98, %c0_99, %c0_100], %297 {strides = array<i32>} : memref<8x8x512xf32, #tpu.memory_space<vmem>>, vector<8x8x512xf32>,
    %c0_i32_101 = arith.constant 0 : i32
    %299 = arith.index_cast %c0_i32_101 : i32 to index
    %c0_102 = arith.constant 0 : index
    %c0_103 = arith.constant 0 : index
    %300 = vector.load %arg9[%299, %c0_102, %c0_103] : memref<8x8x512xf32, #tpu.memory_space<vmem>>, vector<1x8x512xf32>
    %301 = vector.shape_cast %300 : vector<1x8x512xf32> to vector<8x512xf32>
    %c0_104 = arith.constant 0 : index
    %c0_105 = arith.constant 0 : index
    %302 = vector.load %arg6[%c0_104, %c0_105] : memref<128x512xf32, #tpu.memory_space<vmem>>, vector<128x512xf32>
    %cst_106 = arith.constant dense<0.000000e+00> : vector<8x512xf32>
    %303 = tpu.matmul %0, %302, %cst_106 {dimension_numbers = #tpu.dot_dimension_numbers<[1], [0], [0], [1], [0, 0, 1, 1], [], []>} : vector<8x128xf32>, vector<128x512xf32>, vector<8x512xf32> -> vector<8x512xf32>
    %304 = arith.addf %301, %303 : vector<8x512xf32>
    %305 = vector.extract_strided_slice %304 {offsets = [0, 0], sizes = [8, 128], strides = [1, 1]} : vector<8x512xf32> to vector<8x128xf32>
    %306 = arith.negf %305 : vector<8x128xf32>
    %307 = math.exp %306 : vector<8x128xf32>
    %cst_107 = arith.constant 1.000000e+00 : f32
    %308 = vector.broadcast %cst_107 : f32 to vector<8x128xf32>
    %309 = arith.addf %308, %307 : vector<8x128xf32>
    %310 = arith.divf %308, %309 : vector<8x128xf32>
    %311 = vector.extract_strided_slice %304 {offsets = [0, 128], sizes = [8, 128], strides = [1, 1]} : vector<8x512xf32> to vector<8x128xf32>
    %312 = arith.negf %311 : vector<8x128xf32>
    %313 = math.exp %312 : vector<8x128xf32>
    %cst_108 = arith.constant 1.000000e+00 : f32
    %314 = vector.broadcast %cst_108 : f32 to vector<8x128xf32>
    %315 = arith.addf %314, %313 : vector<8x128xf32>
    %316 = arith.divf %314, %315 : vector<8x128xf32>
    %317 = vector.extract_strided_slice %304 {offsets = [0, 256], sizes = [8, 128], strides = [1, 1]} : vector<8x512xf32> to vector<8x128xf32>
    %318 = math.tanh %317 : vector<8x128xf32>
    %319 = vector.extract_strided_slice %304 {offsets = [0, 384], sizes = [8, 128], strides = [1, 1]} : vector<8x512xf32> to vector<8x128xf32>
    %320 = arith.negf %319 : vector<8x128xf32>
    %321 = math.exp %320 : vector<8x128xf32>
    %cst_109 = arith.constant 1.000000e+00 : f32
    %322 = vector.broadcast %cst_109 : f32 to vector<8x128xf32>
    %323 = arith.addf %322, %321 : vector<8x128xf32>
    %324 = arith.divf %322, %323 : vector<8x128xf32>
    %325 = arith.mulf %316, %0 : vector<8x128xf32>
    %326 = arith.mulf %310, %318 : vector<8x128xf32>
    %327 = arith.addf %325, %326 : vector<8x128xf32>
    %328 = math.tanh %327 : vector<8x128xf32>
    %329 = arith.mulf %324, %328 : vector<8x128xf32>
    %330 = arith.index_cast %c0_i32_101 : i32 to index
    %c0_110 = arith.constant 0 : index
    %c0_111 = arith.constant 0 : index
    %331 = vector.load %arg8[%330, %c0_110, %c0_111] : memref<8x8x128xf32, #tpu.memory_space<vmem>>, vector<1x8x128xf32>
    %332 = vector.shape_cast %331 : vector<1x8x128xf32> to vector<8x128xf32>
    %333 = vector.shape_cast %329 : vector<8x128xf32> to vector<1x8x128xf32>
    tpu.vector_store %arg8[%330, %c0_110, %c0_111], %333 {strides = array<i32>} : memref<8x8x128xf32, #tpu.memory_space<vmem>>, vector<1x8x128xf32>,
    %c1_i32_112 = arith.constant 1 : i32
    %334 = arith.index_cast %c1_i32_112 : i32 to index
    %c0_113 = arith.constant 0 : index
    %c0_114 = arith.constant 0 : index
    %335 = vector.load %arg9[%334, %c0_113, %c0_114] : memref<8x8x512xf32, #tpu.memory_space<vmem>>, vector<1x8x512xf32>
    %336 = vector.shape_cast %335 : vector<1x8x512xf32> to vector<8x512xf32>
    %c0_115 = arith.constant 0 : index
    %c0_116 = arith.constant 0 : index
    %337 = vector.load %arg6[%c0_115, %c0_116] : memref<128x512xf32, #tpu.memory_space<vmem>>, vector<128x512xf32>
    %cst_117 = arith.constant dense<0.000000e+00> : vector<8x512xf32>
    %338 = tpu.matmul %329, %337, %cst_117 {dimension_numbers = #tpu.dot_dimension_numbers<[1], [0], [0], [1], [0, 0, 1, 1], [], []>} : vector<8x128xf32>, vector<128x512xf32>, vector<8x512xf32> -> vector<8x512xf32>
    %339 = arith.addf %336, %338 : vector<8x512xf32>
    %340 = vector.extract_strided_slice %339 {offsets = [0, 0], sizes = [8, 128], strides = [1, 1]} : vector<8x512xf32> to vector<8x128xf32>
    %341 = arith.negf %340 : vector<8x128xf32>
    %342 = math.exp %341 : vector<8x128xf32>
    %cst_118 = arith.constant 1.000000e+00 : f32
    %343 = vector.broadcast %cst_118 : f32 to vector<8x128xf32>
    %344 = arith.addf %343, %342 : vector<8x128xf32>
    %345 = arith.divf %343, %344 : vector<8x128xf32>
    %346 = vector.extract_strided_slice %339 {offsets = [0, 128], sizes = [8, 128], strides = [1, 1]} : vector<8x512xf32> to vector<8x128xf32>
    %347 = arith.negf %346 : vector<8x128xf32>
    %348 = math.exp %347 : vector<8x128xf32>
    %cst_119 = arith.constant 1.000000e+00 : f32
    %349 = vector.broadcast %cst_119 : f32 to vector<8x128xf32>
    %350 = arith.addf %349, %348 : vector<8x128xf32>
    %351 = arith.divf %349, %350 : vector<8x128xf32>
    %352 = vector.extract_strided_slice %339 {offsets = [0, 256], sizes = [8, 128], strides = [1, 1]} : vector<8x512xf32> to vector<8x128xf32>
    %353 = math.tanh %352 : vector<8x128xf32>
    %354 = vector.extract_strided_slice %339 {offsets = [0, 384], sizes = [8, 128], strides = [1, 1]} : vector<8x512xf32> to vector<8x128xf32>
    %355 = arith.negf %354 : vector<8x128xf32>
    %356 = math.exp %355 : vector<8x128xf32>
    %cst_120 = arith.constant 1.000000e+00 : f32
    %357 = vector.broadcast %cst_120 : f32 to vector<8x128xf32>
    %358 = arith.addf %357, %356 : vector<8x128xf32>
    %359 = arith.divf %357, %358 : vector<8x128xf32>
    %360 = arith.mulf %351, %327 : vector<8x128xf32>
    %361 = arith.mulf %345, %353 : vector<8x128xf32>
    %362 = arith.addf %360, %361 : vector<8x128xf32>
    %363 = math.tanh %362 : vector<8x128xf32>
    %364 = arith.mulf %359, %363 : vector<8x128xf32>
    %365 = arith.index_cast %c1_i32_112 : i32 to index
    %c0_121 = arith.constant 0 : index
    %c0_122 = arith.constant 0 : index
    %366 = vector.load %arg8[%365, %c0_121, %c0_122] : memref<8x8x128xf32, #tpu.memory_space<vmem>>, vector<1x8x128xf32>
    %367 = vector.shape_cast %366 : vector<1x8x128xf32> to vector<8x128xf32>
    %368 = vector.shape_cast %364 : vector<8x128xf32> to vector<1x8x128xf32>
    tpu.vector_store %arg8[%365, %c0_121, %c0_122], %368 {strides = array<i32>} : memref<8x8x128xf32, #tpu.memory_space<vmem>>, vector<1x8x128xf32>,
    %c2_i32_123 = arith.constant 2 : i32
    %369 = arith.index_cast %c2_i32_123 : i32 to index
    %c0_124 = arith.constant 0 : index
    %c0_125 = arith.constant 0 : index
    %370 = vector.load %arg9[%369, %c0_124, %c0_125] : memref<8x8x512xf32, #tpu.memory_space<vmem>>, vector<1x8x512xf32>
    %371 = vector.shape_cast %370 : vector<1x8x512xf32> to vector<8x512xf32>
    %c0_126 = arith.constant 0 : index
    %c0_127 = arith.constant 0 : index
    %372 = vector.load %arg6[%c0_126, %c0_127] : memref<128x512xf32, #tpu.memory_space<vmem>>, vector<128x512xf32>
    %cst_128 = arith.constant dense<0.000000e+00> : vector<8x512xf32>
    %373 = tpu.matmul %364, %372, %cst_128 {dimension_numbers = #tpu.dot_dimension_numbers<[1], [0], [0], [1], [0, 0, 1, 1], [], []>} : vector<8x128xf32>, vector<128x512xf32>, vector<8x512xf32> -> vector<8x512xf32>
    %374 = arith.addf %371, %373 : vector<8x512xf32>
    %375 = vector.extract_strided_slice %374 {offsets = [0, 0], sizes = [8, 128], strides = [1, 1]} : vector<8x512xf32> to vector<8x128xf32>
    %376 = arith.negf %375 : vector<8x128xf32>
    %377 = math.exp %376 : vector<8x128xf32>
    %cst_129 = arith.constant 1.000000e+00 : f32
    %378 = vector.broadcast %cst_129 : f32 to vector<8x128xf32>
    %379 = arith.addf %378, %377 : vector<8x128xf32>
    %380 = arith.divf %378, %379 : vector<8x128xf32>
    %381 = vector.extract_strided_slice %374 {offsets = [0, 128], sizes = [8, 128], strides = [1, 1]} : vector<8x512xf32> to vector<8x128xf32>
    %382 = arith.negf %381 : vector<8x128xf32>
    %383 = math.exp %382 : vector<8x128xf32>
    %cst_130 = arith.constant 1.000000e+00 : f32
    %384 = vector.broadcast %cst_130 : f32 to vector<8x128xf32>
    %385 = arith.addf %384, %383 : vector<8x128xf32>
    %386 = arith.divf %384, %385 : vector<8x128xf32>
    %387 = vector.extract_strided_slice %374 {offsets = [0, 256], sizes = [8, 128], strides = [1, 1]} : vector<8x512xf32> to vector<8x128xf32>
    %388 = math.tanh %387 : vector<8x128xf32>
    %389 = vector.extract_strided_slice %374 {offsets = [0, 384], sizes = [8, 128], strides = [1, 1]} : vector<8x512xf32> to vector<8x128xf32>
    %390 = arith.negf %389 : vector<8x128xf32>
    %391 = math.exp %390 : vector<8x128xf32>
    %cst_131 = arith.constant 1.000000e+00 : f32
    %392 = vector.broadcast %cst_131 : f32 to vector<8x128xf32>
    %393 = arith.addf %392, %391 : vector<8x128xf32>
    %394 = arith.divf %392, %393 : vector<8x128xf32>
    %395 = arith.mulf %386, %362 : vector<8x128xf32>
    %396 = arith.mulf %380, %388 : vector<8x128xf32>
    %397 = arith.addf %395, %396 : vector<8x128xf32>
    %398 = math.tanh %397 : vector<8x128xf32>
    %399 = arith.mulf %394, %398 : vector<8x128xf32>
    %400 = arith.index_cast %c2_i32_123 : i32 to index
    %c0_132 = arith.constant 0 : index
    %c0_133 = arith.constant 0 : index
    %401 = vector.load %arg8[%400, %c0_132, %c0_133] : memref<8x8x128xf32, #tpu.memory_space<vmem>>, vector<1x8x128xf32>
    %402 = vector.shape_cast %401 : vector<1x8x128xf32> to vector<8x128xf32>
    %403 = vector.shape_cast %399 : vector<8x128xf32> to vector<1x8x128xf32>
    tpu.vector_store %arg8[%400, %c0_132, %c0_133], %403 {strides = array<i32>} : memref<8x8x128xf32, #tpu.memory_space<vmem>>, vector<1x8x128xf32>,
    %c3_i32_134 = arith.constant 3 : i32
    %404 = arith.index_cast %c3_i32_134 : i32 to index
    %c0_135 = arith.constant 0 : index
    %c0_136 = arith.constant 0 : index
    %405 = vector.load %arg9[%404, %c0_135, %c0_136] : memref<8x8x512xf32, #tpu.memory_space<vmem>>, vector<1x8x512xf32>
    %406 = vector.shape_cast %405 : vector<1x8x512xf32> to vector<8x512xf32>
    %c0_137 = arith.constant 0 : index
    %c0_138 = arith.constant 0 : index
    %407 = vector.load %arg6[%c0_137, %c0_138] : memref<128x512xf32, #tpu.memory_space<vmem>>, vector<128x512xf32>
    %cst_139 = arith.constant dense<0.000000e+00> : vector<8x512xf32>
    %408 = tpu.matmul %399, %407, %cst_139 {dimension_numbers = #tpu.dot_dimension_numbers<[1], [0], [0], [1], [0, 0, 1, 1], [], []>} : vector<8x128xf32>, vector<128x512xf32>, vector<8x512xf32> -> vector<8x512xf32>
    %409 = arith.addf %406, %408 : vector<8x512xf32>
    %410 = vector.extract_strided_slice %409 {offsets = [0, 0], sizes = [8, 128], strides = [1, 1]} : vector<8x512xf32> to vector<8x128xf32>
    %411 = arith.negf %410 : vector<8x128xf32>
    %412 = math.exp %411 : vector<8x128xf32>
    %cst_140 = arith.constant 1.000000e+00 : f32
    %413 = vector.broadcast %cst_140 : f32 to vector<8x128xf32>
    %414 = arith.addf %413, %412 : vector<8x128xf32>
    %415 = arith.divf %413, %414 : vector<8x128xf32>
    %416 = vector.extract_strided_slice %409 {offsets = [0, 128], sizes = [8, 128], strides = [1, 1]} : vector<8x512xf32> to vector<8x128xf32>
    %417 = arith.negf %416 : vector<8x128xf32>
    %418 = math.exp %417 : vector<8x128xf32>
    %cst_141 = arith.constant 1.000000e+00 : f32
    %419 = vector.broadcast %cst_141 : f32 to vector<8x128xf32>
    %420 = arith.addf %419, %418 : vector<8x128xf32>
    %421 = arith.divf %419, %420 : vector<8x128xf32>
    %422 = vector.extract_strided_slice %409 {offsets = [0, 256], sizes = [8, 128], strides = [1, 1]} : vector<8x512xf32> to vector<8x128xf32>
    %423 = math.tanh %422 : vector<8x128xf32>
    %424 = vector.extract_strided_slice %409 {offsets = [0, 384], sizes = [8, 128], strides = [1, 1]} : vector<8x512xf32> to vector<8x128xf32>
    %425 = arith.negf %424 : vector<8x128xf32>
    %426 = math.exp %425 : vector<8x128xf32>
    %cst_142 = arith.constant 1.000000e+00 : f32
    %427 = vector.broadcast %cst_142 : f32 to vector<8x128xf32>
    %428 = arith.addf %427, %426 : vector<8x128xf32>
    %429 = arith.divf %427, %428 : vector<8x128xf32>
    %430 = arith.mulf %421, %397 : vector<8x128xf32>
    %431 = arith.mulf %415, %423 : vector<8x128xf32>
    %432 = arith.addf %430, %431 : vector<8x128xf32>
    %433 = math.tanh %432 : vector<8x128xf32>
    %434 = arith.mulf %429, %433 : vector<8x128xf32>
    %435 = arith.index_cast %c3_i32_134 : i32 to index
    %c0_143 = arith.constant 0 : index
    %c0_144 = arith.constant 0 : index
    %436 = vector.load %arg8[%435, %c0_143, %c0_144] : memref<8x8x128xf32, #tpu.memory_space<vmem>>, vector<1x8x128xf32>
    %437 = vector.shape_cast %436 : vector<1x8x128xf32> to vector<8x128xf32>
    %438 = vector.shape_cast %434 : vector<8x128xf32> to vector<1x8x128xf32>
    tpu.vector_store %arg8[%435, %c0_143, %c0_144], %438 {strides = array<i32>} : memref<8x8x128xf32, #tpu.memory_space<vmem>>, vector<1x8x128xf32>,
    %c4_i32_145 = arith.constant 4 : i32
    %439 = arith.index_cast %c4_i32_145 : i32 to index
    %c0_146 = arith.constant 0 : index
    %c0_147 = arith.constant 0 : index
    %440 = vector.load %arg9[%439, %c0_146, %c0_147] : memref<8x8x512xf32, #tpu.memory_space<vmem>>, vector<1x8x512xf32>
    %441 = vector.shape_cast %440 : vector<1x8x512xf32> to vector<8x512xf32>
    %c0_148 = arith.constant 0 : index
    %c0_149 = arith.constant 0 : index
    %442 = vector.load %arg6[%c0_148, %c0_149] : memref<128x512xf32, #tpu.memory_space<vmem>>, vector<128x512xf32>
    %cst_150 = arith.constant dense<0.000000e+00> : vector<8x512xf32>
    %443 = tpu.matmul %434, %442, %cst_150 {dimension_numbers = #tpu.dot_dimension_numbers<[1], [0], [0], [1], [0, 0, 1, 1], [], []>} : vector<8x128xf32>, vector<128x512xf32>, vector<8x512xf32> -> vector<8x512xf32>
    %444 = arith.addf %441, %443 : vector<8x512xf32>
    %445 = vector.extract_strided_slice %444 {offsets = [0, 0], sizes = [8, 128], strides = [1, 1]} : vector<8x512xf32> to vector<8x128xf32>
    %446 = arith.negf %445 : vector<8x128xf32>
    %447 = math.exp %446 : vector<8x128xf32>
    %cst_151 = arith.constant 1.000000e+00 : f32
    %448 = vector.broadcast %cst_151 : f32 to vector<8x128xf32>
    %449 = arith.addf %448, %447 : vector<8x128xf32>
    %450 = arith.divf %448, %449 : vector<8x128xf32>
    %451 = vector.extract_strided_slice %444 {offsets = [0, 128], sizes = [8, 128], strides = [1, 1]} : vector<8x512xf32> to vector<8x128xf32>
    %452 = arith.negf %451 : vector<8x128xf32>
    %453 = math.exp %452 : vector<8x128xf32>
    %cst_152 = arith.constant 1.000000e+00 : f32
    %454 = vector.broadcast %cst_152 : f32 to vector<8x128xf32>
    %455 = arith.addf %454, %453 : vector<8x128xf32>
    %456 = arith.divf %454, %455 : vector<8x128xf32>
    %457 = vector.extract_strided_slice %444 {offsets = [0, 256], sizes = [8, 128], strides = [1, 1]} : vector<8x512xf32> to vector<8x128xf32>
    %458 = math.tanh %457 : vector<8x128xf32>
    %459 = vector.extract_strided_slice %444 {offsets = [0, 384], sizes = [8, 128], strides = [1, 1]} : vector<8x512xf32> to vector<8x128xf32>
    %460 = arith.negf %459 : vector<8x128xf32>
    %461 = math.exp %460 : vector<8x128xf32>
    %cst_153 = arith.constant 1.000000e+00 : f32
    %462 = vector.broadcast %cst_153 : f32 to vector<8x128xf32>
    %463 = arith.addf %462, %461 : vector<8x128xf32>
    %464 = arith.divf %462, %463 : vector<8x128xf32>
    %465 = arith.mulf %456, %432 : vector<8x128xf32>
    %466 = arith.mulf %450, %458 : vector<8x128xf32>
    %467 = arith.addf %465, %466 : vector<8x128xf32>
    %468 = math.tanh %467 : vector<8x128xf32>
    %469 = arith.mulf %464, %468 : vector<8x128xf32>
    %470 = arith.index_cast %c4_i32_145 : i32 to index
    %c0_154 = arith.constant 0 : index
    %c0_155 = arith.constant 0 : index
    %471 = vector.load %arg8[%470, %c0_154, %c0_155] : memref<8x8x128xf32, #tpu.memory_space<vmem>>, vector<1x8x128xf32>
    %472 = vector.shape_cast %471 : vector<1x8x128xf32> to vector<8x128xf32>
    %473 = vector.shape_cast %469 : vector<8x128xf32> to vector<1x8x128xf32>
    tpu.vector_store %arg8[%470, %c0_154, %c0_155], %473 {strides = array<i32>} : memref<8x8x128xf32, #tpu.memory_space<vmem>>, vector<1x8x128xf32>,
    %c5_i32_156 = arith.constant 5 : i32
    %474 = arith.index_cast %c5_i32_156 : i32 to index
    %c0_157 = arith.constant 0 : index
    %c0_158 = arith.constant 0 : index
    %475 = vector.load %arg9[%474, %c0_157, %c0_158] : memref<8x8x512xf32, #tpu.memory_space<vmem>>, vector<1x8x512xf32>
    %476 = vector.shape_cast %475 : vector<1x8x512xf32> to vector<8x512xf32>
    %c0_159 = arith.constant 0 : index
    %c0_160 = arith.constant 0 : index
    %477 = vector.load %arg6[%c0_159, %c0_160] : memref<128x512xf32, #tpu.memory_space<vmem>>, vector<128x512xf32>
    %cst_161 = arith.constant dense<0.000000e+00> : vector<8x512xf32>
    %478 = tpu.matmul %469, %477, %cst_161 {dimension_numbers = #tpu.dot_dimension_numbers<[1], [0], [0], [1], [0, 0, 1, 1], [], []>} : vector<8x128xf32>, vector<128x512xf32>, vector<8x512xf32> -> vector<8x512xf32>
    %479 = arith.addf %476, %478 : vector<8x512xf32>
    %480 = vector.extract_strided_slice %479 {offsets = [0, 0], sizes = [8, 128], strides = [1, 1]} : vector<8x512xf32> to vector<8x128xf32>
    %481 = arith.negf %480 : vector<8x128xf32>
    %482 = math.exp %481 : vector<8x128xf32>
    %cst_162 = arith.constant 1.000000e+00 : f32
    %483 = vector.broadcast %cst_162 : f32 to vector<8x128xf32>
    %484 = arith.addf %483, %482 : vector<8x128xf32>
    %485 = arith.divf %483, %484 : vector<8x128xf32>
    %486 = vector.extract_strided_slice %479 {offsets = [0, 128], sizes = [8, 128], strides = [1, 1]} : vector<8x512xf32> to vector<8x128xf32>
    %487 = arith.negf %486 : vector<8x128xf32>
    %488 = math.exp %487 : vector<8x128xf32>
    %cst_163 = arith.constant 1.000000e+00 : f32
    %489 = vector.broadcast %cst_163 : f32 to vector<8x128xf32>
    %490 = arith.addf %489, %488 : vector<8x128xf32>
    %491 = arith.divf %489, %490 : vector<8x128xf32>
    %492 = vector.extract_strided_slice %479 {offsets = [0, 256], sizes = [8, 128], strides = [1, 1]} : vector<8x512xf32> to vector<8x128xf32>
    %493 = math.tanh %492 : vector<8x128xf32>
    %494 = vector.extract_strided_slice %479 {offsets = [0, 384], sizes = [8, 128], strides = [1, 1]} : vector<8x512xf32> to vector<8x128xf32>
    %495 = arith.negf %494 : vector<8x128xf32>
    %496 = math.exp %495 : vector<8x128xf32>
    %cst_164 = arith.constant 1.000000e+00 : f32
    %497 = vector.broadcast %cst_164 : f32 to vector<8x128xf32>
    %498 = arith.addf %497, %496 : vector<8x128xf32>
    %499 = arith.divf %497, %498 : vector<8x128xf32>
    %500 = arith.mulf %491, %467 : vector<8x128xf32>
    %501 = arith.mulf %485, %493 : vector<8x128xf32>
    %502 = arith.addf %500, %501 : vector<8x128xf32>
    %503 = math.tanh %502 : vector<8x128xf32>
    %504 = arith.mulf %499, %503 : vector<8x128xf32>
    %505 = arith.index_cast %c5_i32_156 : i32 to index
    %c0_165 = arith.constant 0 : index
    %c0_166 = arith.constant 0 : index
    %506 = vector.load %arg8[%505, %c0_165, %c0_166] : memref<8x8x128xf32, #tpu.memory_space<vmem>>, vector<1x8x128xf32>
    %507 = vector.shape_cast %506 : vector<1x8x128xf32> to vector<8x128xf32>
    %508 = vector.shape_cast %504 : vector<8x128xf32> to vector<1x8x128xf32>
    tpu.vector_store %arg8[%505, %c0_165, %c0_166], %508 {strides = array<i32>} : memref<8x8x128xf32, #tpu.memory_space<vmem>>, vector<1x8x128xf32>,
    %c6_i32_167 = arith.constant 6 : i32
    %509 = arith.index_cast %c6_i32_167 : i32 to index
    %c0_168 = arith.constant 0 : index
    %c0_169 = arith.constant 0 : index
    %510 = vector.load %arg9[%509, %c0_168, %c0_169] : memref<8x8x512xf32, #tpu.memory_space<vmem>>, vector<1x8x512xf32>
    %511 = vector.shape_cast %510 : vector<1x8x512xf32> to vector<8x512xf32>
    %c0_170 = arith.constant 0 : index
    %c0_171 = arith.constant 0 : index
    %512 = vector.load %arg6[%c0_170, %c0_171] : memref<128x512xf32, #tpu.memory_space<vmem>>, vector<128x512xf32>
    %cst_172 = arith.constant dense<0.000000e+00> : vector<8x512xf32>
    %513 = tpu.matmul %504, %512, %cst_172 {dimension_numbers = #tpu.dot_dimension_numbers<[1], [0], [0], [1], [0, 0, 1, 1], [], []>} : vector<8x128xf32>, vector<128x512xf32>, vector<8x512xf32> -> vector<8x512xf32>
    %514 = arith.addf %511, %513 : vector<8x512xf32>
    %515 = vector.extract_strided_slice %514 {offsets = [0, 0], sizes = [8, 128], strides = [1, 1]} : vector<8x512xf32> to vector<8x128xf32>
    %516 = arith.negf %515 : vector<8x128xf32>
    %517 = math.exp %516 : vector<8x128xf32>
    %cst_173 = arith.constant 1.000000e+00 : f32
    %518 = vector.broadcast %cst_173 : f32 to vector<8x128xf32>
    %519 = arith.addf %518, %517 : vector<8x128xf32>
    %520 = arith.divf %518, %519 : vector<8x128xf32>
    %521 = vector.extract_strided_slice %514 {offsets = [0, 128], sizes = [8, 128], strides = [1, 1]} : vector<8x512xf32> to vector<8x128xf32>
    %522 = arith.negf %521 : vector<8x128xf32>
    %523 = math.exp %522 : vector<8x128xf32>
    %cst_174 = arith.constant 1.000000e+00 : f32
    %524 = vector.broadcast %cst_174 : f32 to vector<8x128xf32>
    %525 = arith.addf %524, %523 : vector<8x128xf32>
    %526 = arith.divf %524, %525 : vector<8x128xf32>
    %527 = vector.extract_strided_slice %514 {offsets = [0, 256], sizes = [8, 128], strides = [1, 1]} : vector<8x512xf32> to vector<8x128xf32>
    %528 = math.tanh %527 : vector<8x128xf32>
    %529 = vector.extract_strided_slice %514 {offsets = [0, 384], sizes = [8, 128], strides = [1, 1]} : vector<8x512xf32> to vector<8x128xf32>
    %530 = arith.negf %529 : vector<8x128xf32>
    %531 = math.exp %530 : vector<8x128xf32>
    %cst_175 = arith.constant 1.000000e+00 : f32
    %532 = vector.broadcast %cst_175 : f32 to vector<8x128xf32>
    %533 = arith.addf %532, %531 : vector<8x128xf32>
    %534 = arith.divf %532, %533 : vector<8x128xf32>
    %535 = arith.mulf %526, %502 : vector<8x128xf32>
    %536 = arith.mulf %520, %528 : vector<8x128xf32>
    %537 = arith.addf %535, %536 : vector<8x128xf32>
    %538 = math.tanh %537 : vector<8x128xf32>
    %539 = arith.mulf %534, %538 : vector<8x128xf32>
    %540 = arith.index_cast %c6_i32_167 : i32 to index
    %c0_176 = arith.constant 0 : index
    %c0_177 = arith.constant 0 : index
    %541 = vector.load %arg8[%540, %c0_176, %c0_177] : memref<8x8x128xf32, #tpu.memory_space<vmem>>, vector<1x8x128xf32>
    %542 = vector.shape_cast %541 : vector<1x8x128xf32> to vector<8x128xf32>
    %543 = vector.shape_cast %539 : vector<8x128xf32> to vector<1x8x128xf32>
    tpu.vector_store %arg8[%540, %c0_176, %c0_177], %543 {strides = array<i32>} : memref<8x8x128xf32, #tpu.memory_space<vmem>>, vector<1x8x128xf32>,
    %c7_i32_178 = arith.constant 7 : i32
    %544 = arith.index_cast %c7_i32_178 : i32 to index
    %c0_179 = arith.constant 0 : index
    %c0_180 = arith.constant 0 : index
    %545 = vector.load %arg9[%544, %c0_179, %c0_180] : memref<8x8x512xf32, #tpu.memory_space<vmem>>, vector<1x8x512xf32>
    %546 = vector.shape_cast %545 : vector<1x8x512xf32> to vector<8x512xf32>
    %c0_181 = arith.constant 0 : index
    %c0_182 = arith.constant 0 : index
    %547 = vector.load %arg6[%c0_181, %c0_182] : memref<128x512xf32, #tpu.memory_space<vmem>>, vector<128x512xf32>
    %cst_183 = arith.constant dense<0.000000e+00> : vector<8x512xf32>
    %548 = tpu.matmul %539, %547, %cst_183 {dimension_numbers = #tpu.dot_dimension_numbers<[1], [0], [0], [1], [0, 0, 1, 1], [], []>} : vector<8x128xf32>, vector<128x512xf32>, vector<8x512xf32> -> vector<8x512xf32>
    %549 = arith.addf %546, %548 : vector<8x512xf32>
    %550 = vector.extract_strided_slice %549 {offsets = [0, 0], sizes = [8, 128], strides = [1, 1]} : vector<8x512xf32> to vector<8x128xf32>
    %551 = arith.negf %550 : vector<8x128xf32>
    %552 = math.exp %551 : vector<8x128xf32>
    %cst_184 = arith.constant 1.000000e+00 : f32
    %553 = vector.broadcast %cst_184 : f32 to vector<8x128xf32>
    %554 = arith.addf %553, %552 : vector<8x128xf32>
    %555 = arith.divf %553, %554 : vector<8x128xf32>
    %556 = vector.extract_strided_slice %549 {offsets = [0, 128], sizes = [8, 128], strides = [1, 1]} : vector<8x512xf32> to vector<8x128xf32>
    %557 = arith.negf %556 : vector<8x128xf32>
    %558 = math.exp %557 : vector<8x128xf32>
    %cst_185 = arith.constant 1.000000e+00 : f32
    %559 = vector.broadcast %cst_185 : f32 to vector<8x128xf32>
    %560 = arith.addf %559, %558 : vector<8x128xf32>
    %561 = arith.divf %559, %560 : vector<8x128xf32>
    %562 = vector.extract_strided_slice %549 {offsets = [0, 256], sizes = [8, 128], strides = [1, 1]} : vector<8x512xf32> to vector<8x128xf32>
    %563 = math.tanh %562 : vector<8x128xf32>
    %564 = vector.extract_strided_slice %549 {offsets = [0, 384], sizes = [8, 128], strides = [1, 1]} : vector<8x512xf32> to vector<8x128xf32>
    %565 = arith.negf %564 : vector<8x128xf32>
    %566 = math.exp %565 : vector<8x128xf32>
    %cst_186 = arith.constant 1.000000e+00 : f32
    %567 = vector.broadcast %cst_186 : f32 to vector<8x128xf32>
    %568 = arith.addf %567, %566 : vector<8x128xf32>
    %569 = arith.divf %567, %568 : vector<8x128xf32>
    %570 = arith.mulf %561, %537 : vector<8x128xf32>
    %571 = arith.mulf %555, %563 : vector<8x128xf32>
    %572 = arith.addf %570, %571 : vector<8x128xf32>
    %573 = math.tanh %572 : vector<8x128xf32>
    %574 = arith.mulf %569, %573 : vector<8x128xf32>
    %575 = arith.index_cast %c7_i32_178 : i32 to index
    %c0_187 = arith.constant 0 : index
    %c0_188 = arith.constant 0 : index
    %576 = vector.load %arg8[%575, %c0_187, %c0_188] : memref<8x8x128xf32, #tpu.memory_space<vmem>>, vector<1x8x128xf32>
    %577 = vector.shape_cast %576 : vector<1x8x128xf32> to vector<8x128xf32>
    %578 = vector.shape_cast %574 : vector<8x128xf32> to vector<1x8x128xf32>
    tpu.vector_store %arg8[%575, %c0_187, %c0_188], %578 {strides = array<i32>} : memref<8x8x128xf32, #tpu.memory_space<vmem>>, vector<1x8x128xf32>,
    %c8_i32_189 = arith.constant 8 : i32
    return
  }
  func.func @transform_0(%arg0: i32) -> (i32, i32, i32) {
    %c0_i32 = arith.constant 0 : i32
    %c0_i32_0 = arith.constant 0 : i32
    %c0_i32_1 = arith.constant 0 : i32
    return %c0_i32, %arg0, %c0_i32_0 : i32, i32, i32
  }
  func.func @transform_1(%arg0: i32) -> (i32, i32) {
    %c0_i32 = arith.constant 0 : i32
    %c0_i32_0 = arith.constant 0 : i32
    %c0_i32_1 = arith.constant 0 : i32
    return %c0_i32, %c0_i32_0 : i32, i32
  }
  func.func @transform_2(%arg0: i32) -> (i32, i32) {
    %c0_i32 = arith.constant 0 : i32
    %c0_i32_0 = arith.constant 0 : i32
    %c0_i32_1 = arith.constant 0 : i32
    return %c0_i32, %c0_i32_0 : i32, i32
  }
  func.func @transform_3(%arg0: i32) -> (i32, i32) {
    %c0_i32 = arith.constant 0 : i32
    %c0_i32_0 = arith.constant 0 : i32
    %c0_i32_1 = arith.constant 0 : i32
    return %c0_i32, %c0_i32_0 : i32, i32
  }
  func.func @transform_4(%arg0: i32) -> (i32, i32) {
    %c0_i32 = arith.constant 0 : i32
    %c0_i32_0 = arith.constant 0 : i32
    %c0_i32_1 = arith.constant 0 : i32
    return %c0_i32, %c0_i32_0 : i32, i32
  }
  func.func @transform_5(%arg0: i32) -> (i32, i32) {
    %c0_i32 = arith.constant 0 : i32
    %c0_i32_0 = arith.constant 0 : i32
    %c0_i32_1 = arith.constant 0 : i32
    return %c0_i32, %c0_i32_0 : i32, i32
  }
  func.func @transform_6(%arg0: i32) -> (i32, i32) {
    %c0_i32 = arith.constant 0 : i32
    %c0_i32_0 = arith.constant 0 : i32
    %c0_i32_1 = arith.constant 0 : i32
    return %c0_i32, %c0_i32_0 : i32, i32
  }
  func.func @transform_7(%arg0: i32) -> (i32, i32, i32) {
    %c0_i32 = arith.constant 0 : i32
    %c0_i32_0 = arith.constant 0 : i32
    %c0_i32_1 = arith.constant 0 : i32
    return %c0_i32, %arg0, %c0_i32_0 : i32, i32, i32
  }
}

</mosaic_0001>

<llo_original>
// kernel: tpu_custom_call.1
$region0: #{tpu_custom_call.1}
  #allocation0 [shape = 'u32[]', space=smem, size = 0x4, offset = 0x4, fixed_abs, tag = 'smem constant byte address 0x4 - core index']
  #allocation1 [shape = 'u32[144,128]{1,0:T(1,128)}', space=vmem, size = 0x12000, scoped, tag = 'internal scratch']
  #allocation2 [shape = 'f32[8,8,512]{2,1,0:T(8,128)}', space=vmem, size = 0x20000, scoped, tag = 'scratch operand']
  #allocation3 [shape = 'f32[8,8,128]{2,1,0:T(8,128)}', space=vmem, size = 0x8000, scoped, tag = 'scratch operand']
  %s0 = inlined_call_operand.hbm [shape: f32[8,8,128], index: 0, kind: input, shape index: {}]
  %s1 = inlined_call_operand.hbm [shape: f32[128,512], index: 1, kind: input, shape index: {}]
  %s2 = inlined_call_operand.hbm [shape: f32[128,512], index: 2, kind: input, shape index: {}]
  %s3 = inlined_call_operand.vmem [shape: f32[1,512], index: 3, kind: input, shape index: {}]
  %s4 = inlined_call_operand.hbm [shape: f32[128,512], index: 4, kind: input, shape index: {}]
  %s5 = inlined_call_operand.hbm [shape: f32[128,512], index: 5, kind: input, shape index: {}]
  %s6 = inlined_call_operand.vmem [shape: f32[1,512], index: 6, kind: input, shape index: {}]
  %s7 = inlined_call_operand.hbm [shape: f32[8,8,128], index: 7, kind: output, shape index: {}]
  %s8 = sld [smem:[#allocation0]]
  $region58: #{tpu_custom_call.1} parent=0
    _
  %s10 = ssub.s32 1, %s8
  %s11 = scalar_select 0, %s10, %s8
  $region1: #{tpu_custom_call.1} parent=0
    #allocation4 [shape = 'u8[32768]{0}', space=vmem, size = 0x8000, scoped, tag = 'input window, operand 0, single buffered']
    #allocation5 [shape = 's32[1]{0}', space=sflag, size = 0x4, scoped, tag = 'scoped memory for tpu_custom_call.1']
    #allocation6 [shape = 's32[1]{0}', space=sflag, size = 0x4, scoped, tag = 'scoped memory for tpu_custom_call.1']
    #allocation7 [shape = 'u8[262144]{0}', space=vmem, size = 0x40000, scoped, tag = 'input window, operand 1, single buffered']
    #allocation8 [shape = 's32[1]{0}', space=sflag, size = 0x4, scoped, tag = 'scoped memory for tpu_custom_call.1']
    #allocation9 [shape = 'u8[262144]{0}', space=vmem, size = 0x40000, scoped, tag = 'input window, operand 2, single buffered']
    #allocation10 [shape = 'u8[262144]{0}', space=vmem, size = 0x40000, scoped, tag = 'input window, operand 4, single buffered']
    #allocation11 [shape = 's32[1]{0}', space=sflag, size = 0x4, scoped, tag = 'scoped memory for tpu_custom_call.1']
    #allocation12 [shape = 'u8[262144]{0}', space=vmem, size = 0x40000, scoped, tag = 'input window, operand 5, single buffered']
    #allocation13 [shape = 'u8[32768]{0}', space=vmem, size = 0x8000, scoped, tag = 'output window, operand 0, single buffered']
    %12 = vsyncpa [#allocation5], 0
    %13 = vsyncpa [#allocation8], 0
    %14 = vsyncpa [#allocation11], 0
    %15 = vsyncpa [#allocation6], 0
    // Predicated region
    $region2: #{tpu_custom_call.1} parent=1 // pred_check
      _
    $region3: #{tpu_custom_call.1} parent=1 // pred_check_branch
      %17 = sbr.rel (0) target = $region5
    $region4: #{tpu_custom_call.1} parent=1 // pred_region
      %s19 = ssub.s32 1024, 1024
      %20 = vsyncadd [#allocation5], %s19
      %s21 = sshll.u32 [#allocation4], 4
      %s22 = int_to_ptr.vmem [resolvable:$true] %s21
      %27 = dma.hbm_to_vmem [thread:$0]  %s0, 1024, %s22, [#allocation5], 128, 128, 8
    $region5: #{tpu_custom_call.1} parent=1 // pred_fallthru
      _
    // Predicated region
    $region6: #{tpu_custom_call.1} parent=1 // pred_check
      _
    $region7: #{tpu_custom_call.1} parent=1 // pred_check_branch
      %29 = sbr.rel (0) target = $region9
    $region8: #{tpu_custom_call.1} parent=1 // pred_region
      %s31 = ssub.s32 8192, 8192
      %32 = vsyncadd [#allocation8], %s31
      %s33 = sshll.u32 [#allocation7], 4
      %s34 = int_to_ptr.vmem [resolvable:$true] %s33
      %39 = dma.hbm_to_vmem [thread:$0]  %s1, 8192, %s34, [#allocation8], 512, 512, 32
    $region9: #{tpu_custom_call.1} parent=1 // pred_fallthru
      _
    // Predicated region
    $region10: #{tpu_custom_call.1} parent=1 // pred_check
      _
    $region11: #{tpu_custom_call.1} parent=1 // pred_check_branch
      %41 = sbr.rel (0) target = $region13
    $region12: #{tpu_custom_call.1} parent=1 // pred_region
      %s43 = ssub.s32 8192, 8192
      %44 = vsyncadd [#allocation8], %s43
      %s45 = sshll.u32 [#allocation9], 4
      %s46 = int_to_ptr.vmem [resolvable:$true] %s45
      %51 = dma.hbm_to_vmem [thread:$0]  %s2, 8192, %s46, [#allocation8], 512, 512, 32
    $region13: #{tpu_custom_call.1} parent=1 // pred_fallthru
      _
    // Predicated region
    $region14: #{tpu_custom_call.1} parent=1 // pred_check
      _
    $region15: #{tpu_custom_call.1} parent=1 // pred_check_branch
      %53 = sbr.rel (0) target = $region17
    $region16: #{tpu_custom_call.1} parent=1 // pred_region
      _
    $region17: #{tpu_custom_call.1} parent=1 // pred_fallthru
      _
    // Predicated region
    $region18: #{tpu_custom_call.1} parent=1 // pred_check
      _
    $region19: #{tpu_custom_call.1} parent=1 // pred_check_branch
      %55 = sbr.rel (0) target = $region21
    $region20: #{tpu_custom_call.1} parent=1 // pred_region
      %s57 = ssub.s32 8192, 8192
      %58 = vsyncadd [#allocation11], %s57
      %s59 = sshll.u32 [#allocation10], 4
      %s60 = int_to_ptr.vmem [resolvable:$true] %s59
      %65 = dma.hbm_to_vmem [thread:$0]  %s4, 8192, %s60, [#allocation11], 512, 512, 32
    $region21: #{tpu_custom_call.1} parent=1 // pred_fallthru
      _
    // Predicated region
    $region22: #{tpu_custom_call.1} parent=1 // pred_check
      _
    $region23: #{tpu_custom_call.1} parent=1 // pred_check_branch
      %67 = sbr.rel (0) target = $region25
    $region24: #{tpu_custom_call.1} parent=1 // pred_region
      %s69 = ssub.s32 8192, 8192
      %70 = vsyncadd [#allocation11], %s69
      %s71 = sshll.u32 [#allocation12], 4
      %s72 = int_to_ptr.vmem [resolvable:$true] %s71
      %77 = dma.hbm_to_vmem [thread:$0]  %s5, 8192, %s72, [#allocation11], 512, 512, 32
    $region25: #{tpu_custom_call.1} parent=1 // pred_fallthru
      _
    // Predicated region
    $region26: #{tpu_custom_call.1} parent=1 // pred_check
      _
    $region27: #{tpu_custom_call.1} parent=1 // pred_check_branch
      %79 = sbr.rel (0) target = $region29
    $region28: #{tpu_custom_call.1} parent=1 // pred_region
      _
    $region29: #{tpu_custom_call.1} parent=1 // pred_fallthru
      _
    // Predicated region
    $region30: #{tpu_custom_call.1} parent=1 // pred_check
      _
    $region31: #{tpu_custom_call.1} parent=1 // pred_check_branch
      %81 = sbr.rel (0) target = $region33
    $region32: #{tpu_custom_call.1} parent=1 // pred_region
      %82 = dma.done [#allocation5], 1024
    $region33: #{tpu_custom_call.1} parent=1 // pred_fallthru
      _
    // Predicated region
    $region34: #{tpu_custom_call.1} parent=1 // pred_check
      _
    $region35: #{tpu_custom_call.1} parent=1 // pred_check_branch
      %84 = sbr.rel (0) target = $region37
    $region36: #{tpu_custom_call.1} parent=1 // pred_region
      %85 = dma.done [#allocation8], 8192
    $region37: #{tpu_custom_call.1} parent=1 // pred_fallthru
      _
    // Predicated region
    $region38: #{tpu_custom_call.1} parent=1 // pred_check
      _
    $region39: #{tpu_custom_call.1} parent=1 // pred_check_branch
      %87 = sbr.rel (0) target = $region41
    $region40: #{tpu_custom_call.1} parent=1 // pred_region
      %88 = dma.done [#allocation8], 8192
    $region41: #{tpu_custom_call.1} parent=1 // pred_fallthru
      _
    // Predicated region
    $region42: #{tpu_custom_call.1} parent=1 // pred_check
      _
    $region43: #{tpu_custom_call.1} parent=1 // pred_check_branch
      %90 = sbr.rel (0) target = $region45
    $region44: #{tpu_custom_call.1} parent=1 // pred_region
      %91 = dma.done [#allocation11], 8192
    $region45: #{tpu_custom_call.1} parent=1 // pred_fallthru
      _
    // Predicated region
    $region46: #{tpu_custom_call.1} parent=1 // pred_check
      _
    $region47: #{tpu_custom_call.1} parent=1 // pred_check_branch
      %93 = sbr.rel (0) target = $region49
    $region48: #{tpu_custom_call.1} parent=1 // pred_region
      %94 = dma.done [#allocation11], 8192
    $region49: #{tpu_custom_call.1} parent=1 // pred_fallthru
      _
    %v95 = vld [vmem:[#allocation4] sm:$0xff]
    %v96 = vld [vmem:[#allocation4 + $0x8] sm:$0xff]
    %v97 = vld [vmem:[#allocation4 + $0x10] sm:$0xff]
    %v98 = vld [vmem:[#allocation4 + $0x18] sm:$0xff]
    %v99 = vld [vmem:[#allocation4 + $0x20] sm:$0xff]
    %v100 = vld [vmem:[#allocation4 + $0x28] sm:$0xff]
    %v101 = vld [vmem:[#allocation4 + $0x30] sm:$0xff]
    %v102 = vld [vmem:[#allocation4 + $0x38] sm:$0xff]
    %v103 = vld [vmem:[#allocation7] sm:$0xff]
    %v104 = vld [vmem:[#allocation7 + $0x8] sm:$0xff]
    %v105 = vld [vmem:[#allocation7 + $0x10] sm:$0xff]
    %v106 = vld [vmem:[#allocation7 + $0x18] sm:$0xff]
    %v107 = vld [vmem:[#allocation7 + $0x20] sm:$0xff]
    %v108 = vld [vmem:[#allocation7 + $0x28] sm:$0xff]
    %v109 = vld [vmem:[#allocation7 + $0x30] sm:$0xff]
    %v110 = vld [vmem:[#allocation7 + $0x38] sm:$0xff]
    %v111 = vld [vmem:[#allocation7 + $0x40] sm:$0xff]
    %v112 = vld [vmem:[#allocation7 + $0x48] sm:$0xff]
    %v113 = vld [vmem:[#allocation7 + $0x50] sm:$0xff]
    %v114 = vld [vmem:[#allocation7 + $0x58] sm:$0xff]
    %v115 = vld [vmem:[#allocation7 + $0x60] sm:$0xff]
    %v116 = vld [vmem:[#allocation7 + $0x68] sm:$0xff]
    %v117 = vld [vmem:[#allocation7 + $0x70] sm:$0xff]
    %v118 = vld [vmem:[#allocation7 + $0x78] sm:$0xff]
    %v119 = vld [vmem:[#allocation7 + $0x80] sm:$0xff]
    %v120 = vld [vmem:[#allocation7 + $0x88] sm:$0xff]
    %v121 = vld [vmem:[#allocation7 + $0x90] sm:$0xff]
    %v122 = vld [vmem:[#allocation7 + $0x98] sm:$0xff]
    %v123 = vld [vmem:[#allocation7 + $0xa0] sm:$0xff]
    %v124 = vld [vmem:[#allocation7 + $0xa8] sm:$0xff]
    %v125 = vld [vmem:[#allocation7 + $0xb0] sm:$0xff]
    %v126 = vld [vmem:[#allocation7 + $0xb8] sm:$0xff]
    %v127 = vld [vmem:[#allocation7 + $0xc0] sm:$0xff]
    %v128 = vld [vmem:[#allocation7 + $0xc8] sm:$0xff]
    %v129 = vld [vmem:[#allocation7 + $0xd0] sm:$0xff]
    %v130 = vld [vmem:[#allocation7 + $0xd8] sm:$0xff]
    %v131 = vld [vmem:[#allocation7 + $0xe0] sm:$0xff]
    %v132 = vld [vmem:[#allocation7 + $0xe8] sm:$0xff]
    %v133 = vld [vmem:[#allocation7 + $0xf0] sm:$0xff]
    %v134 = vld [vmem:[#allocation7 + $0xf8] sm:$0xff]
    %v135 = vld [vmem:[#allocation7 + $0x100] sm:$0xff]
    %v136 = vld [vmem:[#allocation7 + $0x108] sm:$0xff]
    %v137 = vld [vmem:[#allocation7 + $0x110] sm:$0xff]
    %v138 = vld [vmem:[#allocation7 + $0x118] sm:$0xff]
    %v139 = vld [vmem:[#allocation7 + $0x120] sm:$0xff]
    %v140 = vld [vmem:[#allocation7 + $0x128] sm:$0xff]
    %v141 = vld [vmem:[#allocation7 + $0x130] sm:$0xff]
    %v142 = vld [vmem:[#allocation7 + $0x138] sm:$0xff]
    %v143 = vld [vmem:[#allocation7 + $0x140] sm:$0xff]
    %v144 = vld [vmem:[#allocation7 + $0x148] sm:$0xff]
    %v145 = vld [vmem:[#allocation7 + $0x150] sm:$0xff]
    %v146 = vld [vmem:[#allocation7 + $0x158] sm:$0xff]
    %v147 = vld [vmem:[#allocation7 + $0x160] sm:$0xff]
    %v148 = vld [vmem:[#allocation7 + $0x168] sm:$0xff]
    %v149 = vld [vmem:[#allocation7 + $0x170] sm:$0xff]
    %v150 = vld [vmem:[#allocation7 + $0x178] sm:$0xff]
    %v151 = vld [vmem:[#allocation7 + $0x180] sm:$0xff]
    %v152 = vld [vmem:[#allocation7 + $0x188] sm:$0xff]
    %v153 = vld [vmem:[#allocation7 + $0x190] sm:$0xff]
    %v154 = vld [vmem:[#allocation7 + $0x198] sm:$0xff]
    %v155 = vld [vmem:[#allocation7 + $0x1a0] sm:$0xff]
    %v156 = vld [vmem:[#allocation7 + $0x1a8] sm:$0xff]
    %v157 = vld [vmem:[#allocation7 + $0x1b0] sm:$0xff]
    %v158 = vld [vmem:[#allocation7 + $0x1b8] sm:$0xff]
    %v159 = vld [vmem:[#allocation7 + $0x1c0] sm:$0xff]
    %v160 = vld [vmem:[#allocation7 + $0x1c8] sm:$0xff]
    %v161 = vld [vmem:[#allocation7 + $0x1d0] sm:$0xff]
    %v162 = vld [vmem:[#allocation7 + $0x1d8] sm:$0xff]
    %v163 = vld [vmem:[#allocation7 + $0x1e0] sm:$0xff]
    %v164 = vld [vmem:[#allocation7 + $0x1e8] sm:$0xff]
    %v165 = vld [vmem:[#allocation7 + $0x1f0] sm:$0xff]
    %v166 = vld [vmem:[#allocation7 + $0x1f8] sm:$0xff]
    %v167 = vld [vmem:[%s3] sm:$0xf]
    %v169 = vlaneseq
    %v170 = vshrl.u32 %v169, 7
    %v171 = vsub.s32 0, %v170
    %v172 = vrot.slane %v167, %v171
    %v173 = vlaneseq
    %v174 = vshrl.u32 %v173, 7
    %v175 = vsub.s32 1, %v174
    %v176 = vrot.slane %v167, %v175
    %v177 = vlaneseq
    %v178 = vshrl.u32 %v177, 7
    %v179 = vsub.s32 2, %v178
    %v180 = vrot.slane %v167, %v179
    %v181 = vlaneseq
    %v182 = vshrl.u32 %v181, 7
    %v183 = vsub.s32 3, %v182
    %v184 = vrot.slane %v167, %v183
    %189 = vmatprep.subr.mxu0 %v164
    %190 = vmatpush1.msra.mxu0 %v163
    %191 = vmatprep.subr.mxu0 %v160
    %192 = vmatpush1.msra.mxu0 %v159
    %193 = vmatprep.subr.mxu0 %v156
    %194 = vmatpush1.msra.mxu0 %v155
    %195 = vmatprep.subr.mxu0 %v152
    %196 = vmatpush1.msra.mxu0 %v151
    %197 = vmatprep.subr.mxu0 %v148
    %198 = vmatpush1.msra.mxu0 %v147
    %199 = vmatprep.subr.mxu0 %v144
    %200 = vmatpush1.msra.mxu0 %v143
    %201 = vmatprep.subr.mxu0 %v140
    %202 = vmatpush1.msra.mxu0 %v139
    %203 = vmatprep.subr.mxu0 %v136
    %204 = vmatpush1.msra.mxu0 %v135
    %205 = vmatprep.subr.mxu0 %v132
    %206 = vmatpush1.msra.mxu0 %v131
    %207 = vmatprep.subr.mxu0 %v128
    %208 = vmatpush1.msra.mxu0 %v127
    %209 = vmatprep.subr.mxu0 %v124
    %210 = vmatpush1.msra.mxu0 %v123
    %211 = vmatprep.subr.mxu0 %v120
    %212 = vmatpush1.msra.mxu0 %v119
    %213 = vmatprep.subr.mxu0 %v116
    %214 = vmatpush1.msra.mxu0 %v115
    %215 = vmatprep.subr.mxu0 %v112
    %216 = vmatpush1.msra.mxu0 %v111
    %217 = vmatprep.subr.mxu0 %v108
    %218 = vmatpush1.msra.mxu0 %v107
    %219 = vmatprep.subr.mxu0 %v104
    %220 = vmatpush1.msra.mxu0 %v103
    %221 = vmatprep.subr.mxu0 0.0
    %222 = vmatpush2.msra.mxu0 0.0
    %223 = vmatprep.subr.mxu0 0.0
    %224 = vmatpush2.msra.mxu0 0.0
    %225 = vmatprep.subr.mxu0 0.0
    %226 = vmatpush2.msra.mxu0 0.0
    %227 = vmatprep.subr.mxu0 0.0
    %228 = vmatpush2.msra.mxu0 0.0
    %229 = vmatprep.subr.mxu0 0.0
    %230 = vmatpush2.msra.mxu0 0.0
    %231 = vmatprep.subr.mxu0 0.0
    %232 = vmatpush2.msra.mxu0 0.0
    %233 = vmatprep.subr.mxu0 0.0
    %234 = vmatpush2.msra.mxu0 0.0
    %235 = vmatprep.subr.mxu0 0.0
    %236 = vmatpush2.msra.mxu0 0.0
    %237 = vmatprep.subr.mxu0 0.0
    %238 = vmatpush2.msra.mxu0 0.0
    %239 = vmatprep.subr.mxu0 0.0
    %240 = vmatpush2.msra.mxu0 0.0
    %241 = vmatprep.subr.mxu0 0.0
    %242 = vmatpush2.msra.mxu0 0.0
    %243 = vmatprep.subr.mxu0 0.0
    %244 = vmatpush2.msra.mxu0 0.0
    %245 = vmatprep.subr.mxu0 0.0
    %246 = vmatpush2.msra.mxu0 0.0
    %247 = vmatprep.subr.mxu0 0.0
    %248 = vmatpush2.msra.mxu0 0.0
    %249 = vmatprep.subr.mxu0 0.0
    %250 = vmatpush2.msra.mxu0 0.0
    %251 = vmatprep.subr.mxu0 0.0
    %252 = vmatpush2.msra.mxu0 0.0
    %253 = vmatprep.mubr.f32.mxu0 0.0
    %254 = vmatmul.mubr.f32.gmra.mxu0 %v95
    %v255 = vpop.f32.mrf.mxu0
    %v256 = vadd.f32 %v172, %v255
    %v257 = vpop.f32.mrf.mxu0
    %v258 = vadd.f32 %v176, %v257
    %259 = vmatprep.mubr.f32.mxu0 0.0
    %260 = vmatmul.mubr.f32.gmra.mxu0 %v96
    %v261 = vpop.f32.mrf.mxu0
    %v262 = vadd.f32 %v172, %v261
    %v263 = vpop.f32.mrf.mxu0
    %v264 = vadd.f32 %v176, %v263
    %265 = vmatprep.mubr.f32.mxu0 0.0
    %266 = vmatmul.mubr.f32.gmra.mxu0 %v97
    %v267 = vpop.f32.mrf.mxu0
    %v268 = vadd.f32 %v172, %v267
    %v269 = vpop.f32.mrf.mxu0
    %v270 = vadd.f32 %v176, %v269
    %271 = vmatprep.mubr.f32.mxu0 0.0
    %272 = vmatmul.mubr.f32.gmra.mxu0 %v98
    %v273 = vpop.f32.mrf.mxu0
    %v274 = vadd.f32 %v172, %v273
    %v275 = vpop.f32.mrf.mxu0
    %v276 = vadd.f32 %v176, %v275
    %277 = vmatprep.mubr.f32.mxu0 0.0
    %278 = vmatmul.mubr.f32.gmra.mxu0 %v99
    %v279 = vpop.f32.mrf.mxu0
    %v280 = vadd.f32 %v172, %v279
    %v281 = vpop.f32.mrf.mxu0
    %v282 = vadd.f32 %v176, %v281
    %283 = vmatprep.mubr.f32.mxu0 0.0
    %284 = vmatmul.mubr.f32.gmra.mxu0 %v100
    %v285 = vpop.f32.mrf.mxu0
    %v286 = vadd.f32 %v172, %v285
    %v287 = vpop.f32.mrf.mxu0
    %v288 = vadd.f32 %v176, %v287
    %289 = vmatprep.mubr.f32.mxu0 0.0
    %290 = vmatmul.mubr.f32.gmra.mxu0 %v101
    %v291 = vpop.f32.mrf.mxu0
    %v292 = vadd.f32 %v172, %v291
    %v293 = vpop.f32.mrf.mxu0
    %v294 = vadd.f32 %v176, %v293
    %295 = vmatprep.mubr.f32.mxu0 0.0
    %296 = vmatmul.mubr.f32.gmra.mxu0 %v102
    %v297 = vpop.f32.mrf.mxu0
    %v298 = vadd.f32 %v172, %v297
    %v299 = vpop.f32.mrf.mxu0
    %v300 = vadd.f32 %v176, %v299
    %301 = vdwg.mxu0
    %302 = vmatprep.subr.mxu0 %v166
    %303 = vmatpush1.msra.mxu0 %v165
    %304 = vmatprep.subr.mxu0 %v162
    %305 = vmatpush1.msra.mxu0 %v161
    %306 = vmatprep.subr.mxu0 %v158
    %307 = vmatpush1.msra.mxu0 %v157
    %308 = vmatprep.subr.mxu0 %v154
    %309 = vmatpush1.msra.mxu0 %v153
    %310 = vmatprep.subr.mxu0 %v150
    %311 = vmatpush1.msra.mxu0 %v149
    %312 = vmatprep.subr.mxu0 %v146
    %313 = vmatpush1.msra.mxu0 %v145
    %314 = vmatprep.subr.mxu0 %v142
    %315 = vmatpush1.msra.mxu0 %v141
    %316 = vmatprep.subr.mxu0 %v138
    %317 = vmatpush1.msra.mxu0 %v137
    %318 = vmatprep.subr.mxu0 %v134
    %319 = vmatpush1.msra.mxu0 %v133
    %320 = vmatprep.subr.mxu0 %v130
    %321 = vmatpush1.msra.mxu0 %v129
    %322 = vmatprep.subr.mxu0 %v126
    %323 = vmatpush1.msra.mxu0 %v125
    %324 = vmatprep.subr.mxu0 %v122
    %325 = vmatpush1.msra.mxu0 %v121
    %326 = vmatprep.subr.mxu0 %v118
    %327 = vmatpush1.msra.mxu0 %v117
    %328 = vmatprep.subr.mxu0 %v114
    %329 = vmatpush1.msra.mxu0 %v113
    %330 = vmatprep.subr.mxu0 %v110
    %331 = vmatpush1.msra.mxu0 %v109
    %332 = vmatprep.subr.mxu0 %v106
    %333 = vmatpush1.msra.mxu0 %v105
    %334 = vmatprep.subr.mxu0 0.0
    %335 = vmatpush2.msra.mxu0 0.0
    %336 = vmatprep.subr.mxu0 0.0
    %337 = vmatpush2.msra.mxu0 0.0
    %338 = vmatprep.subr.mxu0 0.0
    %339 = vmatpush2.msra.mxu0 0.0
    %340 = vmatprep.subr.mxu0 0.0
    %341 = vmatpush2.msra.mxu0 0.0
    %342 = vmatprep.subr.mxu0 0.0
    %343 = vmatpush2.msra.mxu0 0.0
    %344 = vmatprep.subr.mxu0 0.0
    %345 = vmatpush2.msra.mxu0 0.0
    %346 = vmatprep.subr.mxu0 0.0
    %347 = vmatpush2.msra.mxu0 0.0
    %348 = vmatprep.subr.mxu0 0.0
    %349 = vmatpush2.msra.mxu0 0.0
    %350 = vmatprep.subr.mxu0 0.0
    %351 = vmatpush2.msra.mxu0 0.0
    %352 = vmatprep.subr.mxu0 0.0
    %353 = vmatpush2.msra.mxu0 0.0
    %354 = vmatprep.subr.mxu0 0.0
    %355 = vmatpush2.msra.mxu0 0.0
    %356 = vmatprep.subr.mxu0 0.0
    %357 = vmatpush2.msra.mxu0 0.0
    %358 = vmatprep.subr.mxu0 0.0
    %359 = vmatpush2.msra.mxu0 0.0
    %360 = vmatprep.subr.mxu0 0.0
    %361 = vmatpush2.msra.mxu0 0.0
    %362 = vmatprep.subr.mxu0 0.0
    %363 = vmatpush2.msra.mxu0 0.0
    %364 = vmatprep.subr.mxu0 0.0
    %365 = vmatpush2.msra.mxu0 0.0
    %366 = vmatprep.mubr.f32.mxu0 0.0
    %367 = vmatmul.mubr.f32.gmra.mxu0 %v95
    %v368 = vpop.f32.mrf.mxu0
    %v369 = vadd.f32 %v180, %v368
    %v370 = vpop.f32.mrf.mxu0
    %v371 = vadd.f32 %v184, %v370
    %372 = vmatprep.mubr.f32.mxu0 0.0
    %373 = vmatmul.mubr.f32.gmra.mxu0 %v96
    %v374 = vpop.f32.mrf.mxu0
    %v375 = vadd.f32 %v180, %v374
    %v376 = vpop.f32.mrf.mxu0
    %v377 = vadd.f32 %v184, %v376
    %378 = vmatprep.mubr.f32.mxu0 0.0
    %379 = vmatmul.mubr.f32.gmra.mxu0 %v97
    %v380 = vpop.f32.mrf.mxu0
    %v381 = vadd.f32 %v180, %v380
    %v382 = vpop.f32.mrf.mxu0
    %v383 = vadd.f32 %v184, %v382
    %384 = vmatprep.mubr.f32.mxu0 0.0
    %385 = vmatmul.mubr.f32.gmra.mxu0 %v98
    %v386 = vpop.f32.mrf.mxu0
    %v387 = vadd.f32 %v180, %v386
    %v388 = vpop.f32.mrf.mxu0
    %v389 = vadd.f32 %v184, %v388
    %390 = vmatprep.mubr.f32.mxu0 0.0
    %391 = vmatmul.mubr.f32.gmra.mxu0 %v99
    %v392 = vpop.f32.mrf.mxu0
    %v393 = vadd.f32 %v180, %v392
    %v394 = vpop.f32.mrf.mxu0
    %v395 = vadd.f32 %v184, %v394
    %396 = vmatprep.mubr.f32.mxu0 0.0
    %397 = vmatmul.mubr.f32.gmra.mxu0 %v100
    %v398 = vpop.f32.mrf.mxu0
    %v399 = vadd.f32 %v180, %v398
    %v400 = vpop.f32.mrf.mxu0
    %v401 = vadd.f32 %v184, %v400
    %402 = vmatprep.mubr.f32.mxu0 0.0
    %403 = vmatmul.mubr.f32.gmra.mxu0 %v101
    %v404 = vpop.f32.mrf.mxu0
    %v405 = vadd.f32 %v180, %v404
    %v406 = vpop.f32.mrf.mxu0
    %v407 = vadd.f32 %v184, %v406
    %408 = vmatprep.mubr.f32.mxu0 0.0
    %409 = vmatmul.mubr.f32.gmra.mxu0 %v102
    %v410 = vpop.f32.mrf.mxu0
    %v411 = vadd.f32 %v180, %v410
    %v412 = vpop.f32.mrf.mxu0
    %v413 = vadd.f32 %v184, %v412
    %414 = vdwg.mxu0
    %415 = vst [vmem:[#allocation2] sm:$0xff] %v256
    %416 = vst [vmem:[#allocation2 + $0x8] sm:$0xff] %v258
    %417 = vst [vmem:[#allocation2 + $0x10] sm:$0xff] %v369
    %418 = vst [vmem:[#allocation2 + $0x18] sm:$0xff] %v371
    %419 = vst [vmem:[#allocation2 + $0x20] sm:$0xff] %v262
    %420 = vst [vmem:[#allocation2 + $0x28] sm:$0xff] %v264
    %421 = vst [vmem:[#allocation2 + $0x30] sm:$0xff] %v375
    %422 = vst [vmem:[#allocation2 + $0x38] sm:$0xff] %v377
    %423 = vst [vmem:[#allocation2 + $0x40] sm:$0xff] %v268
    %424 = vst [vmem:[#allocation2 + $0x48] sm:$0xff] %v270
    %425 = vst [vmem:[#allocation2 + $0x50] sm:$0xff] %v381
    %426 = vst [vmem:[#allocation2 + $0x58] sm:$0xff] %v383
    %427 = vst [vmem:[#allocation2 + $0x60] sm:$0xff] %v274
    %428 = vst [vmem:[#allocation2 + $0x68] sm:$0xff] %v276
    %429 = vst [vmem:[#allocation2 + $0x70] sm:$0xff] %v387
    %430 = vst [vmem:[#allocation2 + $0x78] sm:$0xff] %v389
    %431 = vst [vmem:[#allocation2 + $0x80] sm:$0xff] %v280
    %432 = vst [vmem:[#allocation2 + $0x88] sm:$0xff] %v282
    %433 = vst [vmem:[#allocation2 + $0x90] sm:$0xff] %v393
    %434 = vst [vmem:[#allocation2 + $0x98] sm:$0xff] %v395
    %435 = vst [vmem:[#allocation2 + $0xa0] sm:$0xff] %v286
    %436 = vst [vmem:[#allocation2 + $0xa8] sm:$0xff] %v288
    %437 = vst [vmem:[#allocation2 + $0xb0] sm:$0xff] %v399
    %438 = vst [vmem:[#allocation2 + $0xb8] sm:$0xff] %v401
    %439 = vst [vmem:[#allocation2 + $0xc0] sm:$0xff] %v292
    %440 = vst [vmem:[#allocation2 + $0xc8] sm:$0xff] %v294
    %441 = vst [vmem:[#allocation2 + $0xd0] sm:$0xff] %v405
    %442 = vst [vmem:[#allocation2 + $0xd8] sm:$0xff] %v407
    %443 = vst [vmem:[#allocation2 + $0xe0] sm:$0xff] %v298
    %444 = vst [vmem:[#allocation2 + $0xe8] sm:$0xff] %v300
    %445 = vst [vmem:[#allocation2 + $0xf0] sm:$0xff] %v411
    %446 = vst [vmem:[#allocation2 + $0xf8] sm:$0xff] %v413
    %v447 = vld [vmem:[#allocation2] sm:$0xff]
    %v448 = vld [vmem:[#allocation2 + $0x8] sm:$0xff]
    %v449 = vld [vmem:[#allocation2 + $0x10] sm:$0xff]
    %v450 = vld [vmem:[#allocation2 + $0x18] sm:$0xff]
    %v451 = vld [vmem:[#allocation9] sm:$0xff]
    %v452 = vld [vmem:[#allocation9 + $0x8] sm:$0xff]
    %v453 = vld [vmem:[#allocation9 + $0x10] sm:$0xff]
    %v454 = vld [vmem:[#allocation9 + $0x18] sm:$0xff]
    %v455 = vld [vmem:[#allocation9 + $0x20] sm:$0xff]
    %v456 = vld [vmem:[#allocation9 + $0x28] sm:$0xff]
    %v457 = vld [vmem:[#allocation9 + $0x30] sm:$0xff]
    %v458 = vld [vmem:[#allocation9 + $0x38] sm:$0xff]
    %v459 = vld [vmem:[#allocation9 + $0x40] sm:$0xff]
    %v460 = vld [vmem:[#allocation9 + $0x48] sm:$0xff]
    %v461 = vld [vmem:[#allocation9 + $0x50] sm:$0xff]
    %v462 = vld [vmem:[#allocation9 + $0x58] sm:$0xff]
    %v463 = vld [vmem:[#allocation9 + $0x60] sm:$0xff]
    %v464 = vld [vmem:[#allocation9 + $0x68] sm:$0xff]
    %v465 = vld [vmem:[#allocation9 + $0x70] sm:$0xff]
    %v466 = vld [vmem:[#allocation9 + $0x78] sm:$0xff]
    %v467 = vld [vmem:[#allocation9 + $0x80] sm:$0xff]
    %v468 = vld [vmem:[#allocation9 + $0x88] sm:$0xff]
    %v469 = vld [vmem:[#allocation9 + $0x90] sm:$0xff]
    %v470 = vld [vmem:[#allocation9 + $0x98] sm:$0xff]
    %v471 = vld [vmem:[#allocation9 + $0xa0] sm:$0xff]
    %v472 = vld [vmem:[#allocation9 + $0xa8] sm:$0xff]
    %v473 = vld [vmem:[#allocation9 + $0xb0] sm:$0xff]
    %v474 = vld [vmem:[#allocation9 + $0xb8] sm:$0xff]
    %v475 = vld [vmem:[#allocation9 + $0xc0] sm:$0xff]
    %v476 = vld [vmem:[#allocation9 + $0xc8] sm:$0xff]
    %v477 = vld [vmem:[#allocation9 + $0xd0] sm:$0xff]
    %v478 = vld [vmem:[#allocation9 + $0xd8] sm:$0xff]
    %v479 = vld [vmem:[#allocation9 + $0xe0] sm:$0xff]
    %v480 = vld [vmem:[#allocation9 + $0xe8] sm:$0xff]
    %v481 = vld [vmem:[#allocation9 + $0xf0] sm:$0xff]
    %v482 = vld [vmem:[#allocation9 + $0xf8] sm:$0xff]
    %v483 = vld [vmem:[#allocation9 + $0x100] sm:$0xff]
    %v484 = vld [vmem:[#allocation9 + $0x108] sm:$0xff]
    %v485 = vld [vmem:[#allocation9 + $0x110] sm:$0xff]
    %v486 = vld [vmem:[#allocation9 + $0x118] sm:$0xff]
    %v487 = vld [vmem:[#allocation9 + $0x120] sm:$0xff]
    %v488 = vld [vmem:[#allocation9 + $0x128] sm:$0xff]
    %v489 = vld [vmem:[#allocation9 + $0x130] sm:$0xff]
    %v490 = vld [vmem:[#allocation9 + $0x138] sm:$0xff]
    %v491 = vld [vmem:[#allocation9 + $0x140] sm:$0xff]
    %v492 = vld [vmem:[#allocation9 + $0x148] sm:$0xff]
    %v493 = vld [vmem:[#allocation9 + $0x150] sm:$0xff]
    %v494 = vld [vmem:[#allocation9 + $0x158] sm:$0xff]
    %v495 = vld [vmem:[#allocation9 + $0x160] sm:$0xff]
    %v496 = vld [vmem:[#allocation9 + $0x168] sm:$0xff]
    %v497 = vld [vmem:[#allocation9 + $0x170] sm:$0xff]
    %v498 = vld [vmem:[#allocation9 + $0x178] sm:$0xff]
    %v499 = vld [vmem:[#allocation9 + $0x180] sm:$0xff]
    %v500 = vld [vmem:[#allocation9 + $0x188] sm:$0xff]
    %v501 = vld [vmem:[#allocation9 + $0x190] sm:$0xff]
    %v502 = vld [vmem:[#allocation9 + $0x198] sm:$0xff]
    %v503 = vld [vmem:[#allocation9 + $0x1a0] sm:$0xff]
    %v504 = vld [vmem:[#allocation9 + $0x1a8] sm:$0xff]
    %v505 = vld [vmem:[#allocation9 + $0x1b0] sm:$0xff]
    %v506 = vld [vmem:[#allocation9 + $0x1b8] sm:$0xff]
    %v507 = vld [vmem:[#allocation9 + $0x1c0] sm:$0xff]
    %v508 = vld [vmem:[#allocation9 + $0x1c8] sm:$0xff]
    %v509 = vld [vmem:[#allocation9 + $0x1d0] sm:$0xff]
    %v510 = vld [vmem:[#allocation9 + $0x1d8] sm:$0xff]
    %v511 = vld [vmem:[#allocation9 + $0x1e0] sm:$0xff]
    %v512 = vld [vmem:[#allocation9 + $0x1e8] sm:$0xff]
    %v513 = vld [vmem:[#allocation9 + $0x1f0] sm:$0xff]
    %v514 = vld [vmem:[#allocation9 + $0x1f8] sm:$0xff]
    %515 = vmatprep.subr.mxu0 %v512
    %516 = vmatpush1.msra.mxu0 %v511
    %517 = vmatprep.subr.mxu0 %v508
    %518 = vmatpush1.msra.mxu0 %v507
    %519 = vmatprep.subr.mxu0 %v504
    %520 = vmatpush1.msra.mxu0 %v503
    %521 = vmatprep.subr.mxu0 %v500
    %522 = vmatpush1.msra.mxu0 %v499
    %523 = vmatprep.subr.mxu0 %v496
    %524 = vmatpush1.msra.mxu0 %v495
    %525 = vmatprep.subr.mxu0 %v492
    %526 = vmatpush1.msra.mxu0 %v491
    %527 = vmatprep.subr.mxu0 %v488
    %528 = vmatpush1.msra.mxu0 %v487
    %529 = vmatprep.subr.mxu0 %v484
    %530 = vmatpush1.msra.mxu0 %v483
    %531 = vmatprep.subr.mxu0 %v480
    %532 = vmatpush1.msra.mxu0 %v479
    %533 = vmatprep.subr.mxu0 %v476
    %534 = vmatpush1.msra.mxu0 %v475
    %535 = vmatprep.subr.mxu0 %v472
    %536 = vmatpush1.msra.mxu0 %v471
    %537 = vmatprep.subr.mxu0 %v468
    %538 = vmatpush1.msra.mxu0 %v467
    %539 = vmatprep.subr.mxu0 %v464
    %540 = vmatpush1.msra.mxu0 %v463
    %541 = vmatprep.subr.mxu0 %v460
    %542 = vmatpush1.msra.mxu0 %v459
    %543 = vmatprep.subr.mxu0 %v456
    %544 = vmatpush1.msra.mxu0 %v455
    %545 = vmatprep.subr.mxu0 %v452
    %546 = vmatpush1.msra.mxu0 %v451
    %547 = vmatprep.subr.mxu0 0.0
    %548 = vmatpush2.msra.mxu0 0.0
    %549 = vmatprep.subr.mxu0 0.0
    %550 = vmatpush2.msra.mxu0 0.0
    %551 = vmatprep.subr.mxu0 0.0
    %552 = vmatpush2.msra.mxu0 0.0
    %553 = vmatprep.subr.mxu0 0.0
    %554 = vmatpush2.msra.mxu0 0.0
    %555 = vmatprep.subr.mxu0 0.0
    %556 = vmatpush2.msra.mxu0 0.0
    %557 = vmatprep.subr.mxu0 0.0
    %558 = vmatpush2.msra.mxu0 0.0
    %559 = vmatprep.subr.mxu0 0.0
    %560 = vmatpush2.msra.mxu0 0.0
    %561 = vmatprep.subr.mxu0 0.0
    %562 = vmatpush2.msra.mxu0 0.0
    %563 = vmatprep.subr.mxu0 0.0
    %564 = vmatpush2.msra.mxu0 0.0
    %565 = vmatprep.subr.mxu0 0.0
    %566 = vmatpush2.msra.mxu0 0.0
    %567 = vmatprep.subr.mxu0 0.0
    %568 = vmatpush2.msra.mxu0 0.0
    %569 = vmatprep.subr.mxu0 0.0
    %570 = vmatpush2.msra.mxu0 0.0
    %571 = vmatprep.subr.mxu0 0.0
    %572 = vmatpush2.msra.mxu0 0.0
    %573 = vmatprep.subr.mxu0 0.0
    %574 = vmatpush2.msra.mxu0 0.0
    %575 = vmatprep.subr.mxu0 0.0
    %576 = vmatpush2.msra.mxu0 0.0
    %577 = vmatprep.subr.mxu0 0.0
    %578 = vmatpush2.msra.mxu0 0.0
    %579 = vmatprep.mubr.f32.mxu0 0.0
    %580 = vmatmul.mubr.f32.gmra.mxu0 0.0
    %v581 = vpop.f32.mrf.mxu0
    %v582 = vadd.f32 0.0, %v581
    %v583 = vpop.f32.mrf.mxu0
    %v584 = vadd.f32 0.0, %v583
    %585 = vdwg.mxu0
    %586 = vmatprep.subr.mxu0 %v514
    %587 = vmatpush1.msra.mxu0 %v513
    %588 = vmatprep.subr.mxu0 %v510
    %589 = vmatpush1.msra.mxu0 %v509
    %590 = vmatprep.subr.mxu0 %v506
    %591 = vmatpush1.msra.mxu0 %v505
    %592 = vmatprep.subr.mxu0 %v502
    %593 = vmatpush1.msra.mxu0 %v501
    %594 = vmatprep.subr.mxu0 %v498
    %595 = vmatpush1.msra.mxu0 %v497
    %596 = vmatprep.subr.mxu0 %v494
    %597 = vmatpush1.msra.mxu0 %v493
    %598 = vmatprep.subr.mxu0 %v490
    %599 = vmatpush1.msra.mxu0 %v489
    %600 = vmatprep.subr.mxu0 %v486
    %601 = vmatpush1.msra.mxu0 %v485
    %602 = vmatprep.subr.mxu0 %v482
    %603 = vmatpush1.msra.mxu0 %v481
    %604 = vmatprep.subr.mxu0 %v478
    %605 = vmatpush1.msra.mxu0 %v477
    %606 = vmatprep.subr.mxu0 %v474
    %607 = vmatpush1.msra.mxu0 %v473
    %608 = vmatprep.subr.mxu0 %v470
    %609 = vmatpush1.msra.mxu0 %v469
    %610 = vmatprep.subr.mxu0 %v466
    %611 = vmatpush1.msra.mxu0 %v465
    %612 = vmatprep.subr.mxu0 %v462
    %613 = vmatpush1.msra.mxu0 %v461
    %614 = vmatprep.subr.mxu0 %v458
    %615 = vmatpush1.msra.mxu0 %v457
    %616 = vmatprep.subr.mxu0 %v454
    %617 = vmatpush1.msra.mxu0 %v453
    %618 = vmatprep.subr.mxu0 0.0
    %619 = vmatpush2.msra.mxu0 0.0
    %620 = vmatprep.subr.mxu0 0.0
    %621 = vmatpush2.msra.mxu0 0.0
    %622 = vmatprep.subr.mxu0 0.0
    %623 = vmatpush2.msra.mxu0 0.0
    %624 = vmatprep.subr.mxu0 0.0
    %625 = vmatpush2.msra.mxu0 0.0
    %626 = vmatprep.subr.mxu0 0.0
    %627 = vmatpush2.msra.mxu0 0.0
    %628 = vmatprep.subr.mxu0 0.0
    %629 = vmatpush2.msra.mxu0 0.0
    %630 = vmatprep.subr.mxu0 0.0
    %631 = vmatpush2.msra.mxu0 0.0
    %632 = vmatprep.subr.mxu0 0.0
    %633 = vmatpush2.msra.mxu0 0.0
    %634 = vmatprep.subr.mxu0 0.0
    %635 = vmatpush2.msra.mxu0 0.0
    %636 = vmatprep.subr.mxu0 0.0
    %637 = vmatpush2.msra.mxu0 0.0
    %638 = vmatprep.subr.mxu0 0.0
    %639 = vmatpush2.msra.mxu0 0.0
    %640 = vmatprep.subr.mxu0 0.0
    %641 = vmatpush2.msra.mxu0 0.0
    %642 = vmatprep.subr.mxu0 0.0
    %643 = vmatpush2.msra.mxu0 0.0
    %644 = vmatprep.subr.mxu0 0.0
    %645 = vmatpush2.msra.mxu0 0.0
    %646 = vmatprep.subr.mxu0 0.0
    %647 = vmatpush2.msra.mxu0 0.0
    %648 = vmatprep.subr.mxu0 0.0
    %649 = vmatpush2.msra.mxu0 0.0
    %650 = vmatprep.mubr.f32.mxu0 0.0
    %651 = vmatmul.mubr.f32.gmra.mxu0 0.0
    %v652 = vpop.f32.mrf.mxu0
    %v653 = vadd.f32 0.0, %v652
    %v654 = vpop.f32.mrf.mxu0
    %v655 = vadd.f32 0.0, %v654
    %656 = vdwg.mxu0
    %v657 = vadd.f32 %v447, %v582
    %v658 = vadd.f32 %v448, %v584
    %v659 = vadd.f32 %v449, %v653
    %v660 = vadd.f32 %v450, %v655
    %v661 = vxor.u32 %v657, 2147483648
    %v662 = vmul.f32 %v661, 1.442695
    %v663 = vpow.pop %v662
    %v664 = vadd.f32 %v663, 1.0
    %v665 = vrcp.pop %v664
    %v666 = vmul.f32 1.0, %v665
    %v667 = vxor.u32 %v658, 2147483648
    %v668 = vmul.f32 %v667, 1.442695
    %v669 = vpow.pop %v668
    %v670 = vadd.f32 %v669, 1.0
    %v671 = vrcp.pop %v670
    %v672 = vmul.f32 1.0, %v671
    %v673 = vtanh.pop %v659
    %v674 = vxor.u32 %v660, 2147483648
    %v675 = vmul.f32 %v674, 1.442695
    %v676 = vpow.pop %v675
    %v677 = vadd.f32 %v676, 1.0
    %v678 = vrcp.pop %v677
    %v679 = vmul.f32 1.0, %v678
    %v680 = vmul.f32 %v672, 0.0
    %v681 = vmul.f32 %v666, %v673
    %v682 = vadd.f32 %v680, %v681
    %v683 = vtanh.pop %v682
    %v684 = vmul.f32 %v679, %v683
    %685 = vst [vmem:[#allocation3] sm:$0xff] %v684
    %s686 = scalar_lea.vmem [#allocation2], 32
    %v687 = vld [vmem:[%s686] sm:$0xff]
    %v688 = vld [vmem:[%s686 + $0x8] sm:$0xff]
    %v689 = vld [vmem:[%s686 + $0x10] sm:$0xff]
    %v690 = vld [vmem:[%s686 + $0x18] sm:$0xff]
    %v691 = vld [vmem:[#allocation9] sm:$0xff]
    %v692 = vld [vmem:[#allocation9 + $0x8] sm:$0xff]
    %v693 = vld [vmem:[#allocation9 + $0x10] sm:$0xff]
    %v694 = vld [vmem:[#allocation9 + $0x18] sm:$0xff]
    %v695 = vld [vmem:[#allocation9 + $0x20] sm:$0xff]
    %v696 = vld [vmem:[#allocation9 + $0x28] sm:$0xff]
    %v697 = vld [vmem:[#allocation9 + $0x30] sm:$0xff]
    %v698 = vld [vmem:[#allocation9 + $0x38] sm:$0xff]
    %v699 = vld [vmem:[#allocation9 + $0x40] sm:$0xff]
    %v700 = vld [vmem:[#allocation9 + $0x48] sm:$0xff]
    %v701 = vld [vmem:[#allocation9 + $0x50] sm:$0xff]
    %v702 = vld [vmem:[#allocation9 + $0x58] sm:$0xff]
    %v703 = vld [vmem:[#allocation9 + $0x60] sm:$0xff]
    %v704 = vld [vmem:[#allocation9 + $0x68] sm:$0xff]
    %v705 = vld [vmem:[#allocation9 + $0x70] sm:$0xff]
    %v706 = vld [vmem:[#allocation9 + $0x78] sm:$0xff]
    %v707 = vld [vmem:[#allocation9 + $0x80] sm:$0xff]
    %v708 = vld [vmem:[#allocation9 + $0x88] sm:$0xff]
    %v709 = vld [vmem:[#allocation9 + $0x90] sm:$0xff]
    %v710 = vld [vmem:[#allocation9 + $0x98] sm:$0xff]
    %v711 = vld [vmem:[#allocation9 + $0xa0] sm:$0xff]
    %v712 = vld [vmem:[#allocation9 + $0xa8] sm:$0xff]
    %v713 = vld [vmem:[#allocation9 + $0xb0] sm:$0xff]
    %v714 = vld [vmem:[#allocation9 + $0xb8] sm:$0xff]
    %v715 = vld [vmem:[#allocation9 + $0xc0] sm:$0xff]
    %v716 = vld [vmem:[#allocation9 + $0xc8] sm:$0xff]
    %v717 = vld [vmem:[#allocation9 + $0xd0] sm:$0xff]
    %v718 = vld [vmem:[#allocation9 + $0xd8] sm:$0xff]
    %v719 = vld [vmem:[#allocation9 + $0xe0] sm:$0xff]
    %v720 = vld [vmem:[#allocation9 + $0xe8] sm:$0xff]
    %v721 = vld [vmem:[#allocation9 + $0xf0] sm:$0xff]
    %v722 = vld [vmem:[#allocation9 + $0xf8] sm:$0xff]
    %v723 = vld [vmem:[#allocation9 + $0x100] sm:$0xff]
    %v724 = vld [vmem:[#allocation9 + $0x108] sm:$0xff]
    %v725 = vld [vmem:[#allocation9 + $0x110] sm:$0xff]
    %v726 = vld [vmem:[#allocation9 + $0x118] sm:$0xff]
    %v727 = vld [vmem:[#allocation9 + $0x120] sm:$0xff]
    %v728 = vld [vmem:[#allocation9 + $0x128] sm:$0xff]
    %v729 = vld [vmem:[#allocation9 + $0x130] sm:$0xff]
    %v730 = vld [vmem:[#allocation9 + $0x138] sm:$0xff]
    %v731 = vld [vmem:[#allocation9 + $0x140] sm:$0xff]
    %v732 = vld [vmem:[#allocation9 + $0x148] sm:$0xff]
    %v733 = vld [vmem:[#allocation9 + $0x150] sm:$0xff]
    %v734 = vld [vmem:[#allocation9 + $0x158] sm:$0xff]
    %v735 = vld [vmem:[#allocation9 + $0x160] sm:$0xff]
    %v736 = vld [vmem:[#allocation9 + $0x168] sm:$0xff]
    %v737 = vld [vmem:[#allocation9 + $0x170] sm:$0xff]
    %v738 = vld [vmem:[#allocation9 + $0x178] sm:$0xff]
    %v739 = vld [vmem:[#allocation9 + $0x180] sm:$0xff]
    %v740 = vld [vmem:[#allocation9 + $0x188] sm:$0xff]
    %v741 = vld [vmem:[#allocation9 + $0x190] sm:$0xff]
    %v742 = vld [vmem:[#allocation9 + $0x198] sm:$0xff]
    %v743 = vld [vmem:[#allocation9 + $0x1a0] sm:$0xff]
    %v744 = vld [vmem:[#allocation9 + $0x1a8] sm:$0xff]
    %v745 = vld [vmem:[#allocation9 + $0x1b0] sm:$0xff]
    %v746 = vld [vmem:[#allocation9 + $0x1b8] sm:$0xff]
    %v747 = vld [vmem:[#allocation9 + $0x1c0] sm:$0xff]
    %v748 = vld [vmem:[#allocation9 + $0x1c8] sm:$0xff]
    %v749 = vld [vmem:[#allocation9 + $0x1d0] sm:$0xff]
    %v750 = vld [vmem:[#allocation9 + $0x1d8] sm:$0xff]
    %v751 = vld [vmem:[#allocation9 + $0x1e0] sm:$0xff]
    %v752 = vld [vmem:[#allocation9 + $0x1e8] sm:$0xff]
    %v753 = vld [vmem:[#allocation9 + $0x1f0] sm:$0xff]
    %v754 = vld [vmem:[#allocation9 + $0x1f8] sm:$0xff]
    %755 = vmatprep.subr.mxu0 %v752
    %756 = vmatpush1.msra.mxu0 %v751
    %757 = vmatprep.subr.mxu0 %v748
    %758 = vmatpush1.msra.mxu0 %v747
    %759 = vmatprep.subr.mxu0 %v744
    %760 = vmatpush1.msra.mxu0 %v743
    %761 = vmatprep.subr.mxu0 %v740
    %762 = vmatpush1.msra.mxu0 %v739
    %763 = vmatprep.subr.mxu0 %v736
    %764 = vmatpush1.msra.mxu0 %v735
    %765 = vmatprep.subr.mxu0 %v732
    %766 = vmatpush1.msra.mxu0 %v731
    %767 = vmatprep.subr.mxu0 %v728
    %768 = vmatpush1.msra.mxu0 %v727
    %769 = vmatprep.subr.mxu0 %v724
    %770 = vmatpush1.msra.mxu0 %v723
    %771 = vmatprep.subr.mxu0 %v720
    %772 = vmatpush1.msra.mxu0 %v719
    %773 = vmatprep.subr.mxu0 %v716
    %774 = vmatpush1.msra.mxu0 %v715
    %775 = vmatprep.subr.mxu0 %v712
    %776 = vmatpush1.msra.mxu0 %v711
    %777 = vmatprep.subr.mxu0 %v708
    %778 = vmatpush1.msra.mxu0 %v707
    %779 = vmatprep.subr.mxu0 %v704
    %780 = vmatpush1.msra.mxu0 %v703
    %781 = vmatprep.subr.mxu0 %v700
    %782 = vmatpush1.msra.mxu0 %v699
    %783 = vmatprep.subr.mxu0 %v696
    %784 = vmatpush1.msra.mxu0 %v695
    %785 = vmatprep.subr.mxu0 %v692
    %786 = vmatpush1.msra.mxu0 %v691
    %787 = vmatprep.subr.mxu0 0.0
    %788 = vmatpush2.msra.mxu0 0.0
    %789 = vmatprep.subr.mxu0 0.0
    %790 = vmatpush2.msra.mxu0 0.0
    %791 = vmatprep.subr.mxu0 0.0
    %792 = vmatpush2.msra.mxu0 0.0
    %793 = vmatprep.subr.mxu0 0.0
    %794 = vmatpush2.msra.mxu0 0.0
    %795 = vmatprep.subr.mxu0 0.0
    %796 = vmatpush2.msra.mxu0 0.0
    %797 = vmatprep.subr.mxu0 0.0
    %798 = vmatpush2.msra.mxu0 0.0
    %799 = vmatprep.subr.mxu0 0.0
    %800 = vmatpush2.msra.mxu0 0.0
    %801 = vmatprep.subr.mxu0 0.0
    %802 = vmatpush2.msra.mxu0 0.0
    %803 = vmatprep.subr.mxu0 0.0
    %804 = vmatpush2.msra.mxu0 0.0
    %805 = vmatprep.subr.mxu0 0.0
    %806 = vmatpush2.msra.mxu0 0.0
    %807 = vmatprep.subr.mxu0 0.0
    %808 = vmatpush2.msra.mxu0 0.0
    %809 = vmatprep.subr.mxu0 0.0
    %810 = vmatpush2.msra.mxu0 0.0
    %811 = vmatprep.subr.mxu0 0.0
    %812 = vmatpush2.msra.mxu0 0.0
    %813 = vmatprep.subr.mxu0 0.0
    %814 = vmatpush2.msra.mxu0 0.0
    %815 = vmatprep.subr.mxu0 0.0
    %816 = vmatpush2.msra.mxu0 0.0
    %817 = vmatprep.subr.mxu0 0.0
    %818 = vmatpush2.msra.mxu0 0.0
    %819 = vmatprep.mubr.f32.mxu0 0.0
    %820 = vmatmul.mubr.f32.gmra.mxu0 %v684
    %v821 = vpop.f32.mrf.mxu0
    %v822 = vadd.f32 0.0, %v821
    %v823 = vpop.f32.mrf.mxu0
    %v824 = vadd.f32 0.0, %v823
    %825 = vdwg.mxu0
    %826 = vmatprep.subr.mxu0 %v754
    %827 = vmatpush1.msra.mxu0 %v753
    %828 = vmatprep.subr.mxu0 %v750
    %829 = vmatpush1.msra.mxu0 %v749
    %830 = vmatprep.subr.mxu0 %v746
    %831 = vmatpush1.msra.mxu0 %v745
    %832 = vmatprep.subr.mxu0 %v742
    %833 = vmatpush1.msra.mxu0 %v741
    %834 = vmatprep.subr.mxu0 %v738
    %835 = vmatpush1.msra.mxu0 %v737
    %836 = vmatprep.subr.mxu0 %v734
    %837 = vmatpush1.msra.mxu0 %v733
    %838 = vmatprep.subr.mxu0 %v730
    %839 = vmatpush1.msra.mxu0 %v729
    %840 = vmatprep.subr.mxu0 %v726
    %841 = vmatpush1.msra.mxu0 %v725
    %842 = vmatprep.subr.mxu0 %v722
    %843 = vmatpush1.msra.mxu0 %v721
    %844 = vmatprep.subr.mxu0 %v718
    %845 = vmatpush1.msra.mxu0 %v717
    %846 = vmatprep.subr.mxu0 %v714
    %847 = vmatpush1.msra.mxu0 %v713
    %848 = vmatprep.subr.mxu0 %v710
    %849 = vmatpush1.msra.mxu0 %v709
    %850 = vmatprep.subr.mxu0 %v706
    %851 = vmatpush1.msra.mxu0 %v705
    %852 = vmatprep.subr.mxu0 %v702
    %853 = vmatpush1.msra.mxu0 %v701
    %854 = vmatprep.subr.mxu0 %v698
    %855 = vmatpush1.msra.mxu0 %v697
    %856 = vmatprep.subr.mxu0 %v694
    %857 = vmatpush1.msra.mxu0 %v693
    %858 = vmatprep.subr.mxu0 0.0
    %859 = vmatpush2.msra.mxu0 0.0
    %860 = vmatprep.subr.mxu0 0.0
    %861 = vmatpush2.msra.mxu0 0.0
    %862 = vmatprep.subr.mxu0 0.0
    %863 = vmatpush2.msra.mxu0 0.0
    %864 = vmatprep.subr.mxu0 0.0
    %865 = vmatpush2.msra.mxu0 0.0
    %866 = vmatprep.subr.mxu0 0.0
    %867 = vmatpush2.msra.mxu0 0.0
    %868 = vmatprep.subr.mxu0 0.0
    %869 = vmatpush2.msra.mxu0 0.0
    %870 = vmatprep.subr.mxu0 0.0
    %871 = vmatpush2.msra.mxu0 0.0
    %872 = vmatprep.subr.mxu0 0.0
    %873 = vmatpush2.msra.mxu0 0.0
    %874 = vmatprep.subr.mxu0 0.0
    %875 = vmatpush2.msra.mxu0 0.0
    %876 = vmatprep.subr.mxu0 0.0
    %877 = vmatpush2.msra.mxu0 0.0
    %878 = vmatprep.subr.mxu0 0.0
    %879 = vmatpush2.msra.mxu0 0.0
    %880 = vmatprep.subr.mxu0 0.0
    %881 = vmatpush2.msra.mxu0 0.0
    %882 = vmatprep.subr.mxu0 0.0
    %883 = vmatpush2.msra.mxu0 0.0
    %884 = vmatprep.subr.mxu0 0.0
    %885 = vmatpush2.msra.mxu0 0.0
    %886 = vmatprep.subr.mxu0 0.0
    %887 = vmatpush2.msra.mxu0 0.0
    %888 = vmatprep.subr.mxu0 0.0
    %889 = vmatpush2.msra.mxu0 0.0
    %890 = vmatprep.mubr.f32.mxu0 0.0
    %891 = vmatmul.mubr.f32.gmra.mxu0 %v684
    %v892 = vpop.f32.mrf.mxu0
    %v893 = vadd.f32 0.0, %v892
    %v894 = vpop.f32.mrf.mxu0
    %v895 = vadd.f32 0.0, %v894
    %896 = vdwg.mxu0
    %v897 = vadd.f32 %v687, %v822
    %v898 = vadd.f32 %v688, %v824
    %v899 = vadd.f32 %v689, %v893
    %v900 = vadd.f32 %v690, %v895
    %v901 = vxor.u32 %v897, 2147483648
    %v902 = vmul.f32 %v901, 1.442695
    %v903 = vpow.pop %v902
    %v904 = vadd.f32 %v903, 1.0
    %v905 = vrcp.pop %v904
    %v906 = vmul.f32 1.0, %v905
    %v907 = vxor.u32 %v898, 2147483648
    %v908 = vmul.f32 %v907, 1.442695
    %v909 = vpow.pop %v908
    %v910 = vadd.f32 %v909, 1.0
    %v911 = vrcp.pop %v910
    %v912 = vmul.f32 1.0, %v911
    %v913 = vtanh.pop %v899
    %v914 = vxor.u32 %v900, 2147483648
    %v915 = vmul.f32 %v914, 1.442695
    %v916 = vpow.pop %v915
    %v917 = vadd.f32 %v916, 1.0
    %v918 = vrcp.pop %v917
    %v919 = vmul.f32 1.0, %v918
    %v920 = vmul.f32 %v912, %v682
    %v921 = vmul.f32 %v906, %v913
    %v922 = vadd.f32 %v920, %v921
    %v923 = vtanh.pop %v922
    %v924 = vmul.f32 %v919, %v923
    %s925 = scalar_lea.vmem [#allocation3], 8
    %926 = vst [vmem:[%s925] sm:$0xff] %v924
    %s927 = scalar_lea.vmem [#allocation2], 64
    %v928 = vld [vmem:[%s927] sm:$0xff]
    %v929 = vld [vmem:[%s927 + $0x8] sm:$0xff]
    %v930 = vld [vmem:[%s927 + $0x10] sm:$0xff]
    %v931 = vld [vmem:[%s927 + $0x18] sm:$0xff]
    %v932 = vld [vmem:[#allocation9] sm:$0xff]
    %v933 = vld [vmem:[#allocation9 + $0x8] sm:$0xff]
    %v934 = vld [vmem:[#allocation9 + $0x10] sm:$0xff]
    %v935 = vld [vmem:[#allocation9 + $0x18] sm:$0xff]
    %v936 = vld [vmem:[#allocation9 + $0x20] sm:$0xff]
    %v937 = vld [vmem:[#allocation9 + $0x28] sm:$0xff]
    %v938 = vld [vmem:[#allocation9 + $0x30] sm:$0xff]
    %v939 = vld [vmem:[#allocation9 + $0x38] sm:$0xff]
    %v940 = vld [vmem:[#allocation9 + $0x40] sm:$0xff]
    %v941 = vld [vmem:[#allocation9 + $0x48] sm:$0xff]
    %v942 = vld [vmem:[#allocation9 + $0x50] sm:$0xff]
    %v943 = vld [vmem:[#allocation9 + $0x58] sm:$0xff]
    %v944 = vld [vmem:[#allocation9 + $0x60] sm:$0xff]
    %v945 = vld [vmem:[#allocation9 + $0x68] sm:$0xff]
    %v946 = vld [vmem:[#allocation9 + $0x70] sm:$0xff]
    %v947 = vld [vmem:[#allocation9 + $0x78] sm:$0xff]
    %v948 = vld [vmem:[#allocation9 + $0x80] sm:$0xff]
    %v949 = vld [vmem:[#allocation9 + $0x88] sm:$0xff]
    %v950 = vld [vmem:[#allocation9 + $0x90] sm:$0xff]
    %v951 = vld [vmem:[#allocation9 + $0x98] sm:$0xff]
    %v952 = vld [vmem:[#allocation9 + $0xa0] sm:$0xff]
    %v953 = vld [vmem:[#allocation9 + $0xa8] sm:$0xff]
    %v954 = vld [vmem:[#allocation9 + $0xb0] sm:$0xff]
    %v955 = vld [vmem:[#allocation9 + $0xb8] sm:$0xff]
    %v956 = vld [vmem:[#allocation9 + $0xc0] sm:$0xff]
    %v957 = vld [vmem:[#allocation9 + $0xc8] sm:$0xff]
    %v958 = vld [vmem:[#allocation9 + $0xd0] sm:$0xff]
    %v959 = vld [vmem:[#allocation9 + $0xd8] sm:$0xff]
    %v960 = vld [vmem:[#allocation9 + $0xe0] sm:$0xff]
    %v961 = vld [vmem:[#allocation9 + $0xe8] sm:$0xff]
    %v962 = vld [vmem:[#allocation9 + $0xf0] sm:$0xff]
    %v963 = vld [vmem:[#allocation9 + $0xf8] sm:$0xff]
    %v964 = vld [vmem:[#allocation9 + $0x100] sm:$0xff]
    %v965 = vld [vmem:[#allocation9 + $0x108] sm:$0xff]
    %v966 = vld [vmem:[#allocation9 + $0x110] sm:$0xff]
    %v967 = vld [vmem:[#allocation9 + $0x118] sm:$0xff]
    %v968 = vld [vmem:[#allocation9 + $0x120] sm:$0xff]
    %v969 = vld [vmem:[#allocation9 + $0x128] sm:$0xff]
    %v970 = vld [vmem:[#allocation9 + $0x130] sm:$0xff]
    %v971 = vld [vmem:[#allocation9 + $0x138] sm:$0xff]
    %v972 = vld [vmem:[#allocation9 + $0x140] sm:$0xff]
    %v973 = vld [vmem:[#allocation9 + $0x148] sm:$0xff]
    %v974 = vld [vmem:[#allocation9 + $0x150] sm:$0xff]
    %v975 = vld [vmem:[#allocation9 + $0x158] sm:$0xff]
    %v976 = vld [vmem:[#allocation9 + $0x160] sm:$0xff]
    %v977 = vld [vmem:[#allocation9 + $0x168] sm:$0xff]
    %v978 = vld [vmem:[#allocation9 + $0x170] sm:$0xff]
    %v979 = vld [vmem:[#allocation9 + $0x178] sm:$0xff]
    %v980 = vld [vmem:[#allocation9 + $0x180] sm:$0xff]
    %v981 = vld [vmem:[#allocation9 + $0x188] sm:$0xff]
    %v982 = vld [vmem:[#allocation9 + $0x190] sm:$0xff]
    %v983 = vld [vmem:[#allocation9 + $0x198] sm:$0xff]
    %v984 = vld [vmem:[#allocation9 + $0x1a0] sm:$0xff]
    %v985 = vld [vmem:[#allocation9 + $0x1a8] sm:$0xff]
    %v986 = vld [vmem:[#allocation9 + $0x1b0] sm:$0xff]
    %v987 = vld [vmem:[#allocation9 + $0x1b8] sm:$0xff]
    %v988 = vld [vmem:[#allocation9 + $0x1c0] sm:$0xff]
    %v989 = vld [vmem:[#allocation9 + $0x1c8] sm:$0xff]
    %v990 = vld [vmem:[#allocation9 + $0x1d0] sm:$0xff]
    %v991 = vld [vmem:[#allocation9 + $0x1d8] sm:$0xff]
    %v992 = vld [vmem:[#allocation9 + $0x1e0] sm:$0xff]
    %v993 = vld [vmem:[#allocation9 + $0x1e8] sm:$0xff]
    %v994 = vld [vmem:[#allocation9 + $0x1f0] sm:$0xff]
    %v995 = vld [vmem:[#allocation9 + $0x1f8] sm:$0xff]
    %996 = vmatprep.subr.mxu0 %v993
    %997 = vmatpush1.msra.mxu0 %v992
    %998 = vmatprep.subr.mxu0 %v989
    %999 = vmatpush1.msra.mxu0 %v988
    %1000 = vmatprep.subr.mxu0 %v985
    %1001 = vmatpush1.msra.mxu0 %v984
    %1002 = vmatprep.subr.mxu0 %v981
    %1003 = vmatpush1.msra.mxu0 %v980
    %1004 = vmatprep.subr.mxu0 %v977
    %1005 = vmatpush1.msra.mxu0 %v976
    %1006 = vmatprep.subr.mxu0 %v973
    %1007 = vmatpush1.msra.mxu0 %v972
    %1008 = vmatprep.subr.mxu0 %v969
    %1009 = vmatpush1.msra.mxu0 %v968
    %1010 = vmatprep.subr.mxu0 %v965
    %1011 = vmatpush1.msra.mxu0 %v964
    %1012 = vmatprep.subr.mxu0 %v961
    %1013 = vmatpush1.msra.mxu0 %v960
    %1014 = vmatprep.subr.mxu0 %v957
    %1015 = vmatpush1.msra.mxu0 %v956
    %1016 = vmatprep.subr.mxu0 %v953
    %1017 = vmatpush1.msra.mxu0 %v952
    %1018 = vmatprep.subr.mxu0 %v949
    %1019 = vmatpush1.msra.mxu0 %v948
    %1020 = vmatprep.subr.mxu0 %v945
    %1021 = vmatpush1.msra.mxu0 %v944
    %1022 = vmatprep.subr.mxu0 %v941
    %1023 = vmatpush1.msra.mxu0 %v940
    %1024 = vmatprep.subr.mxu0 %v937
    %1025 = vmatpush1.msra.mxu0 %v936
    %1026 = vmatprep.subr.mxu0 %v933
    %1027 = vmatpush1.msra.mxu0 %v932
    %1028 = vmatprep.subr.mxu0 0.0
    %1029 = vmatpush2.msra.mxu0 0.0
    %1030 = vmatprep.subr.mxu0 0.0
    %1031 = vmatpush2.msra.mxu0 0.0
    %1032 = vmatprep.subr.mxu0 0.0
    %1033 = vmatpush2.msra.mxu0 0.0
    %1034 = vmatprep.subr.mxu0 0.0
    %1035 = vmatpush2.msra.mxu0 0.0
    %1036 = vmatprep.subr.mxu0 0.0
    %1037 = vmatpush2.msra.mxu0 0.0
    %1038 = vmatprep.subr.mxu0 0.0
    %1039 = vmatpush2.msra.mxu0 0.0
    %1040 = vmatprep.subr.mxu0 0.0
    %1041 = vmatpush2.msra.mxu0 0.0
    %1042 = vmatprep.subr.mxu0 0.0
    %1043 = vmatpush2.msra.mxu0 0.0
    %1044 = vmatprep.subr.mxu0 0.0
    %1045 = vmatpush2.msra.mxu0 0.0
    %1046 = vmatprep.subr.mxu0 0.0
    %1047 = vmatpush2.msra.mxu0 0.0
    %1048 = vmatprep.subr.mxu0 0.0
    %1049 = vmatpush2.msra.mxu0 0.0
    %1050 = vmatprep.subr.mxu0 0.0
    %1051 = vmatpush2.msra.mxu0 0.0
    %1052 = vmatprep.subr.mxu0 0.0
    %1053 = vmatpush2.msra.mxu0 0.0
    %1054 = vmatprep.subr.mxu0 0.0
    %1055 = vmatpush2.msra.mxu0 0.0
    %1056 = vmatprep.subr.mxu0 0.0
    %1057 = vmatpush2.msra.mxu0 0.0
    %1058 = vmatprep.subr.mxu0 0.0
    %1059 = vmatpush2.msra.mxu0 0.0
    %1060 = vmatprep.mubr.f32.mxu0 0.0
    %1061 = vmatmul.mubr.f32.gmra.mxu0 %v924
    %v1062 = vpop.f32.mrf.mxu0
    %v1063 = vadd.f32 0.0, %v1062
    %v1064 = vpop.f32.mrf.mxu0
    %v1065 = vadd.f32 0.0, %v1064
    %1066 = vdwg.mxu0
    %1067 = vmatprep.subr.mxu0 %v995
    %1068 = vmatpush1.msra.mxu0 %v994
    %1069 = vmatprep.subr.mxu0 %v991
    %1070 = vmatpush1.msra.mxu0 %v990
    %1071 = vmatprep.subr.mxu0 %v987
    %1072 = vmatpush1.msra.mxu0 %v986
    %1073 = vmatprep.subr.mxu0 %v983
    %1074 = vmatpush1.msra.mxu0 %v982
    %1075 = vmatprep.subr.mxu0 %v979
    %1076 = vmatpush1.msra.mxu0 %v978
    %1077 = vmatprep.subr.mxu0 %v975
    %1078 = vmatpush1.msra.mxu0 %v974
    %1079 = vmatprep.subr.mxu0 %v971
    %1080 = vmatpush1.msra.mxu0 %v970
    %1081 = vmatprep.subr.mxu0 %v967
    %1082 = vmatpush1.msra.mxu0 %v966
    %1083 = vmatprep.subr.mxu0 %v963
    %1084 = vmatpush1.msra.mxu0 %v962
    %1085 = vmatprep.subr.mxu0 %v959
    %1086 = vmatpush1.msra.mxu0 %v958
    %1087 = vmatprep.subr.mxu0 %v955
    %1088 = vmatpush1.msra.mxu0 %v954
    %1089 = vmatprep.subr.mxu0 %v951
    %1090 = vmatpush1.msra.mxu0 %v950
    %1091 = vmatprep.subr.mxu0 %v947
    %1092 = vmatpush1.msra.mxu0 %v946
    %1093 = vmatprep.subr.mxu0 %v943
    %1094 = vmatpush1.msra.mxu0 %v942
    %1095 = vmatprep.subr.mxu0 %v939
    %1096 = vmatpush1.msra.mxu0 %v938
    %1097 = vmatprep.subr.mxu0 %v935
    %1098 = vmatpush1.msra.mxu0 %v934
    %1099 = vmatprep.subr.mxu0 0.0
    %1100 = vmatpush2.msra.mxu0 0.0
    %1101 = vmatprep.subr.mxu0 0.0
    %1102 = vmatpush2.msra.mxu0 0.0
    %1103 = vmatprep.subr.mxu0 0.0
    %1104 = vmatpush2.msra.mxu0 0.0
    %1105 = vmatprep.subr.mxu0 0.0
    %1106 = vmatpush2.msra.mxu0 0.0
    %1107 = vmatprep.subr.mxu0 0.0
    %1108 = vmatpush2.msra.mxu0 0.0
    %1109 = vmatprep.subr.mxu0 0.0
    %1110 = vmatpush2.msra.mxu0 0.0
    %1111 = vmatprep.subr.mxu0 0.0
    %1112 = vmatpush2.msra.mxu0 0.0
    %1113 = vmatprep.subr.mxu0 0.0
    %1114 = vmatpush2.msra.mxu0 0.0
    %1115 = vmatprep.subr.mxu0 0.0
    %1116 = vmatpush2.msra.mxu0 0.0
    %1117 = vmatprep.subr.mxu0 0.0
    %1118 = vmatpush2.msra.mxu0 0.0
    %1119 = vmatprep.subr.mxu0 0.0
    %1120 = vmatpush2.msra.mxu0 0.0
    %1121 = vmatprep.subr.mxu0 0.0
    %1122 = vmatpush2.msra.mxu0 0.0
    %1123 = vmatprep.subr.mxu0 0.0
    %1124 = vmatpush2.msra.mxu0 0.0
    %1125 = vmatprep.subr.mxu0 0.0
    %1126 = vmatpush2.msra.mxu0 0.0
    %1127 = vmatprep.subr.mxu0 0.0
    %1128 = vmatpush2.msra.mxu0 0.0
    %1129 = vmatprep.subr.mxu0 0.0
    %1130 = vmatpush2.msra.mxu0 0.0
    %1131 = vmatprep.mubr.f32.mxu0 0.0
    %1132 = vmatmul.mubr.f32.gmra.mxu0 %v924
    %v1133 = vpop.f32.mrf.mxu0
    %v1134 = vadd.f32 0.0, %v1133
    %v1135 = vpop.f32.mrf.mxu0
    %v1136 = vadd.f32 0.0, %v1135
    %1137 = vdwg.mxu0
    %v1138 = vadd.f32 %v928, %v1063
    %v1139 = vadd.f32 %v929, %v1065
    %v1140 = vadd.f32 %v930, %v1134
    %v1141 = vadd.f32 %v931, %v1136
    %v1142 = vxor.u32 %v1138, 2147483648
    %v1143 = vmul.f32 %v1142, 1.442695
    %v1144 = vpow.pop %v1143
    %v1145 = vadd.f32 %v1144, 1.0
    %v1146 = vrcp.pop %v1145
    %v1147 = vmul.f32 1.0, %v1146
    %v1148 = vxor.u32 %v1139, 2147483648
    %v1149 = vmul.f32 %v1148, 1.442695
    %v1150 = vpow.pop %v1149
    %v1151 = vadd.f32 %v1150, 1.0
    %v1152 = vrcp.pop %v1151
    %v1153 = vmul.f32 1.0, %v1152
    %v1154 = vtanh.pop %v1140
    %v1155 = vxor.u32 %v1141, 2147483648
    %v1156 = vmul.f32 %v1155, 1.442695
    %v1157 = vpow.pop %v1156
    %v1158 = vadd.f32 %v1157, 1.0
    %v1159 = vrcp.pop %v1158
    %v1160 = vmul.f32 1.0, %v1159
    %v1161 = vmul.f32 %v1153, %v922
    %v1162 = vmul.f32 %v1147, %v1154
    %v1163 = vadd.f32 %v1161, %v1162
    %v1164 = vtanh.pop %v1163
    %v1165 = vmul.f32 %v1160, %v1164
    %s1166 = scalar_lea.vmem [#allocation3], 16
    %1167 = vst [vmem:[%s1166] sm:$0xff] %v1165
    %s1168 = scalar_lea.vmem [#allocation2], 96
    %v1169 = vld [vmem:[%s1168] sm:$0xff]
    %v1170 = vld [vmem:[%s1168 + $0x8] sm:$0xff]
    %v1171 = vld [vmem:[%s1168 + $0x10] sm:$0xff]
    %v1172 = vld [vmem:[%s1168 + $0x18] sm:$0xff]
    %v1173 = vld [vmem:[#allocation9] sm:$0xff]
    %v1174 = vld [vmem:[#allocation9 + $0x8] sm:$0xff]
    %v1175 = vld [vmem:[#allocation9 + $0x10] sm:$0xff]
    %v1176 = vld [vmem:[#allocation9 + $0x18] sm:$0xff]
    %v1177 = vld [vmem:[#allocation9 + $0x20] sm:$0xff]
    %v1178 = vld [vmem:[#allocation9 + $0x28] sm:$0xff]
    %v1179 = vld [vmem:[#allocation9 + $0x30] sm:$0xff]
    %v1180 = vld [vmem:[#allocation9 + $0x38] sm:$0xff]
    %v1181 = vld [vmem:[#allocation9 + $0x40] sm:$0xff]
    %v1182 = vld [vmem:[#allocation9 + $0x48] sm:$0xff]
    %v1183 = vld [vmem:[#allocation9 + $0x50] sm:$0xff]
    %v1184 = vld [vmem:[#allocation9 + $0x58] sm:$0xff]
    %v1185 = vld [vmem:[#allocation9 + $0x60] sm:$0xff]
    %v1186 = vld [vmem:[#allocation9 + $0x68] sm:$0xff]
    %v1187 = vld [vmem:[#allocation9 + $0x70] sm:$0xff]
    %v1188 = vld [vmem:[#allocation9 + $0x78] sm:$0xff]
    %v1189 = vld [vmem:[#allocation9 + $0x80] sm:$0xff]
    %v1190 = vld [vmem:[#allocation9 + $0x88] sm:$0xff]
    %v1191 = vld [vmem:[#allocation9 + $0x90] sm:$0xff]
    %v1192 = vld [vmem:[#allocation9 + $0x98] sm:$0xff]
    %v1193 = vld [vmem:[#allocation9 + $0xa0] sm:$0xff]
    %v1194 = vld [vmem:[#allocation9 + $0xa8] sm:$0xff]
    %v1195 = vld [vmem:[#allocation9 + $0xb0] sm:$0xff]
    %v1196 = vld [vmem:[#allocation9 + $0xb8] sm:$0xff]
    %v1197 = vld [vmem:[#allocation9 + $0xc0] sm:$0xff]
    %v1198 = vld [vmem:[#allocation9 + $0xc8] sm:$0xff]
    %v1199 = vld [vmem:[#allocation9 + $0xd0] sm:$0xff]
    %v1200 = vld [vmem:[#allocation9 + $0xd8] sm:$0xff]
    %v1201 = vld [vmem:[#allocation9 + $0xe0] sm:$0xff]
    %v1202 = vld [vmem:[#allocation9 + $0xe8] sm:$0xff]
    %v1203 = vld [vmem:[#allocation9 + $0xf0] sm:$0xff]
    %v1204 = vld [vmem:[#allocation9 + $0xf8] sm:$0xff]
    %v1205 = vld [vmem:[#allocation9 + $0x100] sm:$0xff]
    %v1206 = vld [vmem:[#allocation9 + $0x108] sm:$0xff]
    %v1207 = vld [vmem:[#allocation9 + $0x110] sm:$0xff]
    %v1208 = vld [vmem:[#allocation9 + $0x118] sm:$0xff]
    %v1209 = vld [vmem:[#allocation9 + $0x120] sm:$0xff]
    %v1210 = vld [vmem:[#allocation9 + $0x128] sm:$0xff]
    %v1211 = vld [vmem:[#allocation9 + $0x130] sm:$0xff]
    %v1212 = vld [vmem:[#allocation9 + $0x138] sm:$0xff]
    %v1213 = vld [vmem:[#allocation9 + $0x140] sm:$0xff]
    %v1214 = vld [vmem:[#allocation9 + $0x148] sm:$0xff]
    %v1215 = vld [vmem:[#allocation9 + $0x150] sm:$0xff]
    %v1216 = vld [vmem:[#allocation9 + $0x158] sm:$0xff]
    %v1217 = vld [vmem:[#allocation9 + $0x160] sm:$0xff]
    %v1218 = vld [vmem:[#allocation9 + $0x168] sm:$0xff]
    %v1219 = vld [vmem:[#allocation9 + $0x170] sm:$0xff]
    %v1220 = vld [vmem:[#allocation9 + $0x178] sm:$0xff]
    %v1221 = vld [vmem:[#allocation9 + $0x180] sm:$0xff]
    %v1222 = vld [vmem:[#allocation9 + $0x188] sm:$0xff]
    %v1223 = vld [vmem:[#allocation9 + $0x190] sm:$0xff]
    %v1224 = vld [vmem:[#allocation9 + $0x198] sm:$0xff]
    %v1225 = vld [vmem:[#allocation9 + $0x1a0] sm:$0xff]
    %v1226 = vld [vmem:[#allocation9 + $0x1a8] sm:$0xff]
    %v1227 = vld [vmem:[#allocation9 + $0x1b0] sm:$0xff]
    %v1228 = vld [vmem:[#allocation9 + $0x1b8] sm:$0xff]
    %v1229 = vld [vmem:[#allocation9 + $0x1c0] sm:$0xff]
    %v1230 = vld [vmem:[#allocation9 + $0x1c8] sm:$0xff]
    %v1231 = vld [vmem:[#allocation9 + $0x1d0] sm:$0xff]
    %v1232 = vld [vmem:[#allocation9 + $0x1d8] sm:$0xff]
    %v1233 = vld [vmem:[#allocation9 + $0x1e0] sm:$0xff]
    %v1234 = vld [vmem:[#allocation9 + $0x1e8] sm:$0xff]
    %v1235 = vld [vmem:[#allocation9 + $0x1f0] sm:$0xff]
    %v1236 = vld [vmem:[#allocation9 + $0x1f8] sm:$0xff]
    %1237 = vmatprep.subr.mxu0 %v1234
    %1238 = vmatpush1.msra.mxu0 %v1233
    %1239 = vmatprep.subr.mxu0 %v1230
    %1240 = vmatpush1.msra.mxu0 %v1229
    %1241 = vmatprep.subr.mxu0 %v1226
    %1242 = vmatpush1.msra.mxu0 %v1225
    %1243 = vmatprep.subr.mxu0 %v1222
    %1244 = vmatpush1.msra.mxu0 %v1221
    %1245 = vmatprep.subr.mxu0 %v1218
    %1246 = vmatpush1.msra.mxu0 %v1217
    %1247 = vmatprep.subr.mxu0 %v1214
    %1248 = vmatpush1.msra.mxu0 %v1213
    %1249 = vmatprep.subr.mxu0 %v1210
    %1250 = vmatpush1.msra.mxu0 %v1209
    %1251 = vmatprep.subr.mxu0 %v1206
    %1252 = vmatpush1.msra.mxu0 %v1205
    %1253 = vmatprep.subr.mxu0 %v1202
    %1254 = vmatpush1.msra.mxu0 %v1201
    %1255 = vmatprep.subr.mxu0 %v1198
    %1256 = vmatpush1.msra.mxu0 %v1197
    %1257 = vmatprep.subr.mxu0 %v1194
    %1258 = vmatpush1.msra.mxu0 %v1193
    %1259 = vmatprep.subr.mxu0 %v1190
    %1260 = vmatpush1.msra.mxu0 %v1189
    %1261 = vmatprep.subr.mxu0 %v1186
    %1262 = vmatpush1.msra.mxu0 %v1185
    %1263 = vmatprep.subr.mxu0 %v1182
    %1264 = vmatpush1.msra.mxu0 %v1181
    %1265 = vmatprep.subr.mxu0 %v1178
    %1266 = vmatpush1.msra.mxu0 %v1177
    %1267 = vmatprep.subr.mxu0 %v1174
    %1268 = vmatpush1.msra.mxu0 %v1173
    %1269 = vmatprep.subr.mxu0 0.0
    %1270 = vmatpush2.msra.mxu0 0.0
    %1271 = vmatprep.subr.mxu0 0.0
    %1272 = vmatpush2.msra.mxu0 0.0
    %1273 = vmatprep.subr.mxu0 0.0
    %1274 = vmatpush2.msra.mxu0 0.0
    %1275 = vmatprep.subr.mxu0 0.0
    %1276 = vmatpush2.msra.mxu0 0.0
    %1277 = vmatprep.subr.mxu0 0.0
    %1278 = vmatpush2.msra.mxu0 0.0
    %1279 = vmatprep.subr.mxu0 0.0
    %1280 = vmatpush2.msra.mxu0 0.0
    %1281 = vmatprep.subr.mxu0 0.0
    %1282 = vmatpush2.msra.mxu0 0.0
    %1283 = vmatprep.subr.mxu0 0.0
    %1284 = vmatpush2.msra.mxu0 0.0
    %1285 = vmatprep.subr.mxu0 0.0
    %1286 = vmatpush2.msra.mxu0 0.0
    %1287 = vmatprep.subr.mxu0 0.0
    %1288 = vmatpush2.msra.mxu0 0.0
    %1289 = vmatprep.subr.mxu0 0.0
    %1290 = vmatpush2.msra.mxu0 0.0
    %1291 = vmatprep.subr.mxu0 0.0
    %1292 = vmatpush2.msra.mxu0 0.0
    %1293 = vmatprep.subr.mxu0 0.0
    %1294 = vmatpush2.msra.mxu0 0.0
    %1295 = vmatprep.subr.mxu0 0.0
    %1296 = vmatpush2.msra.mxu0 0.0
    %1297 = vmatprep.subr.mxu0 0.0
    %1298 = vmatpush2.msra.mxu0 0.0
    %1299 = vmatprep.subr.mxu0 0.0
    %1300 = vmatpush2.msra.mxu0 0.0
    %1301 = vmatprep.mubr.f32.mxu0 0.0
    %1302 = vmatmul.mubr.f32.gmra.mxu0 %v1165
    %v1303 = vpop.f32.mrf.mxu0
    %v1304 = vadd.f32 0.0, %v1303
    %v1305 = vpop.f32.mrf.mxu0
    %v1306 = vadd.f32 0.0, %v1305
    %1307 = vdwg.mxu0
    %1308 = vmatprep.subr.mxu0 %v1236
    %1309 = vmatpush1.msra.mxu0 %v1235
    %1310 = vmatprep.subr.mxu0 %v1232
    %1311 = vmatpush1.msra.mxu0 %v1231
    %1312 = vmatprep.subr.mxu0 %v1228
    %1313 = vmatpush1.msra.mxu0 %v1227
    %1314 = vmatprep.subr.mxu0 %v1224
    %1315 = vmatpush1.msra.mxu0 %v1223
    %1316 = vmatprep.subr.mxu0 %v1220
    %1317 = vmatpush1.msra.mxu0 %v1219
    %1318 = vmatprep.subr.mxu0 %v1216
    %1319 = vmatpush1.msra.mxu0 %v1215
    %1320 = vmatprep.subr.mxu0 %v1212
    %1321 = vmatpush1.msra.mxu0 %v1211
    %1322 = vmatprep.subr.mxu0 %v1208
    %1323 = vmatpush1.msra.mxu0 %v1207
    %1324 = vmatprep.subr.mxu0 %v1204
    %1325 = vmatpush1.msra.mxu0 %v1203
    %1326 = vmatprep.subr.mxu0 %v1200
    %1327 = vmatpush1.msra.mxu0 %v1199
    %1328 = vmatprep.subr.mxu0 %v1196
    %1329 = vmatpush1.msra.mxu0 %v1195
    %1330 = vmatprep.subr.mxu0 %v1192
    %1331 = vmatpush1.msra.mxu0 %v1191
    %1332 = vmatprep.subr.mxu0 %v1188
    %1333 = vmatpush1.msra.mxu0 %v1187
    %1334 = vmatprep.subr.mxu0 %v1184
    %1335 = vmatpush1.msra.mxu0 %v1183
    %1336 = vmatprep.subr.mxu0 %v1180
    %1337 = vmatpush1.msra.mxu0 %v1179
    %1338 = vmatprep.subr.mxu0 %v1176
    %1339 = vmatpush1.msra.mxu0 %v1175
    %1340 = vmatprep.subr.mxu0 0.0
    %1341 = vmatpush2.msra.mxu0 0.0
    %1342 = vmatprep.subr.mxu0 0.0
    %1343 = vmatpush2.msra.mxu0 0.0
    %1344 = vmatprep.subr.mxu0 0.0
    %1345 = vmatpush2.msra.mxu0 0.0
    %1346 = vmatprep.subr.mxu0 0.0
    %1347 = vmatpush2.msra.mxu0 0.0
    %1348 = vmatprep.subr.mxu0 0.0
    %1349 = vmatpush2.msra.mxu0 0.0
    %1350 = vmatprep.subr.mxu0 0.0
    %1351 = vmatpush2.msra.mxu0 0.0
    %1352 = vmatprep.subr.mxu0 0.0
    %1353 = vmatpush2.msra.mxu0 0.0
    %1354 = vmatprep.subr.mxu0 0.0
    %1355 = vmatpush2.msra.mxu0 0.0
    %1356 = vmatprep.subr.mxu0 0.0
    %1357 = vmatpush2.msra.mxu0 0.0
    %1358 = vmatprep.subr.mxu0 0.0
    %1359 = vmatpush2.msra.mxu0 0.0
    %1360 = vmatprep.subr.mxu0 0.0
    %1361 = vmatpush2.msra.mxu0 0.0
    %1362 = vmatprep.subr.mxu0 0.0
    %1363 = vmatpush2.msra.mxu0 0.0
    %1364 = vmatprep.subr.mxu0 0.0
    %1365 = vmatpush2.msra.mxu0 0.0
    %1366 = vmatprep.subr.mxu0 0.0
    %1367 = vmatpush2.msra.mxu0 0.0
    %1368 = vmatprep.subr.mxu0 0.0
    %1369 = vmatpush2.msra.mxu0 0.0
    %1370 = vmatprep.subr.mxu0 0.0
    %1371 = vmatpush2.msra.mxu0 0.0
    %1372 = vmatprep.mubr.f32.mxu0 0.0
    %1373 = vmatmul.mubr.f32.gmra.mxu0 %v1165
    %v1374 = vpop.f32.mrf.mxu0
    %v1375 = vadd.f32 0.0, %v1374
    %v1376 = vpop.f32.mrf.mxu0
    %v1377 = vadd.f32 0.0, %v1376
    %1378 = vdwg.mxu0
    %v1379 = vadd.f32 %v1169, %v1304
    %v1380 = vadd.f32 %v1170, %v1306
    %v1381 = vadd.f32 %v1171, %v1375
    %v1382 = vadd.f32 %v1172, %v1377
    %v1383 = vxor.u32 %v1379, 2147483648
    %v1384 = vmul.f32 %v1383, 1.442695
    %v1385 = vpow.pop %v1384
    %v1386 = vadd.f32 %v1385, 1.0
    %v1387 = vrcp.pop %v1386
    %v1388 = vmul.f32 1.0, %v1387
    %v1389 = vxor.u32 %v1380, 2147483648
    %v1390 = vmul.f32 %v1389, 1.442695
    %v1391 = vpow.pop %v1390
    %v1392 = vadd.f32 %v1391, 1.0
    %v1393 = vrcp.pop %v1392
    %v1394 = vmul.f32 1.0, %v1393
    %v1395 = vtanh.pop %v1381
    %v1396 = vxor.u32 %v1382, 2147483648
    %v1397 = vmul.f32 %v1396, 1.442695
    %v1398 = vpow.pop %v1397
    %v1399 = vadd.f32 %v1398, 1.0
    %v1400 = vrcp.pop %v1399
    %v1401 = vmul.f32 1.0, %v1400
    %v1402 = vmul.f32 %v1394, %v1163
    %v1403 = vmul.f32 %v1388, %v1395
    %v1404 = vadd.f32 %v1402, %v1403
    %v1405 = vtanh.pop %v1404
    %v1406 = vmul.f32 %v1401, %v1405
    %s1407 = scalar_lea.vmem [#allocation3], 24
    %1408 = vst [vmem:[%s1407] sm:$0xff] %v1406
    %s1409 = scalar_lea.vmem [#allocation2], 128
    %v1410 = vld [vmem:[%s1409] sm:$0xff]
    %v1411 = vld [vmem:[%s1409 + $0x8] sm:$0xff]
    %v1412 = vld [vmem:[%s1409 + $0x10] sm:$0xff]
    %v1413 = vld [vmem:[%s1409 + $0x18] sm:$0xff]
    %v1414 = vld [vmem:[#allocation9] sm:$0xff]
    %v1415 = vld [vmem:[#allocation9 + $0x8] sm:$0xff]
    %v1416 = vld [vmem:[#allocation9 + $0x10] sm:$0xff]
    %v1417 = vld [vmem:[#allocation9 + $0x18] sm:$0xff]
    %v1418 = vld [vmem:[#allocation9 + $0x20] sm:$0xff]
    %v1419 = vld [vmem:[#allocation9 + $0x28] sm:$0xff]
    %v1420 = vld [vmem:[#allocation9 + $0x30] sm:$0xff]
    %v1421 = vld [vmem:[#allocation9 + $0x38] sm:$0xff]
    %v1422 = vld [vmem:[#allocation9 + $0x40] sm:$0xff]
    %v1423 = vld [vmem:[#allocation9 + $0x48] sm:$0xff]
    %v1424 = vld [vmem:[#allocation9 + $0x50] sm:$0xff]
    %v1425 = vld [vmem:[#allocation9 + $0x58] sm:$0xff]
    %v1426 = vld [vmem:[#allocation9 + $0x60] sm:$0xff]
    %v1427 = vld [vmem:[#allocation9 + $0x68] sm:$0xff]
    %v1428 = vld [vmem:[#allocation9 + $0x70] sm:$0xff]
    %v1429 = vld [vmem:[#allocation9 + $0x78] sm:$0xff]
    %v1430 = vld [vmem:[#allocation9 + $0x80] sm:$0xff]
    %v1431 = vld [vmem:[#allocation9 + $0x88] sm:$0xff]
    %v1432 = vld [vmem:[#allocation9 + $0x90] sm:$0xff]
    %v1433 = vld [vmem:[#allocation9 + $0x98] sm:$0xff]
    %v1434 = vld [vmem:[#allocation9 + $0xa0] sm:$0xff]
    %v1435 = vld [vmem:[#allocation9 + $0xa8] sm:$0xff]
    %v1436 = vld [vmem:[#allocation9 + $0xb0] sm:$0xff]
    %v1437 = vld [vmem:[#allocation9 + $0xb8] sm:$0xff]
    %v1438 = vld [vmem:[#allocation9 + $0xc0] sm:$0xff]
    %v1439 = vld [vmem:[#allocation9 + $0xc8] sm:$0xff]
    %v1440 = vld [vmem:[#allocation9 + $0xd0] sm:$0xff]
    %v1441 = vld [vmem:[#allocation9 + $0xd8] sm:$0xff]
    %v1442 = vld [vmem:[#allocation9 + $0xe0] sm:$0xff]
    %v1443 = vld [vmem:[#allocation9 + $0xe8] sm:$0xff]
    %v1444 = vld [vmem:[#allocation9 + $0xf0] sm:$0xff]
    %v1445 = vld [vmem:[#allocation9 + $0xf8] sm:$0xff]
    %v1446 = vld [vmem:[#allocation9 + $0x100] sm:$0xff]
    %v1447 = vld [vmem:[#allocation9 + $0x108] sm:$0xff]
    %v1448 = vld [vmem:[#allocation9 + $0x110] sm:$0xff]
    %v1449 = vld [vmem:[#allocation9 + $0x118] sm:$0xff]
    %v1450 = vld [vmem:[#allocation9 + $0x120] sm:$0xff]
    %v1451 = vld [vmem:[#allocation9 + $0x128] sm:$0xff]
    %v1452 = vld [vmem:[#allocation9 + $0x130] sm:$0xff]
    %v1453 = vld [vmem:[#allocation9 + $0x138] sm:$0xff]
    %v1454 = vld [vmem:[#allocation9 + $0x140] sm:$0xff]
    %v1455 = vld [vmem:[#allocation9 + $0x148] sm:$0xff]
    %v1456 = vld [vmem:[#allocation9 + $0x150] sm:$0xff]
    %v1457 = vld [vmem:[#allocation9 + $0x158] sm:$0xff]
    %v1458 = vld [vmem:[#allocation9 + $0x160] sm:$0xff]
    %v1459 = vld [vmem:[#allocation9 + $0x168] sm:$0xff]
    %v1460 = vld [vmem:[#allocation9 + $0x170] sm:$0xff]
    %v1461 = vld [vmem:[#allocation9 + $0x178] sm:$0xff]
    %v1462 = vld [vmem:[#allocation9 + $0x180] sm:$0xff]
    %v1463 = vld [vmem:[#allocation9 + $0x188] sm:$0xff]
    %v1464 = vld [vmem:[#allocation9 + $0x190] sm:$0xff]
    %v1465 = vld [vmem:[#allocation9 + $0x198] sm:$0xff]
    %v1466 = vld [vmem:[#allocation9 + $0x1a0] sm:$0xff]
    %v1467 = vld [vmem:[#allocation9 + $0x1a8] sm:$0xff]
    %v1468 = vld [vmem:[#allocation9 + $0x1b0] sm:$0xff]
    %v1469 = vld [vmem:[#allocation9 + $0x1b8] sm:$0xff]
    %v1470 = vld [vmem:[#allocation9 + $0x1c0] sm:$0xff]
    %v1471 = vld [vmem:[#allocation9 + $0x1c8] sm:$0xff]
    %v1472 = vld [vmem:[#allocation9 + $0x1d0] sm:$0xff]
    %v1473 = vld [vmem:[#allocation9 + $0x1d8] sm:$0xff]
    %v1474 = vld [vmem:[#allocation9 + $0x1e0] sm:$0xff]
    %v1475 = vld [vmem:[#allocation9 + $0x1e8] sm:$0xff]
    %v1476 = vld [vmem:[#allocation9 + $0x1f0] sm:$0xff]
    %v1477 = vld [vmem:[#allocation9 + $0x1f8] sm:$0xff]
    %1478 = vmatprep.subr.mxu0 %v1475
    %1479 = vmatpush1.msra.mxu0 %v1474
    %1480 = vmatprep.subr.mxu0 %v1471
    %1481 = vmatpush1.msra.mxu0 %v1470
    %1482 = vmatprep.subr.mxu0 %v1467
    %1483 = vmatpush1.msra.mxu0 %v1466
    %1484 = vmatprep.subr.mxu0 %v1463
    %1485 = vmatpush1.msra.mxu0 %v1462
    %1486 = vmatprep.subr.mxu0 %v1459
    %1487 = vmatpush1.msra.mxu0 %v1458
    %1488 = vmatprep.subr.mxu0 %v1455
    %1489 = vmatpush1.msra.mxu0 %v1454
    %1490 = vmatprep.subr.mxu0 %v1451
    %1491 = vmatpush1.msra.mxu0 %v1450
    %1492 = vmatprep.subr.mxu0 %v1447
    %1493 = vmatpush1.msra.mxu0 %v1446
    %1494 = vmatprep.subr.mxu0 %v1443
    %1495 = vmatpush1.msra.mxu0 %v1442
    %1496 = vmatprep.subr.mxu0 %v1439
    %1497 = vmatpush1.msra.mxu0 %v1438
    %1498 = vmatprep.subr.mxu0 %v1435
    %1499 = vmatpush1.msra.mxu0 %v1434
    %1500 = vmatprep.subr.mxu0 %v1431
    %1501 = vmatpush1.msra.mxu0 %v1430
    %1502 = vmatprep.subr.mxu0 %v1427
    %1503 = vmatpush1.msra.mxu0 %v1426
    %1504 = vmatprep.subr.mxu0 %v1423
    %1505 = vmatpush1.msra.mxu0 %v1422
    %1506 = vmatprep.subr.mxu0 %v1419
    %1507 = vmatpush1.msra.mxu0 %v1418
    %1508 = vmatprep.subr.mxu0 %v1415
    %1509 = vmatpush1.msra.mxu0 %v1414
    %1510 = vmatprep.subr.mxu0 0.0
    %1511 = vmatpush2.msra.mxu0 0.0
    %1512 = vmatprep.subr.mxu0 0.0
    %1513 = vmatpush2.msra.mxu0 0.0
    %1514 = vmatprep.subr.mxu0 0.0
    %1515 = vmatpush2.msra.mxu0 0.0
    %1516 = vmatprep.subr.mxu0 0.0
    %1517 = vmatpush2.msra.mxu0 0.0
    %1518 = vmatprep.subr.mxu0 0.0
    %1519 = vmatpush2.msra.mxu0 0.0
    %1520 = vmatprep.subr.mxu0 0.0
    %1521 = vmatpush2.msra.mxu0 0.0
    %1522 = vmatprep.subr.mxu0 0.0
    %1523 = vmatpush2.msra.mxu0 0.0
    %1524 = vmatprep.subr.mxu0 0.0
    %1525 = vmatpush2.msra.mxu0 0.0
    %1526 = vmatprep.subr.mxu0 0.0
    %1527 = vmatpush2.msra.mxu0 0.0
    %1528 = vmatprep.subr.mxu0 0.0
    %1529 = vmatpush2.msra.mxu0 0.0
    %1530 = vmatprep.subr.mxu0 0.0
    %1531 = vmatpush2.msra.mxu0 0.0
    %1532 = vmatprep.subr.mxu0 0.0
    %1533 = vmatpush2.msra.mxu0 0.0
    %1534 = vmatprep.subr.mxu0 0.0
    %1535 = vmatpush2.msra.mxu0 0.0
    %1536 = vmatprep.subr.mxu0 0.0
    %1537 = vmatpush2.msra.mxu0 0.0
    %1538 = vmatprep.subr.mxu0 0.0
    %1539 = vmatpush2.msra.mxu0 0.0
    %1540 = vmatprep.subr.mxu0 0.0
    %1541 = vmatpush2.msra.mxu0 0.0
    %1542 = vmatprep.mubr.f32.mxu0 0.0
    %1543 = vmatmul.mubr.f32.gmra.mxu0 %v1406
    %v1544 = vpop.f32.mrf.mxu0
    %v1545 = vadd.f32 0.0, %v1544
    %v1546 = vpop.f32.mrf.mxu0
    %v1547 = vadd.f32 0.0, %v1546
    %1548 = vdwg.mxu0
    %1549 = vmatprep.subr.mxu0 %v1477
    %1550 = vmatpush1.msra.mxu0 %v1476
    %1551 = vmatprep.subr.mxu0 %v1473
    %1552 = vmatpush1.msra.mxu0 %v1472
    %1553 = vmatprep.subr.mxu0 %v1469
    %1554 = vmatpush1.msra.mxu0 %v1468
    %1555 = vmatprep.subr.mxu0 %v1465
    %1556 = vmatpush1.msra.mxu0 %v1464
    %1557 = vmatprep.subr.mxu0 %v1461
    %1558 = vmatpush1.msra.mxu0 %v1460
    %1559 = vmatprep.subr.mxu0 %v1457
    %1560 = vmatpush1.msra.mxu0 %v1456
    %1561 = vmatprep.subr.mxu0 %v1453
    %1562 = vmatpush1.msra.mxu0 %v1452
    %1563 = vmatprep.subr.mxu0 %v1449
    %1564 = vmatpush1.msra.mxu0 %v1448
    %1565 = vmatprep.subr.mxu0 %v1445
    %1566 = vmatpush1.msra.mxu0 %v1444
    %1567 = vmatprep.subr.mxu0 %v1441
    %1568 = vmatpush1.msra.mxu0 %v1440
    %1569 = vmatprep.subr.mxu0 %v1437
    %1570 = vmatpush1.msra.mxu0 %v1436
    %1571 = vmatprep.subr.mxu0 %v1433
    %1572 = vmatpush1.msra.mxu0 %v1432
    %1573 = vmatprep.subr.mxu0 %v1429
    %1574 = vmatpush1.msra.mxu0 %v1428
    %1575 = vmatprep.subr.mxu0 %v1425
    %1576 = vmatpush1.msra.mxu0 %v1424
    %1577 = vmatprep.subr.mxu0 %v1421
    %1578 = vmatpush1.msra.mxu0 %v1420
    %1579 = vmatprep.subr.mxu0 %v1417
    %1580 = vmatpush1.msra.mxu0 %v1416
    %1581 = vmatprep.subr.mxu0 0.0
    %1582 = vmatpush2.msra.mxu0 0.0
    %1583 = vmatprep.subr.mxu0 0.0
    %1584 = vmatpush2.msra.mxu0 0.0
    %1585 = vmatprep.subr.mxu0 0.0
    %1586 = vmatpush2.msra.mxu0 0.0
    %1587 = vmatprep.subr.mxu0 0.0
    %1588 = vmatpush2.msra.mxu0 0.0
    %1589 = vmatprep.subr.mxu0 0.0
    %1590 = vmatpush2.msra.mxu0 0.0
    %1591 = vmatprep.subr.mxu0 0.0
    %1592 = vmatpush2.msra.mxu0 0.0
    %1593 = vmatprep.subr.mxu0 0.0
    %1594 = vmatpush2.msra.mxu0 0.0
    %1595 = vmatprep.subr.mxu0 0.0
    %1596 = vmatpush2.msra.mxu0 0.0
    %1597 = vmatprep.subr.mxu0 0.0
    %1598 = vmatpush2.msra.mxu0 0.0
    %1599 = vmatprep.subr.mxu0 0.0
    %1600 = vmatpush2.msra.mxu0 0.0
    %1601 = vmatprep.subr.mxu0 0.0
    %1602 = vmatpush2.msra.mxu0 0.0
    %1603 = vmatprep.subr.mxu0 0.0
    %1604 = vmatpush2.msra.mxu0 0.0
    %1605 = vmatprep.subr.mxu0 0.0
    %1606 = vmatpush2.msra.mxu0 0.0
    %1607 = vmatprep.subr.mxu0 0.0
    %1608 = vmatpush2.msra.mxu0 0.0
    %1609 = vmatprep.subr.mxu0 0.0
    %1610 = vmatpush2.msra.mxu0 0.0
    %1611 = vmatprep.subr.mxu0 0.0
    %1612 = vmatpush2.msra.mxu0 0.0
    %1613 = vmatprep.mubr.f32.mxu0 0.0
    %1614 = vmatmul.mubr.f32.gmra.mxu0 %v1406
    %v1615 = vpop.f32.mrf.mxu0
    %v1616 = vadd.f32 0.0, %v1615
    %v1617 = vpop.f32.mrf.mxu0
    %v1618 = vadd.f32 0.0, %v1617
    %1619 = vdwg.mxu0
    %v1620 = vadd.f32 %v1410, %v1545
    %v1621 = vadd.f32 %v1411, %v1547
    %v1622 = vadd.f32 %v1412, %v1616
    %v1623 = vadd.f32 %v1413, %v1618
    %v1624 = vxor.u32 %v1620, 2147483648
    %v1625 = vmul.f32 %v1624, 1.442695
    %v1626 = vpow.pop %v1625
    %v1627 = vadd.f32 %v1626, 1.0
    %v1628 = vrcp.pop %v1627
    %v1629 = vmul.f32 1.0, %v1628
    %v1630 = vxor.u32 %v1621, 2147483648
    %v1631 = vmul.f32 %v1630, 1.442695
    %v1632 = vpow.pop %v1631
    %v1633 = vadd.f32 %v1632, 1.0
    %v1634 = vrcp.pop %v1633
    %v1635 = vmul.f32 1.0, %v1634
    %v1636 = vtanh.pop %v1622
    %v1637 = vxor.u32 %v1623, 2147483648
    %v1638 = vmul.f32 %v1637, 1.442695
    %v1639 = vpow.pop %v1638
    %v1640 = vadd.f32 %v1639, 1.0
    %v1641 = vrcp.pop %v1640
    %v1642 = vmul.f32 1.0, %v1641
    %v1643 = vmul.f32 %v1635, %v1404
    %v1644 = vmul.f32 %v1629, %v1636
    %v1645 = vadd.f32 %v1643, %v1644
    %v1646 = vtanh.pop %v1645
    %v1647 = vmul.f32 %v1642, %v1646
    %s1648 = scalar_lea.vmem [#allocation3], 32
    %1649 = vst [vmem:[%s1648] sm:$0xff] %v1647
    %s1650 = scalar_lea.vmem [#allocation2], 160
    %v1651 = vld [vmem:[%s1650] sm:$0xff]
    %v1652 = vld [vmem:[%s1650 + $0x8] sm:$0xff]
    %v1653 = vld [vmem:[%s1650 + $0x10] sm:$0xff]
    %v1654 = vld [vmem:[%s1650 + $0x18] sm:$0xff]
    %v1655 = vld [vmem:[#allocation9] sm:$0xff]
    %v1656 = vld [vmem:[#allocation9 + $0x8] sm:$0xff]
    %v1657 = vld [vmem:[#allocation9 + $0x10] sm:$0xff]
    %v1658 = vld [vmem:[#allocation9 + $0x18] sm:$0xff]
    %v1659 = vld [vmem:[#allocation9 + $0x20] sm:$0xff]
    %v1660 = vld [vmem:[#allocation9 + $0x28] sm:$0xff]
    %v1661 = vld [vmem:[#allocation9 + $0x30] sm:$0xff]
    %v1662 = vld [vmem:[#allocation9 + $0x38] sm:$0xff]
    %v1663 = vld [vmem:[#allocation9 + $0x40] sm:$0xff]
    %v1664 = vld [vmem:[#allocation9 + $0x48] sm:$0xff]
    %v1665 = vld [vmem:[#allocation9 + $0x50] sm:$0xff]
    %v1666 = vld [vmem:[#allocation9 + $0x58] sm:$0xff]
    %v1667 = vld [vmem:[#allocation9 + $0x60] sm:$0xff]
    %v1668 = vld [vmem:[#allocation9 + $0x68] sm:$0xff]
    %v1669 = vld [vmem:[#allocation9 + $0x70] sm:$0xff]
    %v1670 = vld [vmem:[#allocation9 + $0x78] sm:$0xff]
    %v1671 = vld [vmem:[#allocation9 + $0x80] sm:$0xff]
    %v1672 = vld [vmem:[#allocation9 + $0x88] sm:$0xff]
    %v1673 = vld [vmem:[#allocation9 + $0x90] sm:$0xff]
    %v1674 = vld [vmem:[#allocation9 + $0x98] sm:$0xff]
    %v1675 = vld [vmem:[#allocation9 + $0xa0] sm:$0xff]
    %v1676 = vld [vmem:[#allocation9 + $0xa8] sm:$0xff]
    %v1677 = vld [vmem:[#allocation9 + $0xb0] sm:$0xff]
    %v1678 = vld [vmem:[#allocation9 + $0xb8] sm:$0xff]
    %v1679 = vld [vmem:[#allocation9 + $0xc0] sm:$0xff]
    %v1680 = vld [vmem:[#allocation9 + $0xc8] sm:$0xff]
    %v1681 = vld [vmem:[#allocation9 + $0xd0] sm:$0xff]
    %v1682 = vld [vmem:[#allocation9 + $0xd8] sm:$0xff]
    %v1683 = vld [vmem:[#allocation9 + $0xe0] sm:$0xff]
    %v1684 = vld [vmem:[#allocation9 + $0xe8] sm:$0xff]
    %v1685 = vld [vmem:[#allocation9 + $0xf0] sm:$0xff]
    %v1686 = vld [vmem:[#allocation9 + $0xf8] sm:$0xff]
    %v1687 = vld [vmem:[#allocation9 + $0x100] sm:$0xff]
    %v1688 = vld [vmem:[#allocation9 + $0x108] sm:$0xff]
    %v1689 = vld [vmem:[#allocation9 + $0x110] sm:$0xff]
    %v1690 = vld [vmem:[#allocation9 + $0x118] sm:$0xff]
    %v1691 = vld [vmem:[#allocation9 + $0x120] sm:$0xff]
    %v1692 = vld [vmem:[#allocation9 + $0x128] sm:$0xff]
    %v1693 = vld [vmem:[#allocation9 + $0x130] sm:$0xff]
    %v1694 = vld [vmem:[#allocation9 + $0x138] sm:$0xff]
    %v1695 = vld [vmem:[#allocation9 + $0x140] sm:$0xff]
    %v1696 = vld [vmem:[#allocation9 + $0x148] sm:$0xff]
    %v1697 = vld [vmem:[#allocation9 + $0x150] sm:$0xff]
    %v1698 = vld [vmem:[#allocation9 + $0x158] sm:$0xff]
    %v1699 = vld [vmem:[#allocation9 + $0x160] sm:$0xff]
    %v1700 = vld [vmem:[#allocation9 + $0x168] sm:$0xff]
    %v1701 = vld [vmem:[#allocation9 + $0x170] sm:$0xff]
    %v1702 = vld [vmem:[#allocation9 + $0x178] sm:$0xff]
    %v1703 = vld [vmem:[#allocation9 + $0x180] sm:$0xff]
    %v1704 = vld [vmem:[#allocation9 + $0x188] sm:$0xff]
    %v1705 = vld [vmem:[#allocation9 + $0x190] sm:$0xff]
    %v1706 = vld [vmem:[#allocation9 + $0x198] sm:$0xff]
    %v1707 = vld [vmem:[#allocation9 + $0x1a0] sm:$0xff]
    %v1708 = vld [vmem:[#allocation9 + $0x1a8] sm:$0xff]
    %v1709 = vld [vmem:[#allocation9 + $0x1b0] sm:$0xff]
    %v1710 = vld [vmem:[#allocation9 + $0x1b8] sm:$0xff]
    %v1711 = vld [vmem:[#allocation9 + $0x1c0] sm:$0xff]
    %v1712 = vld [vmem:[#allocation9 + $0x1c8] sm:$0xff]
    %v1713 = vld [vmem:[#allocation9 + $0x1d0] sm:$0xff]
    %v1714 = vld [vmem:[#allocation9 + $0x1d8] sm:$0xff]
    %v1715 = vld [vmem:[#allocation9 + $0x1e0] sm:$0xff]
    %v1716 = vld [vmem:[#allocation9 + $0x1e8] sm:$0xff]
    %v1717 = vld [vmem:[#allocation9 + $0x1f0] sm:$0xff]
    %v1718 = vld [vmem:[#allocation9 + $0x1f8] sm:$0xff]
    %1719 = vmatprep.subr.mxu0 %v1716
    %1720 = vmatpush1.msra.mxu0 %v1715
    %1721 = vmatprep.subr.mxu0 %v1712
    %1722 = vmatpush1.msra.mxu0 %v1711
    %1723 = vmatprep.subr.mxu0 %v1708
    %1724 = vmatpush1.msra.mxu0 %v1707
    %1725 = vmatprep.subr.mxu0 %v1704
    %1726 = vmatpush1.msra.mxu0 %v1703
    %1727 = vmatprep.subr.mxu0 %v1700
    %1728 = vmatpush1.msra.mxu0 %v1699
    %1729 = vmatprep.subr.mxu0 %v1696
    %1730 = vmatpush1.msra.mxu0 %v1695
    %1731 = vmatprep.subr.mxu0 %v1692
    %1732 = vmatpush1.msra.mxu0 %v1691
    %1733 = vmatprep.subr.mxu0 %v1688
    %1734 = vmatpush1.msra.mxu0 %v1687
    %1735 = vmatprep.subr.mxu0 %v1684
    %1736 = vmatpush1.msra.mxu0 %v1683
    %1737 = vmatprep.subr.mxu0 %v1680
    %1738 = vmatpush1.msra.mxu0 %v1679
    %1739 = vmatprep.subr.mxu0 %v1676
    %1740 = vmatpush1.msra.mxu0 %v1675
    %1741 = vmatprep.subr.mxu0 %v1672
    %1742 = vmatpush1.msra.mxu0 %v1671
    %1743 = vmatprep.subr.mxu0 %v1668
    %1744 = vmatpush1.msra.mxu0 %v1667
    %1745 = vmatprep.subr.mxu0 %v1664
    %1746 = vmatpush1.msra.mxu0 %v1663
    %1747 = vmatprep.subr.mxu0 %v1660
    %1748 = vmatpush1.msra.mxu0 %v1659
    %1749 = vmatprep.subr.mxu0 %v1656
    %1750 = vmatpush1.msra.mxu0 %v1655
    %1751 = vmatprep.subr.mxu0 0.0
    %1752 = vmatpush2.msra.mxu0 0.0
    %1753 = vmatprep.subr.mxu0 0.0
    %1754 = vmatpush2.msra.mxu0 0.0
    %1755 = vmatprep.subr.mxu0 0.0
    %1756 = vmatpush2.msra.mxu0 0.0
    %1757 = vmatprep.subr.mxu0 0.0
    %1758 = vmatpush2.msra.mxu0 0.0
    %1759 = vmatprep.subr.mxu0 0.0
    %1760 = vmatpush2.msra.mxu0 0.0
    %1761 = vmatprep.subr.mxu0 0.0
    %1762 = vmatpush2.msra.mxu0 0.0
    %1763 = vmatprep.subr.mxu0 0.0
    %1764 = vmatpush2.msra.mxu0 0.0
    %1765 = vmatprep.subr.mxu0 0.0
    %1766 = vmatpush2.msra.mxu0 0.0
    %1767 = vmatprep.subr.mxu0 0.0
    %1768 = vmatpush2.msra.mxu0 0.0
    %1769 = vmatprep.subr.mxu0 0.0
    %1770 = vmatpush2.msra.mxu0 0.0
    %1771 = vmatprep.subr.mxu0 0.0
    %1772 = vmatpush2.msra.mxu0 0.0
    %1773 = vmatprep.subr.mxu0 0.0
    %1774 = vmatpush2.msra.mxu0 0.0
    %1775 = vmatprep.subr.mxu0 0.0
    %1776 = vmatpush2.msra.mxu0 0.0
    %1777 = vmatprep.subr.mxu0 0.0
    %1778 = vmatpush2.msra.mxu0 0.0
    %1779 = vmatprep.subr.mxu0 0.0
    %1780 = vmatpush2.msra.mxu0 0.0
    %1781 = vmatprep.subr.mxu0 0.0
    %1782 = vmatpush2.msra.mxu0 0.0
    %1783 = vmatprep.mubr.f32.mxu0 0.0
    %1784 = vmatmul.mubr.f32.gmra.mxu0 %v1647
    %v1785 = vpop.f32.mrf.mxu0
    %v1786 = vadd.f32 0.0, %v1785
    %v1787 = vpop.f32.mrf.mxu0
    %v1788 = vadd.f32 0.0, %v1787
    %1789 = vdwg.mxu0
    %1790 = vmatprep.subr.mxu0 %v1718
    %1791 = vmatpush1.msra.mxu0 %v1717
    %1792 = vmatprep.subr.mxu0 %v1714
    %1793 = vmatpush1.msra.mxu0 %v1713
    %1794 = vmatprep.subr.mxu0 %v1710
    %1795 = vmatpush1.msra.mxu0 %v1709
    %1796 = vmatprep.subr.mxu0 %v1706
    %1797 = vmatpush1.msra.mxu0 %v1705
    %1798 = vmatprep.subr.mxu0 %v1702
    %1799 = vmatpush1.msra.mxu0 %v1701
    %1800 = vmatprep.subr.mxu0 %v1698
    %1801 = vmatpush1.msra.mxu0 %v1697
    %1802 = vmatprep.subr.mxu0 %v1694
    %1803 = vmatpush1.msra.mxu0 %v1693
    %1804 = vmatprep.subr.mxu0 %v1690
    %1805 = vmatpush1.msra.mxu0 %v1689
    %1806 = vmatprep.subr.mxu0 %v1686
    %1807 = vmatpush1.msra.mxu0 %v1685
    %1808 = vmatprep.subr.mxu0 %v1682
    %1809 = vmatpush1.msra.mxu0 %v1681
    %1810 = vmatprep.subr.mxu0 %v1678
    %1811 = vmatpush1.msra.mxu0 %v1677
    %1812 = vmatprep.subr.mxu0 %v1674
    %1813 = vmatpush1.msra.mxu0 %v1673
    %1814 = vmatprep.subr.mxu0 %v1670
    %1815 = vmatpush1.msra.mxu0 %v1669
    %1816 = vmatprep.subr.mxu0 %v1666
    %1817 = vmatpush1.msra.mxu0 %v1665
    %1818 = vmatprep.subr.mxu0 %v1662
    %1819 = vmatpush1.msra.mxu0 %v1661
    %1820 = vmatprep.subr.mxu0 %v1658
    %1821 = vmatpush1.msra.mxu0 %v1657
    %1822 = vmatprep.subr.mxu0 0.0
    %1823 = vmatpush2.msra.mxu0 0.0
    %1824 = vmatprep.subr.mxu0 0.0
    %1825 = vmatpush2.msra.mxu0 0.0
    %1826 = vmatprep.subr.mxu0 0.0
    %1827 = vmatpush2.msra.mxu0 0.0
    %1828 = vmatprep.subr.mxu0 0.0
    %1829 = vmatpush2.msra.mxu0 0.0
    %1830 = vmatprep.subr.mxu0 0.0
    %1831 = vmatpush2.msra.mxu0 0.0
    %1832 = vmatprep.subr.mxu0 0.0
    %1833 = vmatpush2.msra.mxu0 0.0
    %1834 = vmatprep.subr.mxu0 0.0
    %1835 = vmatpush2.msra.mxu0 0.0
    %1836 = vmatprep.subr.mxu0 0.0
    %1837 = vmatpush2.msra.mxu0 0.0
    %1838 = vmatprep.subr.mxu0 0.0
    %1839 = vmatpush2.msra.mxu0 0.0
    %1840 = vmatprep.subr.mxu0 0.0
    %1841 = vmatpush2.msra.mxu0 0.0
    %1842 = vmatprep.subr.mxu0 0.0
    %1843 = vmatpush2.msra.mxu0 0.0
    %1844 = vmatprep.subr.mxu0 0.0
    %1845 = vmatpush2.msra.mxu0 0.0
    %1846 = vmatprep.subr.mxu0 0.0
    %1847 = vmatpush2.msra.mxu0 0.0
    %1848 = vmatprep.subr.mxu0 0.0
    %1849 = vmatpush2.msra.mxu0 0.0
    %1850 = vmatprep.subr.mxu0 0.0
    %1851 = vmatpush2.msra.mxu0 0.0
    %1852 = vmatprep.subr.mxu0 0.0
    %1853 = vmatpush2.msra.mxu0 0.0
    %1854 = vmatprep.mubr.f32.mxu0 0.0
    %1855 = vmatmul.mubr.f32.gmra.mxu0 %v1647
    %v1856 = vpop.f32.mrf.mxu0
    %v1857 = vadd.f32 0.0, %v1856
    %v1858 = vpop.f32.mrf.mxu0
    %v1859 = vadd.f32 0.0, %v1858
    %1860 = vdwg.mxu0
    %v1861 = vadd.f32 %v1651, %v1786
    %v1862 = vadd.f32 %v1652, %v1788
    %v1863 = vadd.f32 %v1653, %v1857
    %v1864 = vadd.f32 %v1654, %v1859
    %v1865 = vxor.u32 %v1861, 2147483648
    %v1866 = vmul.f32 %v1865, 1.442695
    %v1867 = vpow.pop %v1866
    %v1868 = vadd.f32 %v1867, 1.0
    %v1869 = vrcp.pop %v1868
    %v1870 = vmul.f32 1.0, %v1869
    %v1871 = vxor.u32 %v1862, 2147483648
    %v1872 = vmul.f32 %v1871, 1.442695
    %v1873 = vpow.pop %v1872
    %v1874 = vadd.f32 %v1873, 1.0
    %v1875 = vrcp.pop %v1874
    %v1876 = vmul.f32 1.0, %v1875
    %v1877 = vtanh.pop %v1863
    %v1878 = vxor.u32 %v1864, 2147483648
    %v1879 = vmul.f32 %v1878, 1.442695
    %v1880 = vpow.pop %v1879
    %v1881 = vadd.f32 %v1880, 1.0
    %v1882 = vrcp.pop %v1881
    %v1883 = vmul.f32 1.0, %v1882
    %v1884 = vmul.f32 %v1876, %v1645
    %v1885 = vmul.f32 %v1870, %v1877
    %v1886 = vadd.f32 %v1884, %v1885
    %v1887 = vtanh.pop %v1886
    %v1888 = vmul.f32 %v1883, %v1887
    %s1889 = scalar_lea.vmem [#allocation3], 40
    %1890 = vst [vmem:[%s1889] sm:$0xff] %v1888
    %s1891 = scalar_lea.vmem [#allocation2], 192
    %v1892 = vld [vmem:[%s1891] sm:$0xff]
    %v1893 = vld [vmem:[%s1891 + $0x8] sm:$0xff]
    %v1894 = vld [vmem:[%s1891 + $0x10] sm:$0xff]
    %v1895 = vld [vmem:[%s1891 + $0x18] sm:$0xff]
    %v1896 = vld [vmem:[#allocation9] sm:$0xff]
    %v1897 = vld [vmem:[#allocation9 + $0x8] sm:$0xff]
    %v1898 = vld [vmem:[#allocation9 + $0x10] sm:$0xff]
    %v1899 = vld [vmem:[#allocation9 + $0x18] sm:$0xff]
    %v1900 = vld [vmem:[#allocation9 + $0x20] sm:$0xff]
    %v1901 = vld [vmem:[#allocation9 + $0x28] sm:$0xff]
    %v1902 = vld [vmem:[#allocation9 + $0x30] sm:$0xff]
    %v1903 = vld [vmem:[#allocation9 + $0x38] sm:$0xff]
    %v1904 = vld [vmem:[#allocation9 + $0x40] sm:$0xff]
    %v1905 = vld [vmem:[#allocation9 + $0x48] sm:$0xff]
    %v1906 = vld [vmem:[#allocation9 + $0x50] sm:$0xff]
    %v1907 = vld [vmem:[#allocation9 + $0x58] sm:$0xff]
    %v1908 = vld [vmem:[#allocation9 + $0x60] sm:$0xff]
    %v1909 = vld [vmem:[#allocation9 + $0x68] sm:$0xff]
    %v1910 = vld [vmem:[#allocation9 + $0x70] sm:$0xff]
    %v1911 = vld [vmem:[#allocation9 + $0x78] sm:$0xff]
    %v1912 = vld [vmem:[#allocation9 + $0x80] sm:$0xff]
    %v1913 = vld [vmem:[#allocation9 + $0x88] sm:$0xff]
    %v1914 = vld [vmem:[#allocation9 + $0x90] sm:$0xff]
    %v1915 = vld [vmem:[#allocation9 + $0x98] sm:$0xff]
    %v1916 = vld [vmem:[#allocation9 + $0xa0] sm:$0xff]
    %v1917 = vld [vmem:[#allocation9 + $0xa8] sm:$0xff]
    %v1918 = vld [vmem:[#allocation9 + $0xb0] sm:$0xff]
    %v1919 = vld [vmem:[#allocation9 + $0xb8] sm:$0xff]
    %v1920 = vld [vmem:[#allocation9 + $0xc0] sm:$0xff]
    %v1921 = vld [vmem:[#allocation9 + $0xc8] sm:$0xff]
    %v1922 = vld [vmem:[#allocation9 + $0xd0] sm:$0xff]
    %v1923 = vld [vmem:[#allocation9 + $0xd8] sm:$0xff]
    %v1924 = vld [vmem:[#allocation9 + $0xe0] sm:$0xff]
    %v1925 = vld [vmem:[#allocation9 + $0xe8] sm:$0xff]
    %v1926 = vld [vmem:[#allocation9 + $0xf0] sm:$0xff]
    %v1927 = vld [vmem:[#allocation9 + $0xf8] sm:$0xff]
    %v1928 = vld [vmem:[#allocation9 + $0x100] sm:$0xff]
    %v1929 = vld [vmem:[#allocation9 + $0x108] sm:$0xff]
    %v1930 = vld [vmem:[#allocation9 + $0x110] sm:$0xff]
    %v1931 = vld [vmem:[#allocation9 + $0x118] sm:$0xff]
    %v1932 = vld [vmem:[#allocation9 + $0x120] sm:$0xff]
    %v1933 = vld [vmem:[#allocation9 + $0x128] sm:$0xff]
    %v1934 = vld [vmem:[#allocation9 + $0x130] sm:$0xff]
    %v1935 = vld [vmem:[#allocation9 + $0x138] sm:$0xff]
    %v1936 = vld [vmem:[#allocation9 + $0x140] sm:$0xff]
    %v1937 = vld [vmem:[#allocation9 + $0x148] sm:$0xff]
    %v1938 = vld [vmem:[#allocation9 + $0x150] sm:$0xff]
    %v1939 = vld [vmem:[#allocation9 + $0x158] sm:$0xff]
    %v1940 = vld [vmem:[#allocation9 + $0x160] sm:$0xff]
    %v1941 = vld [vmem:[#allocation9 + $0x168] sm:$0xff]
    %v1942 = vld [vmem:[#allocation9 + $0x170] sm:$0xff]
    %v1943 = vld [vmem:[#allocation9 + $0x178] sm:$0xff]
    %v1944 = vld [vmem:[#allocation9 + $0x180] sm:$0xff]
    %v1945 = vld [vmem:[#allocation9 + $0x188] sm:$0xff]
    %v1946 = vld [vmem:[#allocation9 + $0x190] sm:$0xff]
    %v1947 = vld [vmem:[#allocation9 + $0x198] sm:$0xff]
    %v1948 = vld [vmem:[#allocation9 + $0x1a0] sm:$0xff]
    %v1949 = vld [vmem:[#allocation9 + $0x1a8] sm:$0xff]
    %v1950 = vld [vmem:[#allocation9 + $0x1b0] sm:$0xff]
    %v1951 = vld [vmem:[#allocation9 + $0x1b8] sm:$0xff]
    %v1952 = vld [vmem:[#allocation9 + $0x1c0] sm:$0xff]
    %v1953 = vld [vmem:[#allocation9 + $0x1c8] sm:$0xff]
    %v1954 = vld [vmem:[#allocation9 + $0x1d0] sm:$0xff]
    %v1955 = vld [vmem:[#allocation9 + $0x1d8] sm:$0xff]
    %v1956 = vld [vmem:[#allocation9 + $0x1e0] sm:$0xff]
    %v1957 = vld [vmem:[#allocation9 + $0x1e8] sm:$0xff]
    %v1958 = vld [vmem:[#allocation9 + $0x1f0] sm:$0xff]
    %v1959 = vld [vmem:[#allocation9 + $0x1f8] sm:$0xff]
    %1960 = vmatprep.subr.mxu0 %v1957
    %1961 = vmatpush1.msra.mxu0 %v1956
    %1962 = vmatprep.subr.mxu0 %v1953
    %1963 = vmatpush1.msra.mxu0 %v1952
    %1964 = vmatprep.subr.mxu0 %v1949
    %1965 = vmatpush1.msra.mxu0 %v1948
    %1966 = vmatprep.subr.mxu0 %v1945
    %1967 = vmatpush1.msra.mxu0 %v1944
    %1968 = vmatprep.subr.mxu0 %v1941
    %1969 = vmatpush1.msra.mxu0 %v1940
    %1970 = vmatprep.subr.mxu0 %v1937
    %1971 = vmatpush1.msra.mxu0 %v1936
    %1972 = vmatprep.subr.mxu0 %v1933
    %1973 = vmatpush1.msra.mxu0 %v1932
    %1974 = vmatprep.subr.mxu0 %v1929
    %1975 = vmatpush1.msra.mxu0 %v1928
    %1976 = vmatprep.subr.mxu0 %v1925
    %1977 = vmatpush1.msra.mxu0 %v1924
    %1978 = vmatprep.subr.mxu0 %v1921
    %1979 = vmatpush1.msra.mxu0 %v1920
    %1980 = vmatprep.subr.mxu0 %v1917
    %1981 = vmatpush1.msra.mxu0 %v1916
    %1982 = vmatprep.subr.mxu0 %v1913
    %1983 = vmatpush1.msra.mxu0 %v1912
    %1984 = vmatprep.subr.mxu0 %v1909
    %1985 = vmatpush1.msra.mxu0 %v1908
    %1986 = vmatprep.subr.mxu0 %v1905
    %1987 = vmatpush1.msra.mxu0 %v1904
    %1988 = vmatprep.subr.mxu0 %v1901
    %1989 = vmatpush1.msra.mxu0 %v1900
    %1990 = vmatprep.subr.mxu0 %v1897
    %1991 = vmatpush1.msra.mxu0 %v1896
    %1992 = vmatprep.subr.mxu0 0.0
    %1993 = vmatpush2.msra.mxu0 0.0
    %1994 = vmatprep.subr.mxu0 0.0
    %1995 = vmatpush2.msra.mxu0 0.0
    %1996 = vmatprep.subr.mxu0 0.0
    %1997 = vmatpush2.msra.mxu0 0.0
    %1998 = vmatprep.subr.mxu0 0.0
    %1999 = vmatpush2.msra.mxu0 0.0
    %2000 = vmatprep.subr.mxu0 0.0
    %2001 = vmatpush2.msra.mxu0 0.0
    %2002 = vmatprep.subr.mxu0 0.0
    %2003 = vmatpush2.msra.mxu0 0.0
    %2004 = vmatprep.subr.mxu0 0.0
    %2005 = vmatpush2.msra.mxu0 0.0
    %2006 = vmatprep.subr.mxu0 0.0
    %2007 = vmatpush2.msra.mxu0 0.0
    %2008 = vmatprep.subr.mxu0 0.0
    %2009 = vmatpush2.msra.mxu0 0.0
    %2010 = vmatprep.subr.mxu0 0.0
    %2011 = vmatpush2.msra.mxu0 0.0
    %2012 = vmatprep.subr.mxu0 0.0
    %2013 = vmatpush2.msra.mxu0 0.0
    %2014 = vmatprep.subr.mxu0 0.0
    %2015 = vmatpush2.msra.mxu0 0.0
    %2016 = vmatprep.subr.mxu0 0.0
    %2017 = vmatpush2.msra.mxu0 0.0
    %2018 = vmatprep.subr.mxu0 0.0
    %2019 = vmatpush2.msra.mxu0 0.0
    %2020 = vmatprep.subr.mxu0 0.0
    %2021 = vmatpush2.msra.mxu0 0.0
    %2022 = vmatprep.subr.mxu0 0.0
    %2023 = vmatpush2.msra.mxu0 0.0
    %2024 = vmatprep.mubr.f32.mxu0 0.0
    %2025 = vmatmul.mubr.f32.gmra.mxu0 %v1888
    %v2026 = vpop.f32.mrf.mxu0
    %v2027 = vadd.f32 0.0, %v2026
    %v2028 = vpop.f32.mrf.mxu0
    %v2029 = vadd.f32 0.0, %v2028
    %2030 = vdwg.mxu0
    %2031 = vmatprep.subr.mxu0 %v1959
    %2032 = vmatpush1.msra.mxu0 %v1958
    %2033 = vmatprep.subr.mxu0 %v1955
    %2034 = vmatpush1.msra.mxu0 %v1954
    %2035 = vmatprep.subr.mxu0 %v1951
    %2036 = vmatpush1.msra.mxu0 %v1950
    %2037 = vmatprep.subr.mxu0 %v1947
    %2038 = vmatpush1.msra.mxu0 %v1946
    %2039 = vmatprep.subr.mxu0 %v1943
    %2040 = vmatpush1.msra.mxu0 %v1942
    %2041 = vmatprep.subr.mxu0 %v1939
    %2042 = vmatpush1.msra.mxu0 %v1938
    %2043 = vmatprep.subr.mxu0 %v1935
    %2044 = vmatpush1.msra.mxu0 %v1934
    %2045 = vmatprep.subr.mxu0 %v1931
    %2046 = vmatpush1.msra.mxu0 %v1930
    %2047 = vmatprep.subr.mxu0 %v1927
    %2048 = vmatpush1.msra.mxu0 %v1926
    %2049 = vmatprep.subr.mxu0 %v1923
    %2050 = vmatpush1.msra.mxu0 %v1922
    %2051 = vmatprep.subr.mxu0 %v1919
    %2052 = vmatpush1.msra.mxu0 %v1918
    %2053 = vmatprep.subr.mxu0 %v1915
    %2054 = vmatpush1.msra.mxu0 %v1914
    %2055 = vmatprep.subr.mxu0 %v1911
    %2056 = vmatpush1.msra.mxu0 %v1910
    %2057 = vmatprep.subr.mxu0 %v1907
    %2058 = vmatpush1.msra.mxu0 %v1906
    %2059 = vmatprep.subr.mxu0 %v1903
    %2060 = vmatpush1.msra.mxu0 %v1902
    %2061 = vmatprep.subr.mxu0 %v1899
    %2062 = vmatpush1.msra.mxu0 %v1898
    %2063 = vmatprep.subr.mxu0 0.0
    %2064 = vmatpush2.msra.mxu0 0.0
    %2065 = vmatprep.subr.mxu0 0.0
    %2066 = vmatpush2.msra.mxu0 0.0
    %2067 = vmatprep.subr.mxu0 0.0
    %2068 = vmatpush2.msra.mxu0 0.0
    %2069 = vmatprep.subr.mxu0 0.0
    %2070 = vmatpush2.msra.mxu0 0.0
    %2071 = vmatprep.subr.mxu0 0.0
    %2072 = vmatpush2.msra.mxu0 0.0
    %2073 = vmatprep.subr.mxu0 0.0
    %2074 = vmatpush2.msra.mxu0 0.0
    %2075 = vmatprep.subr.mxu0 0.0
    %2076 = vmatpush2.msra.mxu0 0.0
    %2077 = vmatprep.subr.mxu0 0.0
    %2078 = vmatpush2.msra.mxu0 0.0
    %2079 = vmatprep.subr.mxu0 0.0
    %2080 = vmatpush2.msra.mxu0 0.0
    %2081 = vmatprep.subr.mxu0 0.0
    %2082 = vmatpush2.msra.mxu0 0.0
    %2083 = vmatprep.subr.mxu0 0.0
    %2084 = vmatpush2.msra.mxu0 0.0
    %2085 = vmatprep.subr.mxu0 0.0
    %2086 = vmatpush2.msra.mxu0 0.0
    %2087 = vmatprep.subr.mxu0 0.0
    %2088 = vmatpush2.msra.mxu0 0.0
    %2089 = vmatprep.subr.mxu0 0.0
    %2090 = vmatpush2.msra.mxu0 0.0
    %2091 = vmatprep.subr.mxu0 0.0
    %2092 = vmatpush2.msra.mxu0 0.0
    %2093 = vmatprep.subr.mxu0 0.0
    %2094 = vmatpush2.msra.mxu0 0.0
    %2095 = vmatprep.mubr.f32.mxu0 0.0
    %2096 = vmatmul.mubr.f32.gmra.mxu0 %v1888
    %v2097 = vpop.f32.mrf.mxu0
    %v2098 = vadd.f32 0.0, %v2097
    %v2099 = vpop.f32.mrf.mxu0
    %v2100 = vadd.f32 0.0, %v2099
    %2101 = vdwg.mxu0
    %v2102 = vadd.f32 %v1892, %v2027
    %v2103 = vadd.f32 %v1893, %v2029
    %v2104 = vadd.f32 %v1894, %v2098
    %v2105 = vadd.f32 %v1895, %v2100
    %v2106 = vxor.u32 %v2102, 2147483648
    %v2107 = vmul.f32 %v2106, 1.442695
    %v2108 = vpow.pop %v2107
    %v2109 = vadd.f32 %v2108, 1.0
    %v2110 = vrcp.pop %v2109
    %v2111 = vmul.f32 1.0, %v2110
    %v2112 = vxor.u32 %v2103, 2147483648
    %v2113 = vmul.f32 %v2112, 1.442695
    %v2114 = vpow.pop %v2113
    %v2115 = vadd.f32 %v2114, 1.0
    %v2116 = vrcp.pop %v2115
    %v2117 = vmul.f32 1.0, %v2116
    %v2118 = vtanh.pop %v2104
    %v2119 = vxor.u32 %v2105, 2147483648
    %v2120 = vmul.f32 %v2119, 1.442695
    %v2121 = vpow.pop %v2120
    %v2122 = vadd.f32 %v2121, 1.0
    %v2123 = vrcp.pop %v2122
    %v2124 = vmul.f32 1.0, %v2123
    %v2125 = vmul.f32 %v2117, %v1886
    %v2126 = vmul.f32 %v2111, %v2118
    %v2127 = vadd.f32 %v2125, %v2126
    %v2128 = vtanh.pop %v2127
    %v2129 = vmul.f32 %v2124, %v2128
    %s2130 = scalar_lea.vmem [#allocation3], 48
    %2131 = vst [vmem:[%s2130] sm:$0xff] %v2129
    %s2132 = scalar_lea.vmem [#allocation2], 224
    %v2133 = vld [vmem:[%s2132] sm:$0xff]
    %v2134 = vld [vmem:[%s2132 + $0x8] sm:$0xff]
    %v2135 = vld [vmem:[%s2132 + $0x10] sm:$0xff]
    %v2136 = vld [vmem:[%s2132 + $0x18] sm:$0xff]
    %v2137 = vld [vmem:[#allocation9] sm:$0xff]
    %v2138 = vld [vmem:[#allocation9 + $0x8] sm:$0xff]
    %v2139 = vld [vmem:[#allocation9 + $0x10] sm:$0xff]
    %v2140 = vld [vmem:[#allocation9 + $0x18] sm:$0xff]
    %v2141 = vld [vmem:[#allocation9 + $0x20] sm:$0xff]
    %v2142 = vld [vmem:[#allocation9 + $0x28] sm:$0xff]
    %v2143 = vld [vmem:[#allocation9 + $0x30] sm:$0xff]
    %v2144 = vld [vmem:[#allocation9 + $0x38] sm:$0xff]
    %v2145 = vld [vmem:[#allocation9 + $0x40] sm:$0xff]
    %v2146 = vld [vmem:[#allocation9 + $0x48] sm:$0xff]
    %v2147 = vld [vmem:[#allocation9 + $0x50] sm:$0xff]
    %v2148 = vld [vmem:[#allocation9 + $0x58] sm:$0xff]
    %v2149 = vld [vmem:[#allocation9 + $0x60] sm:$0xff]
    %v2150 = vld [vmem:[#allocation9 + $0x68] sm:$0xff]
    %v2151 = vld [vmem:[#allocation9 + $0x70] sm:$0xff]
    %v2152 = vld [vmem:[#allocation9 + $0x78] sm:$0xff]
    %v2153 = vld [vmem:[#allocation9 + $0x80] sm:$0xff]
    %v2154 = vld [vmem:[#allocation9 + $0x88] sm:$0xff]
    %v2155 = vld [vmem:[#allocation9 + $0x90] sm:$0xff]
    %v2156 = vld [vmem:[#allocation9 + $0x98] sm:$0xff]
    %v2157 = vld [vmem:[#allocation9 + $0xa0] sm:$0xff]
    %v2158 = vld [vmem:[#allocation9 + $0xa8] sm:$0xff]
    %v2159 = vld [vmem:[#allocation9 + $0xb0] sm:$0xff]
    %v2160 = vld [vmem:[#allocation9 + $0xb8] sm:$0xff]
    %v2161 = vld [vmem:[#allocation9 + $0xc0] sm:$0xff]
    %v2162 = vld [vmem:[#allocation9 + $0xc8] sm:$0xff]
    %v2163 = vld [vmem:[#allocation9 + $0xd0] sm:$0xff]
    %v2164 = vld [vmem:[#allocation9 + $0xd8] sm:$0xff]
    %v2165 = vld [vmem:[#allocation9 + $0xe0] sm:$0xff]
    %v2166 = vld [vmem:[#allocation9 + $0xe8] sm:$0xff]
    %v2167 = vld [vmem:[#allocation9 + $0xf0] sm:$0xff]
    %v2168 = vld [vmem:[#allocation9 + $0xf8] sm:$0xff]
    %v2169 = vld [vmem:[#allocation9 + $0x100] sm:$0xff]
    %v2170 = vld [vmem:[#allocation9 + $0x108] sm:$0xff]
    %v2171 = vld [vmem:[#allocation9 + $0x110] sm:$0xff]
    %v2172 = vld [vmem:[#allocation9 + $0x118] sm:$0xff]
    %v2173 = vld [vmem:[#allocation9 + $0x120] sm:$0xff]
    %v2174 = vld [vmem:[#allocation9 + $0x128] sm:$0xff]
    %v2175 = vld [vmem:[#allocation9 + $0x130] sm:$0xff]
    %v2176 = vld [vmem:[#allocation9 + $0x138] sm:$0xff]
    %v2177 = vld [vmem:[#allocation9 + $0x140] sm:$0xff]
    %v2178 = vld [vmem:[#allocation9 + $0x148] sm:$0xff]
    %v2179 = vld [vmem:[#allocation9 + $0x150] sm:$0xff]
    %v2180 = vld [vmem:[#allocation9 + $0x158] sm:$0xff]
    %v2181 = vld [vmem:[#allocation9 + $0x160] sm:$0xff]
    %v2182 = vld [vmem:[#allocation9 + $0x168] sm:$0xff]
    %v2183 = vld [vmem:[#allocation9 + $0x170] sm:$0xff]
    %v2184 = vld [vmem:[#allocation9 + $0x178] sm:$0xff]
    %v2185 = vld [vmem:[#allocation9 + $0x180] sm:$0xff]
    %v2186 = vld [vmem:[#allocation9 + $0x188] sm:$0xff]
    %v2187 = vld [vmem:[#allocation9 + $0x190] sm:$0xff]
    %v2188 = vld [vmem:[#allocation9 + $0x198] sm:$0xff]
    %v2189 = vld [vmem:[#allocation9 + $0x1a0] sm:$0xff]
    %v2190 = vld [vmem:[#allocation9 + $0x1a8] sm:$0xff]
    %v2191 = vld [vmem:[#allocation9 + $0x1b0] sm:$0xff]
    %v2192 = vld [vmem:[#allocation9 + $0x1b8] sm:$0xff]
    %v2193 = vld [vmem:[#allocation9 + $0x1c0] sm:$0xff]
    %v2194 = vld [vmem:[#allocation9 + $0x1c8] sm:$0xff]
    %v2195 = vld [vmem:[#allocation9 + $0x1d0] sm:$0xff]
    %v2196 = vld [vmem:[#allocation9 + $0x1d8] sm:$0xff]
    %v2197 = vld [vmem:[#allocation9 + $0x1e0] sm:$0xff]
    %v2198 = vld [vmem:[#allocation9 + $0x1e8] sm:$0xff]
    %v2199 = vld [vmem:[#allocation9 + $0x1f0] sm:$0xff]
    %v2200 = vld [vmem:[#allocation9 + $0x1f8] sm:$0xff]
    %2201 = vmatprep.subr.mxu0 %v2198
    %2202 = vmatpush1.msra.mxu0 %v2197
    %2203 = vmatprep.subr.mxu0 %v2194
    %2204 = vmatpush1.msra.mxu0 %v2193
    %2205 = vmatprep.subr.mxu0 %v2190
    %2206 = vmatpush1.msra.mxu0 %v2189
    %2207 = vmatprep.subr.mxu0 %v2186
    %2208 = vmatpush1.msra.mxu0 %v2185
    %2209 = vmatprep.subr.mxu0 %v2182
    %2210 = vmatpush1.msra.mxu0 %v2181
    %2211 = vmatprep.subr.mxu0 %v2178
    %2212 = vmatpush1.msra.mxu0 %v2177
    %2213 = vmatprep.subr.mxu0 %v2174
    %2214 = vmatpush1.msra.mxu0 %v2173
    %2215 = vmatprep.subr.mxu0 %v2170
    %2216 = vmatpush1.msra.mxu0 %v2169
    %2217 = vmatprep.subr.mxu0 %v2166
    %2218 = vmatpush1.msra.mxu0 %v2165
    %2219 = vmatprep.subr.mxu0 %v2162
    %2220 = vmatpush1.msra.mxu0 %v2161
    %2221 = vmatprep.subr.mxu0 %v2158
    %2222 = vmatpush1.msra.mxu0 %v2157
    %2223 = vmatprep.subr.mxu0 %v2154
    %2224 = vmatpush1.msra.mxu0 %v2153
    %2225 = vmatprep.subr.mxu0 %v2150
    %2226 = vmatpush1.msra.mxu0 %v2149
    %2227 = vmatprep.subr.mxu0 %v2146
    %2228 = vmatpush1.msra.mxu0 %v2145
    %2229 = vmatprep.subr.mxu0 %v2142
    %2230 = vmatpush1.msra.mxu0 %v2141
    %2231 = vmatprep.subr.mxu0 %v2138
    %2232 = vmatpush1.msra.mxu0 %v2137
    %2233 = vmatprep.subr.mxu0 0.0
    %2234 = vmatpush2.msra.mxu0 0.0
    %2235 = vmatprep.subr.mxu0 0.0
    %2236 = vmatpush2.msra.mxu0 0.0
    %2237 = vmatprep.subr.mxu0 0.0
    %2238 = vmatpush2.msra.mxu0 0.0
    %2239 = vmatprep.subr.mxu0 0.0
    %2240 = vmatpush2.msra.mxu0 0.0
    %2241 = vmatprep.subr.mxu0 0.0
    %2242 = vmatpush2.msra.mxu0 0.0
    %2243 = vmatprep.subr.mxu0 0.0
    %2244 = vmatpush2.msra.mxu0 0.0
    %2245 = vmatprep.subr.mxu0 0.0
    %2246 = vmatpush2.msra.mxu0 0.0
    %2247 = vmatprep.subr.mxu0 0.0
    %2248 = vmatpush2.msra.mxu0 0.0
    %2249 = vmatprep.subr.mxu0 0.0
    %2250 = vmatpush2.msra.mxu0 0.0
    %2251 = vmatprep.subr.mxu0 0.0
    %2252 = vmatpush2.msra.mxu0 0.0
    %2253 = vmatprep.subr.mxu0 0.0
    %2254 = vmatpush2.msra.mxu0 0.0
    %2255 = vmatprep.subr.mxu0 0.0
    %2256 = vmatpush2.msra.mxu0 0.0
    %2257 = vmatprep.subr.mxu0 0.0
    %2258 = vmatpush2.msra.mxu0 0.0
    %2259 = vmatprep.subr.mxu0 0.0
    %2260 = vmatpush2.msra.mxu0 0.0
    %2261 = vmatprep.subr.mxu0 0.0
    %2262 = vmatpush2.msra.mxu0 0.0
    %2263 = vmatprep.subr.mxu0 0.0
    %2264 = vmatpush2.msra.mxu0 0.0
    %2265 = vmatprep.mubr.f32.mxu0 0.0
    %2266 = vmatmul.mubr.f32.gmra.mxu0 %v2129
    %v2267 = vpop.f32.mrf.mxu0
    %v2268 = vadd.f32 0.0, %v2267
    %v2269 = vpop.f32.mrf.mxu0
    %v2270 = vadd.f32 0.0, %v2269
    %2271 = vdwg.mxu0
    %2272 = vmatprep.subr.mxu0 %v2200
    %2273 = vmatpush1.msra.mxu0 %v2199
    %2274 = vmatprep.subr.mxu0 %v2196
    %2275 = vmatpush1.msra.mxu0 %v2195
    %2276 = vmatprep.subr.mxu0 %v2192
    %2277 = vmatpush1.msra.mxu0 %v2191
    %2278 = vmatprep.subr.mxu0 %v2188
    %2279 = vmatpush1.msra.mxu0 %v2187
    %2280 = vmatprep.subr.mxu0 %v2184
    %2281 = vmatpush1.msra.mxu0 %v2183
    %2282 = vmatprep.subr.mxu0 %v2180
    %2283 = vmatpush1.msra.mxu0 %v2179
    %2284 = vmatprep.subr.mxu0 %v2176
    %2285 = vmatpush1.msra.mxu0 %v2175
    %2286 = vmatprep.subr.mxu0 %v2172
    %2287 = vmatpush1.msra.mxu0 %v2171
    %2288 = vmatprep.subr.mxu0 %v2168
    %2289 = vmatpush1.msra.mxu0 %v2167
    %2290 = vmatprep.subr.mxu0 %v2164
    %2291 = vmatpush1.msra.mxu0 %v2163
    %2292 = vmatprep.subr.mxu0 %v2160
    %2293 = vmatpush1.msra.mxu0 %v2159
    %2294 = vmatprep.subr.mxu0 %v2156
    %2295 = vmatpush1.msra.mxu0 %v2155
    %2296 = vmatprep.subr.mxu0 %v2152
    %2297 = vmatpush1.msra.mxu0 %v2151
    %2298 = vmatprep.subr.mxu0 %v2148
    %2299 = vmatpush1.msra.mxu0 %v2147
    %2300 = vmatprep.subr.mxu0 %v2144
    %2301 = vmatpush1.msra.mxu0 %v2143
    %2302 = vmatprep.subr.mxu0 %v2140
    %2303 = vmatpush1.msra.mxu0 %v2139
    %2304 = vmatprep.subr.mxu0 0.0
    %2305 = vmatpush2.msra.mxu0 0.0
    %2306 = vmatprep.subr.mxu0 0.0
    %2307 = vmatpush2.msra.mxu0 0.0
    %2308 = vmatprep.subr.mxu0 0.0
    %2309 = vmatpush2.msra.mxu0 0.0
    %2310 = vmatprep.subr.mxu0 0.0
    %2311 = vmatpush2.msra.mxu0 0.0
    %2312 = vmatprep.subr.mxu0 0.0
    %2313 = vmatpush2.msra.mxu0 0.0
    %2314 = vmatprep.subr.mxu0 0.0
    %2315 = vmatpush2.msra.mxu0 0.0
    %2316 = vmatprep.subr.mxu0 0.0
    %2317 = vmatpush2.msra.mxu0 0.0
    %2318 = vmatprep.subr.mxu0 0.0
    %2319 = vmatpush2.msra.mxu0 0.0
    %2320 = vmatprep.subr.mxu0 0.0
    %2321 = vmatpush2.msra.mxu0 0.0
    %2322 = vmatprep.subr.mxu0 0.0
    %2323 = vmatpush2.msra.mxu0 0.0
    %2324 = vmatprep.subr.mxu0 0.0
    %2325 = vmatpush2.msra.mxu0 0.0
    %2326 = vmatprep.subr.mxu0 0.0
    %2327 = vmatpush2.msra.mxu0 0.0
    %2328 = vmatprep.subr.mxu0 0.0
    %2329 = vmatpush2.msra.mxu0 0.0
    %2330 = vmatprep.subr.mxu0 0.0
    %2331 = vmatpush2.msra.mxu0 0.0
    %2332 = vmatprep.subr.mxu0 0.0
    %2333 = vmatpush2.msra.mxu0 0.0
    %2334 = vmatprep.subr.mxu0 0.0
    %2335 = vmatpush2.msra.mxu0 0.0
    %2336 = vmatprep.mubr.f32.mxu0 0.0
    %2337 = vmatmul.mubr.f32.gmra.mxu0 %v2129
    %v2338 = vpop.f32.mrf.mxu0
    %v2339 = vadd.f32 0.0, %v2338
    %v2340 = vpop.f32.mrf.mxu0
    %v2341 = vadd.f32 0.0, %v2340
    %2342 = vdwg.mxu0
    %v2343 = vadd.f32 %v2133, %v2268
    %v2344 = vadd.f32 %v2134, %v2270
    %v2345 = vadd.f32 %v2135, %v2339
    %v2346 = vadd.f32 %v2136, %v2341
    %v2347 = vxor.u32 %v2343, 2147483648
    %v2348 = vmul.f32 %v2347, 1.442695
    %v2349 = vpow.pop %v2348
    %v2350 = vadd.f32 %v2349, 1.0
    %v2351 = vrcp.pop %v2350
    %v2352 = vmul.f32 1.0, %v2351
    %v2353 = vxor.u32 %v2344, 2147483648
    %v2354 = vmul.f32 %v2353, 1.442695
    %v2355 = vpow.pop %v2354
    %v2356 = vadd.f32 %v2355, 1.0
    %v2357 = vrcp.pop %v2356
    %v2358 = vmul.f32 1.0, %v2357
    %v2359 = vtanh.pop %v2345
    %v2360 = vxor.u32 %v2346, 2147483648
    %v2361 = vmul.f32 %v2360, 1.442695
    %v2362 = vpow.pop %v2361
    %v2363 = vadd.f32 %v2362, 1.0
    %v2364 = vrcp.pop %v2363
    %v2365 = vmul.f32 1.0, %v2364
    %v2366 = vmul.f32 %v2358, %v2127
    %v2367 = vmul.f32 %v2352, %v2359
    %v2368 = vadd.f32 %v2366, %v2367
    %v2369 = vtanh.pop %v2368
    %v2370 = vmul.f32 %v2365, %v2369
    %s2371 = scalar_lea.vmem [#allocation3], 56
    %2372 = vst [vmem:[%s2371] sm:$0xff] %v2370
    %v2373 = vld [vmem:[#allocation3] sm:$0xff]
    %v2374 = vld [vmem:[#allocation3 + $0x8] sm:$0xff]
    %v2375 = vld [vmem:[#allocation3 + $0x10] sm:$0xff]
    %v2376 = vld [vmem:[#allocation3 + $0x18] sm:$0xff]
    %v2377 = vld [vmem:[#allocation3 + $0x20] sm:$0xff]
    %v2378 = vld [vmem:[#allocation3 + $0x28] sm:$0xff]
    %v2379 = vld [vmem:[#allocation3 + $0x30] sm:$0xff]
    %v2380 = vld [vmem:[#allocation3 + $0x38] sm:$0xff]
    %v2381 = vld [vmem:[#allocation10] sm:$0xff]
    %v2382 = vld [vmem:[#allocation10 + $0x8] sm:$0xff]
    %v2383 = vld [vmem:[#allocation10 + $0x10] sm:$0xff]
    %v2384 = vld [vmem:[#allocation10 + $0x18] sm:$0xff]
    %v2385 = vld [vmem:[#allocation10 + $0x20] sm:$0xff]
    %v2386 = vld [vmem:[#allocation10 + $0x28] sm:$0xff]
    %v2387 = vld [vmem:[#allocation10 + $0x30] sm:$0xff]
    %v2388 = vld [vmem:[#allocation10 + $0x38] sm:$0xff]
    %v2389 = vld [vmem:[#allocation10 + $0x40] sm:$0xff]
    %v2390 = vld [vmem:[#allocation10 + $0x48] sm:$0xff]
    %v2391 = vld [vmem:[#allocation10 + $0x50] sm:$0xff]
    %v2392 = vld [vmem:[#allocation10 + $0x58] sm:$0xff]
    %v2393 = vld [vmem:[#allocation10 + $0x60] sm:$0xff]
    %v2394 = vld [vmem:[#allocation10 + $0x68] sm:$0xff]
    %v2395 = vld [vmem:[#allocation10 + $0x70] sm:$0xff]
    %v2396 = vld [vmem:[#allocation10 + $0x78] sm:$0xff]
    %v2397 = vld [vmem:[#allocation10 + $0x80] sm:$0xff]
    %v2398 = vld [vmem:[#allocation10 + $0x88] sm:$0xff]
    %v2399 = vld [vmem:[#allocation10 + $0x90] sm:$0xff]
    %v2400 = vld [vmem:[#allocation10 + $0x98] sm:$0xff]
    %v2401 = vld [vmem:[#allocation10 + $0xa0] sm:$0xff]
    %v2402 = vld [vmem:[#allocation10 + $0xa8] sm:$0xff]
    %v2403 = vld [vmem:[#allocation10 + $0xb0] sm:$0xff]
    %v2404 = vld [vmem:[#allocation10 + $0xb8] sm:$0xff]
    %v2405 = vld [vmem:[#allocation10 + $0xc0] sm:$0xff]
    %v2406 = vld [vmem:[#allocation10 + $0xc8] sm:$0xff]
    %v2407 = vld [vmem:[#allocation10 + $0xd0] sm:$0xff]
    %v2408 = vld [vmem:[#allocation10 + $0xd8] sm:$0xff]
    %v2409 = vld [vmem:[#allocation10 + $0xe0] sm:$0xff]
    %v2410 = vld [vmem:[#allocation10 + $0xe8] sm:$0xff]
    %v2411 = vld [vmem:[#allocation10 + $0xf0] sm:$0xff]
    %v2412 = vld [vmem:[#allocation10 + $0xf8] sm:$0xff]
    %v2413 = vld [vmem:[#allocation10 + $0x100] sm:$0xff]
    %v2414 = vld [vmem:[#allocation10 + $0x108] sm:$0xff]
    %v2415 = vld [vmem:[#allocation10 + $0x110] sm:$0xff]
    %v2416 = vld [vmem:[#allocation10 + $0x118] sm:$0xff]
    %v2417 = vld [vmem:[#allocation10 + $0x120] sm:$0xff]
    %v2418 = vld [vmem:[#allocation10 + $0x128] sm:$0xff]
    %v2419 = vld [vmem:[#allocation10 + $0x130] sm:$0xff]
    %v2420 = vld [vmem:[#allocation10 + $0x138] sm:$0xff]
    %v2421 = vld [vmem:[#allocation10 + $0x140] sm:$0xff]
    %v2422 = vld [vmem:[#allocation10 + $0x148] sm:$0xff]
    %v2423 = vld [vmem:[#allocation10 + $0x150] sm:$0xff]
    %v2424 = vld [vmem:[#allocation10 + $0x158] sm:$0xff]
    %v2425 = vld [vmem:[#allocation10 + $0x160] sm:$0xff]
    %v2426 = vld [vmem:[#allocation10 + $0x168] sm:$0xff]
    %v2427 = vld [vmem:[#allocation10 + $0x170] sm:$0xff]
    %v2428 = vld [vmem:[#allocation10 + $0x178] sm:$0xff]
    %v2429 = vld [vmem:[#allocation10 + $0x180] sm:$0xff]
    %v2430 = vld [vmem:[#allocation10 + $0x188] sm:$0xff]
    %v2431 = vld [vmem:[#allocation10 + $0x190] sm:$0xff]
    %v2432 = vld [vmem:[#allocation10 + $0x198] sm:$0xff]
    %v2433 = vld [vmem:[#allocation10 + $0x1a0] sm:$0xff]
    %v2434 = vld [vmem:[#allocation10 + $0x1a8] sm:$0xff]
    %v2435 = vld [vmem:[#allocation10 + $0x1b0] sm:$0xff]
    %v2436 = vld [vmem:[#allocation10 + $0x1b8] sm:$0xff]
    %v2437 = vld [vmem:[#allocation10 + $0x1c0] sm:$0xff]
    %v2438 = vld [vmem:[#allocation10 + $0x1c8] sm:$0xff]
    %v2439 = vld [vmem:[#allocation10 + $0x1d0] sm:$0xff]
    %v2440 = vld [vmem:[#allocation10 + $0x1d8] sm:$0xff]
    %v2441 = vld [vmem:[#allocation10 + $0x1e0] sm:$0xff]
    %v2442 = vld [vmem:[#allocation10 + $0x1e8] sm:$0xff]
    %v2443 = vld [vmem:[#allocation10 + $0x1f0] sm:$0xff]
    %v2444 = vld [vmem:[#allocation10 + $0x1f8] sm:$0xff]
    %v2445 = vld [vmem:[%s6] sm:$0xf]
    %v2447 = vlaneseq
    %v2448 = vshrl.u32 %v2447, 7
    %v2449 = vsub.s32 0, %v2448
    %v2450 = vrot.slane %v2445, %v2449
    %v2451 = vlaneseq
    %v2452 = vshrl.u32 %v2451, 7
    %v2453 = vsub.s32 1, %v2452
    %v2454 = vrot.slane %v2445, %v2453
    %v2455 = vlaneseq
    %v2456 = vshrl.u32 %v2455, 7
    %v2457 = vsub.s32 2, %v2456
    %v2458 = vrot.slane %v2445, %v2457
    %v2459 = vlaneseq
    %v2460 = vshrl.u32 %v2459, 7
    %v2461 = vsub.s32 3, %v2460
    %v2462 = vrot.slane %v2445, %v2461
    %2467 = vmatprep.subr.mxu0 %v2442
    %2468 = vmatpush1.msra.mxu0 %v2441
    %2469 = vmatprep.subr.mxu0 %v2438
    %2470 = vmatpush1.msra.mxu0 %v2437
    %2471 = vmatprep.subr.mxu0 %v2434
    %2472 = vmatpush1.msra.mxu0 %v2433
    %2473 = vmatprep.subr.mxu0 %v2430
    %2474 = vmatpush1.msra.mxu0 %v2429
    %2475 = vmatprep.subr.mxu0 %v2426
    %2476 = vmatpush1.msra.mxu0 %v2425
    %2477 = vmatprep.subr.mxu0 %v2422
    %2478 = vmatpush1.msra.mxu0 %v2421
    %2479 = vmatprep.subr.mxu0 %v2418
    %2480 = vmatpush1.msra.mxu0 %v2417
    %2481 = vmatprep.subr.mxu0 %v2414
    %2482 = vmatpush1.msra.mxu0 %v2413
    %2483 = vmatprep.subr.mxu0 %v2410
    %2484 = vmatpush1.msra.mxu0 %v2409
    %2485 = vmatprep.subr.mxu0 %v2406
    %2486 = vmatpush1.msra.mxu0 %v2405
    %2487 = vmatprep.subr.mxu0 %v2402
    %2488 = vmatpush1.msra.mxu0 %v2401
    %2489 = vmatprep.subr.mxu0 %v2398
    %2490 = vmatpush1.msra.mxu0 %v2397
    %2491 = vmatprep.subr.mxu0 %v2394
    %2492 = vmatpush1.msra.mxu0 %v2393
    %2493 = vmatprep.subr.mxu0 %v2390
    %2494 = vmatpush1.msra.mxu0 %v2389
    %2495 = vmatprep.subr.mxu0 %v2386
    %2496 = vmatpush1.msra.mxu0 %v2385
    %2497 = vmatprep.subr.mxu0 %v2382
    %2498 = vmatpush1.msra.mxu0 %v2381
    %2499 = vmatprep.subr.mxu0 0.0
    %2500 = vmatpush2.msra.mxu0 0.0
    %2501 = vmatprep.subr.mxu0 0.0
    %2502 = vmatpush2.msra.mxu0 0.0
    %2503 = vmatprep.subr.mxu0 0.0
    %2504 = vmatpush2.msra.mxu0 0.0
    %2505 = vmatprep.subr.mxu0 0.0
    %2506 = vmatpush2.msra.mxu0 0.0
    %2507 = vmatprep.subr.mxu0 0.0
    %2508 = vmatpush2.msra.mxu0 0.0
    %2509 = vmatprep.subr.mxu0 0.0
    %2510 = vmatpush2.msra.mxu0 0.0
    %2511 = vmatprep.subr.mxu0 0.0
    %2512 = vmatpush2.msra.mxu0 0.0
    %2513 = vmatprep.subr.mxu0 0.0
    %2514 = vmatpush2.msra.mxu0 0.0
    %2515 = vmatprep.subr.mxu0 0.0
    %2516 = vmatpush2.msra.mxu0 0.0
    %2517 = vmatprep.subr.mxu0 0.0
    %2518 = vmatpush2.msra.mxu0 0.0
    %2519 = vmatprep.subr.mxu0 0.0
    %2520 = vmatpush2.msra.mxu0 0.0
    %2521 = vmatprep.subr.mxu0 0.0
    %2522 = vmatpush2.msra.mxu0 0.0
    %2523 = vmatprep.subr.mxu0 0.0
    %2524 = vmatpush2.msra.mxu0 0.0
    %2525 = vmatprep.subr.mxu0 0.0
    %2526 = vmatpush2.msra.mxu0 0.0
    %2527 = vmatprep.subr.mxu0 0.0
    %2528 = vmatpush2.msra.mxu0 0.0
    %2529 = vmatprep.subr.mxu0 0.0
    %2530 = vmatpush2.msra.mxu0 0.0
    %2531 = vmatprep.mubr.f32.mxu0 0.0
    %2532 = vmatmul.mubr.f32.gmra.mxu0 %v2373
    %v2533 = vpop.f32.mrf.mxu0
    %v2534 = vadd.f32 %v2450, %v2533
    %v2535 = vpop.f32.mrf.mxu0
    %v2536 = vadd.f32 %v2454, %v2535
    %2537 = vmatprep.mubr.f32.mxu0 0.0
    %2538 = vmatmul.mubr.f32.gmra.mxu0 %v2374
    %v2539 = vpop.f32.mrf.mxu0
    %v2540 = vadd.f32 %v2450, %v2539
    %v2541 = vpop.f32.mrf.mxu0
    %v2542 = vadd.f32 %v2454, %v2541
    %2543 = vmatprep.mubr.f32.mxu0 0.0
    %2544 = vmatmul.mubr.f32.gmra.mxu0 %v2375
    %v2545 = vpop.f32.mrf.mxu0
    %v2546 = vadd.f32 %v2450, %v2545
    %v2547 = vpop.f32.mrf.mxu0
    %v2548 = vadd.f32 %v2454, %v2547
    %2549 = vmatprep.mubr.f32.mxu0 0.0
    %2550 = vmatmul.mubr.f32.gmra.mxu0 %v2376
    %v2551 = vpop.f32.mrf.mxu0
    %v2552 = vadd.f32 %v2450, %v2551
    %v2553 = vpop.f32.mrf.mxu0
    %v2554 = vadd.f32 %v2454, %v2553
    %2555 = vmatprep.mubr.f32.mxu0 0.0
    %2556 = vmatmul.mubr.f32.gmra.mxu0 %v2377
    %v2557 = vpop.f32.mrf.mxu0
    %v2558 = vadd.f32 %v2450, %v2557
    %v2559 = vpop.f32.mrf.mxu0
    %v2560 = vadd.f32 %v2454, %v2559
    %2561 = vmatprep.mubr.f32.mxu0 0.0
    %2562 = vmatmul.mubr.f32.gmra.mxu0 %v2378
    %v2563 = vpop.f32.mrf.mxu0
    %v2564 = vadd.f32 %v2450, %v2563
    %v2565 = vpop.f32.mrf.mxu0
    %v2566 = vadd.f32 %v2454, %v2565
    %2567 = vmatprep.mubr.f32.mxu0 0.0
    %2568 = vmatmul.mubr.f32.gmra.mxu0 %v2379
    %v2569 = vpop.f32.mrf.mxu0
    %v2570 = vadd.f32 %v2450, %v2569
    %v2571 = vpop.f32.mrf.mxu0
    %v2572 = vadd.f32 %v2454, %v2571
    %2573 = vmatprep.mubr.f32.mxu0 0.0
    %2574 = vmatmul.mubr.f32.gmra.mxu0 %v2380
    %v2575 = vpop.f32.mrf.mxu0
    %v2576 = vadd.f32 %v2450, %v2575
    %v2577 = vpop.f32.mrf.mxu0
    %v2578 = vadd.f32 %v2454, %v2577
    %2579 = vdwg.mxu0
    %2580 = vmatprep.subr.mxu0 %v2444
    %2581 = vmatpush1.msra.mxu0 %v2443
    %2582 = vmatprep.subr.mxu0 %v2440
    %2583 = vmatpush1.msra.mxu0 %v2439
    %2584 = vmatprep.subr.mxu0 %v2436
    %2585 = vmatpush1.msra.mxu0 %v2435
    %2586 = vmatprep.subr.mxu0 %v2432
    %2587 = vmatpush1.msra.mxu0 %v2431
    %2588 = vmatprep.subr.mxu0 %v2428
    %2589 = vmatpush1.msra.mxu0 %v2427
    %2590 = vmatprep.subr.mxu0 %v2424
    %2591 = vmatpush1.msra.mxu0 %v2423
    %2592 = vmatprep.subr.mxu0 %v2420
    %2593 = vmatpush1.msra.mxu0 %v2419
    %2594 = vmatprep.subr.mxu0 %v2416
    %2595 = vmatpush1.msra.mxu0 %v2415
    %2596 = vmatprep.subr.mxu0 %v2412
    %2597 = vmatpush1.msra.mxu0 %v2411
    %2598 = vmatprep.subr.mxu0 %v2408
    %2599 = vmatpush1.msra.mxu0 %v2407
    %2600 = vmatprep.subr.mxu0 %v2404
    %2601 = vmatpush1.msra.mxu0 %v2403
    %2602 = vmatprep.subr.mxu0 %v2400
    %2603 = vmatpush1.msra.mxu0 %v2399
    %2604 = vmatprep.subr.mxu0 %v2396
    %2605 = vmatpush1.msra.mxu0 %v2395
    %2606 = vmatprep.subr.mxu0 %v2392
    %2607 = vmatpush1.msra.mxu0 %v2391
    %2608 = vmatprep.subr.mxu0 %v2388
    %2609 = vmatpush1.msra.mxu0 %v2387
    %2610 = vmatprep.subr.mxu0 %v2384
    %2611 = vmatpush1.msra.mxu0 %v2383
    %2612 = vmatprep.subr.mxu0 0.0
    %2613 = vmatpush2.msra.mxu0 0.0
    %2614 = vmatprep.subr.mxu0 0.0
    %2615 = vmatpush2.msra.mxu0 0.0
    %2616 = vmatprep.subr.mxu0 0.0
    %2617 = vmatpush2.msra.mxu0 0.0
    %2618 = vmatprep.subr.mxu0 0.0
    %2619 = vmatpush2.msra.mxu0 0.0
    %2620 = vmatprep.subr.mxu0 0.0
    %2621 = vmatpush2.msra.mxu0 0.0
    %2622 = vmatprep.subr.mxu0 0.0
    %2623 = vmatpush2.msra.mxu0 0.0
    %2624 = vmatprep.subr.mxu0 0.0
    %2625 = vmatpush2.msra.mxu0 0.0
    %2626 = vmatprep.subr.mxu0 0.0
    %2627 = vmatpush2.msra.mxu0 0.0
    %2628 = vmatprep.subr.mxu0 0.0
    %2629 = vmatpush2.msra.mxu0 0.0
    %2630 = vmatprep.subr.mxu0 0.0
    %2631 = vmatpush2.msra.mxu0 0.0
    %2632 = vmatprep.subr.mxu0 0.0
    %2633 = vmatpush2.msra.mxu0 0.0
    %2634 = vmatprep.subr.mxu0 0.0
    %2635 = vmatpush2.msra.mxu0 0.0
    %2636 = vmatprep.subr.mxu0 0.0
    %2637 = vmatpush2.msra.mxu0 0.0
    %2638 = vmatprep.subr.mxu0 0.0
    %2639 = vmatpush2.msra.mxu0 0.0
    %2640 = vmatprep.subr.mxu0 0.0
    %2641 = vmatpush2.msra.mxu0 0.0
    %2642 = vmatprep.subr.mxu0 0.0
    %2643 = vmatpush2.msra.mxu0 0.0
    %2644 = vmatprep.mubr.f32.mxu0 0.0
    %2645 = vmatmul.mubr.f32.gmra.mxu0 %v2373
    %v2646 = vpop.f32.mrf.mxu0
    %v2647 = vadd.f32 %v2458, %v2646
    %v2648 = vpop.f32.mrf.mxu0
    %v2649 = vadd.f32 %v2462, %v2648
    %2650 = vmatprep.mubr.f32.mxu0 0.0
    %2651 = vmatmul.mubr.f32.gmra.mxu0 %v2374
    %v2652 = vpop.f32.mrf.mxu0
    %v2653 = vadd.f32 %v2458, %v2652
    %v2654 = vpop.f32.mrf.mxu0
    %v2655 = vadd.f32 %v2462, %v2654
    %2656 = vmatprep.mubr.f32.mxu0 0.0
    %2657 = vmatmul.mubr.f32.gmra.mxu0 %v2375
    %v2658 = vpop.f32.mrf.mxu0
    %v2659 = vadd.f32 %v2458, %v2658
    %v2660 = vpop.f32.mrf.mxu0
    %v2661 = vadd.f32 %v2462, %v2660
    %2662 = vmatprep.mubr.f32.mxu0 0.0
    %2663 = vmatmul.mubr.f32.gmra.mxu0 %v2376
    %v2664 = vpop.f32.mrf.mxu0
    %v2665 = vadd.f32 %v2458, %v2664
    %v2666 = vpop.f32.mrf.mxu0
    %v2667 = vadd.f32 %v2462, %v2666
    %2668 = vmatprep.mubr.f32.mxu0 0.0
    %2669 = vmatmul.mubr.f32.gmra.mxu0 %v2377
    %v2670 = vpop.f32.mrf.mxu0
    %v2671 = vadd.f32 %v2458, %v2670
    %v2672 = vpop.f32.mrf.mxu0
    %v2673 = vadd.f32 %v2462, %v2672
    %2674 = vmatprep.mubr.f32.mxu0 0.0
    %2675 = vmatmul.mubr.f32.gmra.mxu0 %v2378
    %v2676 = vpop.f32.mrf.mxu0
    %v2677 = vadd.f32 %v2458, %v2676
    %v2678 = vpop.f32.mrf.mxu0
    %v2679 = vadd.f32 %v2462, %v2678
    %2680 = vmatprep.mubr.f32.mxu0 0.0
    %2681 = vmatmul.mubr.f32.gmra.mxu0 %v2379
    %v2682 = vpop.f32.mrf.mxu0
    %v2683 = vadd.f32 %v2458, %v2682
    %v2684 = vpop.f32.mrf.mxu0
    %v2685 = vadd.f32 %v2462, %v2684
    %2686 = vmatprep.mubr.f32.mxu0 0.0
    %2687 = vmatmul.mubr.f32.gmra.mxu0 %v2380
    %v2688 = vpop.f32.mrf.mxu0
    %v2689 = vadd.f32 %v2458, %v2688
    %v2690 = vpop.f32.mrf.mxu0
    %v2691 = vadd.f32 %v2462, %v2690
    %2692 = vdwg.mxu0
    %2693 = vst [vmem:[#allocation2] sm:$0xff] %v2534
    %2694 = vst [vmem:[#allocation2 + $0x8] sm:$0xff] %v2536
    %2695 = vst [vmem:[#allocation2 + $0x10] sm:$0xff] %v2647
    %2696 = vst [vmem:[#allocation2 + $0x18] sm:$0xff] %v2649
    %2697 = vst [vmem:[#allocation2 + $0x20] sm:$0xff] %v2540
    %2698 = vst [vmem:[#allocation2 + $0x28] sm:$0xff] %v2542
    %2699 = vst [vmem:[#allocation2 + $0x30] sm:$0xff] %v2653
    %2700 = vst [vmem:[#allocation2 + $0x38] sm:$0xff] %v2655
    %2701 = vst [vmem:[#allocation2 + $0x40] sm:$0xff] %v2546
    %2702 = vst [vmem:[#allocation2 + $0x48] sm:$0xff] %v2548
    %2703 = vst [vmem:[#allocation2 + $0x50] sm:$0xff] %v2659
    %2704 = vst [vmem:[#allocation2 + $0x58] sm:$0xff] %v2661
    %2705 = vst [vmem:[#allocation2 + $0x60] sm:$0xff] %v2552
    %2706 = vst [vmem:[#allocation2 + $0x68] sm:$0xff] %v2554
    %2707 = vst [vmem:[#allocation2 + $0x70] sm:$0xff] %v2665
    %2708 = vst [vmem:[#allocation2 + $0x78] sm:$0xff] %v2667
    %2709 = vst [vmem:[#allocation2 + $0x80] sm:$0xff] %v2558
    %2710 = vst [vmem:[#allocation2 + $0x88] sm:$0xff] %v2560
    %2711 = vst [vmem:[#allocation2 + $0x90] sm:$0xff] %v2671
    %2712 = vst [vmem:[#allocation2 + $0x98] sm:$0xff] %v2673
    %2713 = vst [vmem:[#allocation2 + $0xa0] sm:$0xff] %v2564
    %2714 = vst [vmem:[#allocation2 + $0xa8] sm:$0xff] %v2566
    %2715 = vst [vmem:[#allocation2 + $0xb0] sm:$0xff] %v2677
    %2716 = vst [vmem:[#allocation2 + $0xb8] sm:$0xff] %v2679
    %2717 = vst [vmem:[#allocation2 + $0xc0] sm:$0xff] %v2570
    %2718 = vst [vmem:[#allocation2 + $0xc8] sm:$0xff] %v2572
    %2719 = vst [vmem:[#allocation2 + $0xd0] sm:$0xff] %v2683
    %2720 = vst [vmem:[#allocation2 + $0xd8] sm:$0xff] %v2685
    %2721 = vst [vmem:[#allocation2 + $0xe0] sm:$0xff] %v2576
    %2722 = vst [vmem:[#allocation2 + $0xe8] sm:$0xff] %v2578
    %2723 = vst [vmem:[#allocation2 + $0xf0] sm:$0xff] %v2689
    %2724 = vst [vmem:[#allocation2 + $0xf8] sm:$0xff] %v2691
    %v2725 = vld [vmem:[#allocation2] sm:$0xff]
    %v2726 = vld [vmem:[#allocation2 + $0x8] sm:$0xff]
    %v2727 = vld [vmem:[#allocation2 + $0x10] sm:$0xff]
    %v2728 = vld [vmem:[#allocation2 + $0x18] sm:$0xff]
    %v2729 = vld [vmem:[#allocation12] sm:$0xff]
    %v2730 = vld [vmem:[#allocation12 + $0x8] sm:$0xff]
    %v2731 = vld [vmem:[#allocation12 + $0x10] sm:$0xff]
    %v2732 = vld [vmem:[#allocation12 + $0x18] sm:$0xff]
    %v2733 = vld [vmem:[#allocation12 + $0x20] sm:$0xff]
    %v2734 = vld [vmem:[#allocation12 + $0x28] sm:$0xff]
    %v2735 = vld [vmem:[#allocation12 + $0x30] sm:$0xff]
    %v2736 = vld [vmem:[#allocation12 + $0x38] sm:$0xff]
    %v2737 = vld [vmem:[#allocation12 + $0x40] sm:$0xff]
    %v2738 = vld [vmem:[#allocation12 + $0x48] sm:$0xff]
    %v2739 = vld [vmem:[#allocation12 + $0x50] sm:$0xff]
    %v2740 = vld [vmem:[#allocation12 + $0x58] sm:$0xff]
    %v2741 = vld [vmem:[#allocation12 + $0x60] sm:$0xff]
    %v2742 = vld [vmem:[#allocation12 + $0x68] sm:$0xff]
    %v2743 = vld [vmem:[#allocation12 + $0x70] sm:$0xff]
    %v2744 = vld [vmem:[#allocation12 + $0x78] sm:$0xff]
    %v2745 = vld [vmem:[#allocation12 + $0x80] sm:$0xff]
    %v2746 = vld [vmem:[#allocation12 + $0x88] sm:$0xff]
    %v2747 = vld [vmem:[#allocation12 + $0x90] sm:$0xff]
    %v2748 = vld [vmem:[#allocation12 + $0x98] sm:$0xff]
    %v2749 = vld [vmem:[#allocation12 + $0xa0] sm:$0xff]
    %v2750 = vld [vmem:[#allocation12 + $0xa8] sm:$0xff]
    %v2751 = vld [vmem:[#allocation12 + $0xb0] sm:$0xff]
    %v2752 = vld [vmem:[#allocation12 + $0xb8] sm:$0xff]
    %v2753 = vld [vmem:[#allocation12 + $0xc0] sm:$0xff]
    %v2754 = vld [vmem:[#allocation12 + $0xc8] sm:$0xff]
    %v2755 = vld [vmem:[#allocation12 + $0xd0] sm:$0xff]
    %v2756 = vld [vmem:[#allocation12 + $0xd8] sm:$0xff]
    %v2757 = vld [vmem:[#allocation12 + $0xe0] sm:$0xff]
    %v2758 = vld [vmem:[#allocation12 + $0xe8] sm:$0xff]
    %v2759 = vld [vmem:[#allocation12 + $0xf0] sm:$0xff]
    %v2760 = vld [vmem:[#allocation12 + $0xf8] sm:$0xff]
    %v2761 = vld [vmem:[#allocation12 + $0x100] sm:$0xff]
    %v2762 = vld [vmem:[#allocation12 + $0x108] sm:$0xff]
    %v2763 = vld [vmem:[#allocation12 + $0x110] sm:$0xff]
    %v2764 = vld [vmem:[#allocation12 + $0x118] sm:$0xff]
    %v2765 = vld [vmem:[#allocation12 + $0x120] sm:$0xff]
    %v2766 = vld [vmem:[#allocation12 + $0x128] sm:$0xff]
    %v2767 = vld [vmem:[#allocation12 + $0x130] sm:$0xff]
    %v2768 = vld [vmem:[#allocation12 + $0x138] sm:$0xff]
    %v2769 = vld [vmem:[#allocation12 + $0x140] sm:$0xff]
    %v2770 = vld [vmem:[#allocation12 + $0x148] sm:$0xff]
    %v2771 = vld [vmem:[#allocation12 + $0x150] sm:$0xff]
    %v2772 = vld [vmem:[#allocation12 + $0x158] sm:$0xff]
    %v2773 = vld [vmem:[#allocation12 + $0x160] sm:$0xff]
    %v2774 = vld [vmem:[#allocation12 + $0x168] sm:$0xff]
    %v2775 = vld [vmem:[#allocation12 + $0x170] sm:$0xff]
    %v2776 = vld [vmem:[#allocation12 + $0x178] sm:$0xff]
    %v2777 = vld [vmem:[#allocation12 + $0x180] sm:$0xff]
    %v2778 = vld [vmem:[#allocation12 + $0x188] sm:$0xff]
    %v2779 = vld [vmem:[#allocation12 + $0x190] sm:$0xff]
    %v2780 = vld [vmem:[#allocation12 + $0x198] sm:$0xff]
    %v2781 = vld [vmem:[#allocation12 + $0x1a0] sm:$0xff]
    %v2782 = vld [vmem:[#allocation12 + $0x1a8] sm:$0xff]
    %v2783 = vld [vmem:[#allocation12 + $0x1b0] sm:$0xff]
    %v2784 = vld [vmem:[#allocation12 + $0x1b8] sm:$0xff]
    %v2785 = vld [vmem:[#allocation12 + $0x1c0] sm:$0xff]
    %v2786 = vld [vmem:[#allocation12 + $0x1c8] sm:$0xff]
    %v2787 = vld [vmem:[#allocation12 + $0x1d0] sm:$0xff]
    %v2788 = vld [vmem:[#allocation12 + $0x1d8] sm:$0xff]
    %v2789 = vld [vmem:[#allocation12 + $0x1e0] sm:$0xff]
    %v2790 = vld [vmem:[#allocation12 + $0x1e8] sm:$0xff]
    %v2791 = vld [vmem:[#allocation12 + $0x1f0] sm:$0xff]
    %v2792 = vld [vmem:[#allocation12 + $0x1f8] sm:$0xff]
    %2793 = vmatprep.subr.mxu0 %v2790
    %2794 = vmatpush1.msra.mxu0 %v2789
    %2795 = vmatprep.subr.mxu0 %v2786
    %2796 = vmatpush1.msra.mxu0 %v2785
    %2797 = vmatprep.subr.mxu0 %v2782
    %2798 = vmatpush1.msra.mxu0 %v2781
    %2799 = vmatprep.subr.mxu0 %v2778
    %2800 = vmatpush1.msra.mxu0 %v2777
    %2801 = vmatprep.subr.mxu0 %v2774
    %2802 = vmatpush1.msra.mxu0 %v2773
    %2803 = vmatprep.subr.mxu0 %v2770
    %2804 = vmatpush1.msra.mxu0 %v2769
    %2805 = vmatprep.subr.mxu0 %v2766
    %2806 = vmatpush1.msra.mxu0 %v2765
    %2807 = vmatprep.subr.mxu0 %v2762
    %2808 = vmatpush1.msra.mxu0 %v2761
    %2809 = vmatprep.subr.mxu0 %v2758
    %2810 = vmatpush1.msra.mxu0 %v2757
    %2811 = vmatprep.subr.mxu0 %v2754
    %2812 = vmatpush1.msra.mxu0 %v2753
    %2813 = vmatprep.subr.mxu0 %v2750
    %2814 = vmatpush1.msra.mxu0 %v2749
    %2815 = vmatprep.subr.mxu0 %v2746
    %2816 = vmatpush1.msra.mxu0 %v2745
    %2817 = vmatprep.subr.mxu0 %v2742
    %2818 = vmatpush1.msra.mxu0 %v2741
    %2819 = vmatprep.subr.mxu0 %v2738
    %2820 = vmatpush1.msra.mxu0 %v2737
    %2821 = vmatprep.subr.mxu0 %v2734
    %2822 = vmatpush1.msra.mxu0 %v2733
    %2823 = vmatprep.subr.mxu0 %v2730
    %2824 = vmatpush1.msra.mxu0 %v2729
    %2825 = vmatprep.subr.mxu0 0.0
    %2826 = vmatpush2.msra.mxu0 0.0
    %2827 = vmatprep.subr.mxu0 0.0
    %2828 = vmatpush2.msra.mxu0 0.0
    %2829 = vmatprep.subr.mxu0 0.0
    %2830 = vmatpush2.msra.mxu0 0.0
    %2831 = vmatprep.subr.mxu0 0.0
    %2832 = vmatpush2.msra.mxu0 0.0
    %2833 = vmatprep.subr.mxu0 0.0
    %2834 = vmatpush2.msra.mxu0 0.0
    %2835 = vmatprep.subr.mxu0 0.0
    %2836 = vmatpush2.msra.mxu0 0.0
    %2837 = vmatprep.subr.mxu0 0.0
    %2838 = vmatpush2.msra.mxu0 0.0
    %2839 = vmatprep.subr.mxu0 0.0
    %2840 = vmatpush2.msra.mxu0 0.0
    %2841 = vmatprep.subr.mxu0 0.0
    %2842 = vmatpush2.msra.mxu0 0.0
    %2843 = vmatprep.subr.mxu0 0.0
    %2844 = vmatpush2.msra.mxu0 0.0
    %2845 = vmatprep.subr.mxu0 0.0
    %2846 = vmatpush2.msra.mxu0 0.0
    %2847 = vmatprep.subr.mxu0 0.0
    %2848 = vmatpush2.msra.mxu0 0.0
    %2849 = vmatprep.subr.mxu0 0.0
    %2850 = vmatpush2.msra.mxu0 0.0
    %2851 = vmatprep.subr.mxu0 0.0
    %2852 = vmatpush2.msra.mxu0 0.0
    %2853 = vmatprep.subr.mxu0 0.0
    %2854 = vmatpush2.msra.mxu0 0.0
    %2855 = vmatprep.subr.mxu0 0.0
    %2856 = vmatpush2.msra.mxu0 0.0
    %2857 = vmatprep.mubr.f32.mxu0 0.0
    %2858 = vmatmul.mubr.f32.gmra.mxu0 0.0
    %v2859 = vpop.f32.mrf.mxu0
    %v2860 = vadd.f32 0.0, %v2859
    %v2861 = vpop.f32.mrf.mxu0
    %v2862 = vadd.f32 0.0, %v2861
    %2863 = vdwg.mxu0
    %2864 = vmatprep.subr.mxu0 %v2792
    %2865 = vmatpush1.msra.mxu0 %v2791
    %2866 = vmatprep.subr.mxu0 %v2788
    %2867 = vmatpush1.msra.mxu0 %v2787
    %2868 = vmatprep.subr.mxu0 %v2784
    %2869 = vmatpush1.msra.mxu0 %v2783
    %2870 = vmatprep.subr.mxu0 %v2780
    %2871 = vmatpush1.msra.mxu0 %v2779
    %2872 = vmatprep.subr.mxu0 %v2776
    %2873 = vmatpush1.msra.mxu0 %v2775
    %2874 = vmatprep.subr.mxu0 %v2772
    %2875 = vmatpush1.msra.mxu0 %v2771
    %2876 = vmatprep.subr.mxu0 %v2768
    %2877 = vmatpush1.msra.mxu0 %v2767
    %2878 = vmatprep.subr.mxu0 %v2764
    %2879 = vmatpush1.msra.mxu0 %v2763
    %2880 = vmatprep.subr.mxu0 %v2760
    %2881 = vmatpush1.msra.mxu0 %v2759
    %2882 = vmatprep.subr.mxu0 %v2756
    %2883 = vmatpush1.msra.mxu0 %v2755
    %2884 = vmatprep.subr.mxu0 %v2752
    %2885 = vmatpush1.msra.mxu0 %v2751
    %2886 = vmatprep.subr.mxu0 %v2748
    %2887 = vmatpush1.msra.mxu0 %v2747
    %2888 = vmatprep.subr.mxu0 %v2744
    %2889 = vmatpush1.msra.mxu0 %v2743
    %2890 = vmatprep.subr.mxu0 %v2740
    %2891 = vmatpush1.msra.mxu0 %v2739
    %2892 = vmatprep.subr.mxu0 %v2736
    %2893 = vmatpush1.msra.mxu0 %v2735
    %2894 = vmatprep.subr.mxu0 %v2732
    %2895 = vmatpush1.msra.mxu0 %v2731
    %2896 = vmatprep.subr.mxu0 0.0
    %2897 = vmatpush2.msra.mxu0 0.0
    %2898 = vmatprep.subr.mxu0 0.0
    %2899 = vmatpush2.msra.mxu0 0.0
    %2900 = vmatprep.subr.mxu0 0.0
    %2901 = vmatpush2.msra.mxu0 0.0
    %2902 = vmatprep.subr.mxu0 0.0
    %2903 = vmatpush2.msra.mxu0 0.0
    %2904 = vmatprep.subr.mxu0 0.0
    %2905 = vmatpush2.msra.mxu0 0.0
    %2906 = vmatprep.subr.mxu0 0.0
    %2907 = vmatpush2.msra.mxu0 0.0
    %2908 = vmatprep.subr.mxu0 0.0
    %2909 = vmatpush2.msra.mxu0 0.0
    %2910 = vmatprep.subr.mxu0 0.0
    %2911 = vmatpush2.msra.mxu0 0.0
    %2912 = vmatprep.subr.mxu0 0.0
    %2913 = vmatpush2.msra.mxu0 0.0
    %2914 = vmatprep.subr.mxu0 0.0
    %2915 = vmatpush2.msra.mxu0 0.0
    %2916 = vmatprep.subr.mxu0 0.0
    %2917 = vmatpush2.msra.mxu0 0.0
    %2918 = vmatprep.subr.mxu0 0.0
    %2919 = vmatpush2.msra.mxu0 0.0
    %2920 = vmatprep.subr.mxu0 0.0
    %2921 = vmatpush2.msra.mxu0 0.0
    %2922 = vmatprep.subr.mxu0 0.0
    %2923 = vmatpush2.msra.mxu0 0.0
    %2924 = vmatprep.subr.mxu0 0.0
    %2925 = vmatpush2.msra.mxu0 0.0
    %2926 = vmatprep.subr.mxu0 0.0
    %2927 = vmatpush2.msra.mxu0 0.0
    %2928 = vmatprep.mubr.f32.mxu0 0.0
    %2929 = vmatmul.mubr.f32.gmra.mxu0 0.0
    %v2930 = vpop.f32.mrf.mxu0
    %v2931 = vadd.f32 0.0, %v2930
    %v2932 = vpop.f32.mrf.mxu0
    %v2933 = vadd.f32 0.0, %v2932
    %2934 = vdwg.mxu0
    %v2935 = vadd.f32 %v2725, %v2860
    %v2936 = vadd.f32 %v2726, %v2862
    %v2937 = vadd.f32 %v2727, %v2931
    %v2938 = vadd.f32 %v2728, %v2933
    %v2939 = vxor.u32 %v2935, 2147483648
    %v2940 = vmul.f32 %v2939, 1.442695
    %v2941 = vpow.pop %v2940
    %v2942 = vadd.f32 %v2941, 1.0
    %v2943 = vrcp.pop %v2942
    %v2944 = vmul.f32 1.0, %v2943
    %v2945 = vxor.u32 %v2936, 2147483648
    %v2946 = vmul.f32 %v2945, 1.442695
    %v2947 = vpow.pop %v2946
    %v2948 = vadd.f32 %v2947, 1.0
    %v2949 = vrcp.pop %v2948
    %v2950 = vmul.f32 1.0, %v2949
    %v2951 = vtanh.pop %v2937
    %v2952 = vxor.u32 %v2938, 2147483648
    %v2953 = vmul.f32 %v2952, 1.442695
    %v2954 = vpow.pop %v2953
    %v2955 = vadd.f32 %v2954, 1.0
    %v2956 = vrcp.pop %v2955
    %v2957 = vmul.f32 1.0, %v2956
    %v2958 = vmul.f32 %v2950, 0.0
    %v2959 = vmul.f32 %v2944, %v2951
    %v2960 = vadd.f32 %v2958, %v2959
    %v2961 = vtanh.pop %v2960
    %v2962 = vmul.f32 %v2957, %v2961
    %2963 = vst [vmem:[#allocation13] sm:$0xff] %v2962
    %v2964 = vld [vmem:[%s686] sm:$0xff]
    %v2965 = vld [vmem:[%s686 + $0x8] sm:$0xff]
    %v2966 = vld [vmem:[%s686 + $0x10] sm:$0xff]
    %v2967 = vld [vmem:[%s686 + $0x18] sm:$0xff]
    %v2968 = vld [vmem:[#allocation12] sm:$0xff]
    %v2969 = vld [vmem:[#allocation12 + $0x8] sm:$0xff]
    %v2970 = vld [vmem:[#allocation12 + $0x10] sm:$0xff]
    %v2971 = vld [vmem:[#allocation12 + $0x18] sm:$0xff]
    %v2972 = vld [vmem:[#allocation12 + $0x20] sm:$0xff]
    %v2973 = vld [vmem:[#allocation12 + $0x28] sm:$0xff]
    %v2974 = vld [vmem:[#allocation12 + $0x30] sm:$0xff]
    %v2975 = vld [vmem:[#allocation12 + $0x38] sm:$0xff]
    %v2976 = vld [vmem:[#allocation12 + $0x40] sm:$0xff]
    %v2977 = vld [vmem:[#allocation12 + $0x48] sm:$0xff]
    %v2978 = vld [vmem:[#allocation12 + $0x50] sm:$0xff]
    %v2979 = vld [vmem:[#allocation12 + $0x58] sm:$0xff]
    %v2980 = vld [vmem:[#allocation12 + $0x60] sm:$0xff]
    %v2981 = vld [vmem:[#allocation12 + $0x68] sm:$0xff]
    %v2982 = vld [vmem:[#allocation12 + $0x70] sm:$0xff]
    %v2983 = vld [vmem:[#allocation12 + $0x78] sm:$0xff]
    %v2984 = vld [vmem:[#allocation12 + $0x80] sm:$0xff]
    %v2985 = vld [vmem:[#allocation12 + $0x88] sm:$0xff]
    %v2986 = vld [vmem:[#allocation12 + $0x90] sm:$0xff]
    %v2987 = vld [vmem:[#allocation12 + $0x98] sm:$0xff]
    %v2988 = vld [vmem:[#allocation12 + $0xa0] sm:$0xff]
    %v2989 = vld [vmem:[#allocation12 + $0xa8] sm:$0xff]
    %v2990 = vld [vmem:[#allocation12 + $0xb0] sm:$0xff]
    %v2991 = vld [vmem:[#allocation12 + $0xb8] sm:$0xff]
    %v2992 = vld [vmem:[#allocation12 + $0xc0] sm:$0xff]
    %v2993 = vld [vmem:[#allocation12 + $0xc8] sm:$0xff]
    %v2994 = vld [vmem:[#allocation12 + $0xd0] sm:$0xff]
    %v2995 = vld [vmem:[#allocation12 + $0xd8] sm:$0xff]
    %v2996 = vld [vmem:[#allocation12 + $0xe0] sm:$0xff]
    %v2997 = vld [vmem:[#allocation12 + $0xe8] sm:$0xff]
    %v2998 = vld [vmem:[#allocation12 + $0xf0] sm:$0xff]
    %v2999 = vld [vmem:[#allocation12 + $0xf8] sm:$0xff]
    %v3000 = vld [vmem:[#allocation12 + $0x100] sm:$0xff]
    %v3001 = vld [vmem:[#allocation12 + $0x108] sm:$0xff]
    %v3002 = vld [vmem:[#allocation12 + $0x110] sm:$0xff]
    %v3003 = vld [vmem:[#allocation12 + $0x118] sm:$0xff]
    %v3004 = vld [vmem:[#allocation12 + $0x120] sm:$0xff]
    %v3005 = vld [vmem:[#allocation12 + $0x128] sm:$0xff]
    %v3006 = vld [vmem:[#allocation12 + $0x130] sm:$0xff]
    %v3007 = vld [vmem:[#allocation12 + $0x138] sm:$0xff]
    %v3008 = vld [vmem:[#allocation12 + $0x140] sm:$0xff]
    %v3009 = vld [vmem:[#allocation12 + $0x148] sm:$0xff]
    %v3010 = vld [vmem:[#allocation12 + $0x150] sm:$0xff]
    %v3011 = vld [vmem:[#allocation12 + $0x158] sm:$0xff]
    %v3012 = vld [vmem:[#allocation12 + $0x160] sm:$0xff]
    %v3013 = vld [vmem:[#allocation12 + $0x168] sm:$0xff]
    %v3014 = vld [vmem:[#allocation12 + $0x170] sm:$0xff]
    %v3015 = vld [vmem:[#allocation12 + $0x178] sm:$0xff]
    %v3016 = vld [vmem:[#allocation12 + $0x180] sm:$0xff]
    %v3017 = vld [vmem:[#allocation12 + $0x188] sm:$0xff]
    %v3018 = vld [vmem:[#allocation12 + $0x190] sm:$0xff]
    %v3019 = vld [vmem:[#allocation12 + $0x198] sm:$0xff]
    %v3020 = vld [vmem:[#allocation12 + $0x1a0] sm:$0xff]
    %v3021 = vld [vmem:[#allocation12 + $0x1a8] sm:$0xff]
    %v3022 = vld [vmem:[#allocation12 + $0x1b0] sm:$0xff]
    %v3023 = vld [vmem:[#allocation12 + $0x1b8] sm:$0xff]
    %v3024 = vld [vmem:[#allocation12 + $0x1c0] sm:$0xff]
    %v3025 = vld [vmem:[#allocation12 + $0x1c8] sm:$0xff]
    %v3026 = vld [vmem:[#allocation12 + $0x1d0] sm:$0xff]
    %v3027 = vld [vmem:[#allocation12 + $0x1d8] sm:$0xff]
    %v3028 = vld [vmem:[#allocation12 + $0x1e0] sm:$0xff]
    %v3029 = vld [vmem:[#allocation12 + $0x1e8] sm:$0xff]
    %v3030 = vld [vmem:[#allocation12 + $0x1f0] sm:$0xff]
    %v3031 = vld [vmem:[#allocation12 + $0x1f8] sm:$0xff]
    %3032 = vmatprep.subr.mxu0 %v3029
    %3033 = vmatpush1.msra.mxu0 %v3028
    %3034 = vmatprep.subr.mxu0 %v3025
    %3035 = vmatpush1.msra.mxu0 %v3024
    %3036 = vmatprep.subr.mxu0 %v3021
    %3037 = vmatpush1.msra.mxu0 %v3020
    %3038 = vmatprep.subr.mxu0 %v3017
    %3039 = vmatpush1.msra.mxu0 %v3016
    %3040 = vmatprep.subr.mxu0 %v3013
    %3041 = vmatpush1.msra.mxu0 %v3012
    %3042 = vmatprep.subr.mxu0 %v3009
    %3043 = vmatpush1.msra.mxu0 %v3008
    %3044 = vmatprep.subr.mxu0 %v3005
    %3045 = vmatpush1.msra.mxu0 %v3004
    %3046 = vmatprep.subr.mxu0 %v3001
    %3047 = vmatpush1.msra.mxu0 %v3000
    %3048 = vmatprep.subr.mxu0 %v2997
    %3049 = vmatpush1.msra.mxu0 %v2996
    %3050 = vmatprep.subr.mxu0 %v2993
    %3051 = vmatpush1.msra.mxu0 %v2992
    %3052 = vmatprep.subr.mxu0 %v2989
    %3053 = vmatpush1.msra.mxu0 %v2988
    %3054 = vmatprep.subr.mxu0 %v2985
    %3055 = vmatpush1.msra.mxu0 %v2984
    %3056 = vmatprep.subr.mxu0 %v2981
    %3057 = vmatpush1.msra.mxu0 %v2980
    %3058 = vmatprep.subr.mxu0 %v2977
    %3059 = vmatpush1.msra.mxu0 %v2976
    %3060 = vmatprep.subr.mxu0 %v2973
    %3061 = vmatpush1.msra.mxu0 %v2972
    %3062 = vmatprep.subr.mxu0 %v2969
    %3063 = vmatpush1.msra.mxu0 %v2968
    %3064 = vmatprep.subr.mxu0 0.0
    %3065 = vmatpush2.msra.mxu0 0.0
    %3066 = vmatprep.subr.mxu0 0.0
    %3067 = vmatpush2.msra.mxu0 0.0
    %3068 = vmatprep.subr.mxu0 0.0
    %3069 = vmatpush2.msra.mxu0 0.0
    %3070 = vmatprep.subr.mxu0 0.0
    %3071 = vmatpush2.msra.mxu0 0.0
    %3072 = vmatprep.subr.mxu0 0.0
    %3073 = vmatpush2.msra.mxu0 0.0
    %3074 = vmatprep.subr.mxu0 0.0
    %3075 = vmatpush2.msra.mxu0 0.0
    %3076 = vmatprep.subr.mxu0 0.0
    %3077 = vmatpush2.msra.mxu0 0.0
    %3078 = vmatprep.subr.mxu0 0.0
    %3079 = vmatpush2.msra.mxu0 0.0
    %3080 = vmatprep.subr.mxu0 0.0
    %3081 = vmatpush2.msra.mxu0 0.0
    %3082 = vmatprep.subr.mxu0 0.0
    %3083 = vmatpush2.msra.mxu0 0.0
    %3084 = vmatprep.subr.mxu0 0.0
    %3085 = vmatpush2.msra.mxu0 0.0
    %3086 = vmatprep.subr.mxu0 0.0
    %3087 = vmatpush2.msra.mxu0 0.0
    %3088 = vmatprep.subr.mxu0 0.0
    %3089 = vmatpush2.msra.mxu0 0.0
    %3090 = vmatprep.subr.mxu0 0.0
    %3091 = vmatpush2.msra.mxu0 0.0
    %3092 = vmatprep.subr.mxu0 0.0
    %3093 = vmatpush2.msra.mxu0 0.0
    %3094 = vmatprep.subr.mxu0 0.0
    %3095 = vmatpush2.msra.mxu0 0.0
    %3096 = vmatprep.mubr.f32.mxu0 0.0
    %3097 = vmatmul.mubr.f32.gmra.mxu0 %v2962
    %v3098 = vpop.f32.mrf.mxu0
    %v3099 = vadd.f32 0.0, %v3098
    %v3100 = vpop.f32.mrf.mxu0
    %v3101 = vadd.f32 0.0, %v3100
    %3102 = vdwg.mxu0
    %3103 = vmatprep.subr.mxu0 %v3031
    %3104 = vmatpush1.msra.mxu0 %v3030
    %3105 = vmatprep.subr.mxu0 %v3027
    %3106 = vmatpush1.msra.mxu0 %v3026
    %3107 = vmatprep.subr.mxu0 %v3023
    %3108 = vmatpush1.msra.mxu0 %v3022
    %3109 = vmatprep.subr.mxu0 %v3019
    %3110 = vmatpush1.msra.mxu0 %v3018
    %3111 = vmatprep.subr.mxu0 %v3015
    %3112 = vmatpush1.msra.mxu0 %v3014
    %3113 = vmatprep.subr.mxu0 %v3011
    %3114 = vmatpush1.msra.mxu0 %v3010
    %3115 = vmatprep.subr.mxu0 %v3007
    %3116 = vmatpush1.msra.mxu0 %v3006
    %3117 = vmatprep.subr.mxu0 %v3003
    %3118 = vmatpush1.msra.mxu0 %v3002
    %3119 = vmatprep.subr.mxu0 %v2999
    %3120 = vmatpush1.msra.mxu0 %v2998
    %3121 = vmatprep.subr.mxu0 %v2995
    %3122 = vmatpush1.msra.mxu0 %v2994
    %3123 = vmatprep.subr.mxu0 %v2991
    %3124 = vmatpush1.msra.mxu0 %v2990
    %3125 = vmatprep.subr.mxu0 %v2987
    %3126 = vmatpush1.msra.mxu0 %v2986
    %3127 = vmatprep.subr.mxu0 %v2983
    %3128 = vmatpush1.msra.mxu0 %v2982
    %3129 = vmatprep.subr.mxu0 %v2979
    %3130 = vmatpush1.msra.mxu0 %v2978
    %3131 = vmatprep.subr.mxu0 %v2975
    %3132 = vmatpush1.msra.mxu0 %v2974
    %3133 = vmatprep.subr.mxu0 %v2971
    %3134 = vmatpush1.msra.mxu0 %v2970
    %3135 = vmatprep.subr.mxu0 0.0
    %3136 = vmatpush2.msra.mxu0 0.0
    %3137 = vmatprep.subr.mxu0 0.0
    %3138 = vmatpush2.msra.mxu0 0.0
    %3139 = vmatprep.subr.mxu0 0.0
    %3140 = vmatpush2.msra.mxu0 0.0
    %3141 = vmatprep.subr.mxu0 0.0
    %3142 = vmatpush2.msra.mxu0 0.0
    %3143 = vmatprep.subr.mxu0 0.0
    %3144 = vmatpush2.msra.mxu0 0.0
    %3145 = vmatprep.subr.mxu0 0.0
    %3146 = vmatpush2.msra.mxu0 0.0
    %3147 = vmatprep.subr.mxu0 0.0
    %3148 = vmatpush2.msra.mxu0 0.0
    %3149 = vmatprep.subr.mxu0 0.0
    %3150 = vmatpush2.msra.mxu0 0.0
    %3151 = vmatprep.subr.mxu0 0.0
    %3152 = vmatpush2.msra.mxu0 0.0
    %3153 = vmatprep.subr.mxu0 0.0
    %3154 = vmatpush2.msra.mxu0 0.0
    %3155 = vmatprep.subr.mxu0 0.0
    %3156 = vmatpush2.msra.mxu0 0.0
    %3157 = vmatprep.subr.mxu0 0.0
    %3158 = vmatpush2.msra.mxu0 0.0
    %3159 = vmatprep.subr.mxu0 0.0
    %3160 = vmatpush2.msra.mxu0 0.0
    %3161 = vmatprep.subr.mxu0 0.0
    %3162 = vmatpush2.msra.mxu0 0.0
    %3163 = vmatprep.subr.mxu0 0.0
    %3164 = vmatpush2.msra.mxu0 0.0
    %3165 = vmatprep.subr.mxu0 0.0
    %3166 = vmatpush2.msra.mxu0 0.0
    %3167 = vmatprep.mubr.f32.mxu0 0.0
    %3168 = vmatmul.mubr.f32.gmra.mxu0 %v2962
    %v3169 = vpop.f32.mrf.mxu0
    %v3170 = vadd.f32 0.0, %v3169
    %v3171 = vpop.f32.mrf.mxu0
    %v3172 = vadd.f32 0.0, %v3171
    %3173 = vdwg.mxu0
    %v3174 = vadd.f32 %v2964, %v3099
    %v3175 = vadd.f32 %v2965, %v3101
    %v3176 = vadd.f32 %v2966, %v3170
    %v3177 = vadd.f32 %v2967, %v3172
    %v3178 = vxor.u32 %v3174, 2147483648
    %v3179 = vmul.f32 %v3178, 1.442695
    %v3180 = vpow.pop %v3179
    %v3181 = vadd.f32 %v3180, 1.0
    %v3182 = vrcp.pop %v3181
    %v3183 = vmul.f32 1.0, %v3182
    %v3184 = vxor.u32 %v3175, 2147483648
    %v3185 = vmul.f32 %v3184, 1.442695
    %v3186 = vpow.pop %v3185
    %v3187 = vadd.f32 %v3186, 1.0
    %v3188 = vrcp.pop %v3187
    %v3189 = vmul.f32 1.0, %v3188
    %v3190 = vtanh.pop %v3176
    %v3191 = vxor.u32 %v3177, 2147483648
    %v3192 = vmul.f32 %v3191, 1.442695
    %v3193 = vpow.pop %v3192
    %v3194 = vadd.f32 %v3193, 1.0
    %v3195 = vrcp.pop %v3194
    %v3196 = vmul.f32 1.0, %v3195
    %v3197 = vmul.f32 %v3189, %v2960
    %v3198 = vmul.f32 %v3183, %v3190
    %v3199 = vadd.f32 %v3197, %v3198
    %v3200 = vtanh.pop %v3199
    %v3201 = vmul.f32 %v3196, %v3200
    %s3202 = scalar_lea.vmem [#allocation13], 8
    %3203 = vst [vmem:[%s3202] sm:$0xff] %v3201
    %v3204 = vld [vmem:[%s927] sm:$0xff]
    %v3205 = vld [vmem:[%s927 + $0x8] sm:$0xff]
    %v3206 = vld [vmem:[%s927 + $0x10] sm:$0xff]
    %v3207 = vld [vmem:[%s927 + $0x18] sm:$0xff]
    %v3208 = vld [vmem:[#allocation12] sm:$0xff]
    %v3209 = vld [vmem:[#allocation12 + $0x8] sm:$0xff]
    %v3210 = vld [vmem:[#allocation12 + $0x10] sm:$0xff]
    %v3211 = vld [vmem:[#allocation12 + $0x18] sm:$0xff]
    %v3212 = vld [vmem:[#allocation12 + $0x20] sm:$0xff]
    %v3213 = vld [vmem:[#allocation12 + $0x28] sm:$0xff]
    %v3214 = vld [vmem:[#allocation12 + $0x30] sm:$0xff]
    %v3215 = vld [vmem:[#allocation12 + $0x38] sm:$0xff]
    %v3216 = vld [vmem:[#allocation12 + $0x40] sm:$0xff]
    %v3217 = vld [vmem:[#allocation12 + $0x48] sm:$0xff]
    %v3218 = vld [vmem:[#allocation12 + $0x50] sm:$0xff]
    %v3219 = vld [vmem:[#allocation12 + $0x58] sm:$0xff]
    %v3220 = vld [vmem:[#allocation12 + $0x60] sm:$0xff]
    %v3221 = vld [vmem:[#allocation12 + $0x68] sm:$0xff]
    %v3222 = vld [vmem:[#allocation12 + $0x70] sm:$0xff]
    %v3223 = vld [vmem:[#allocation12 + $0x78] sm:$0xff]
    %v3224 = vld [vmem:[#allocation12 + $0x80] sm:$0xff]
    %v3225 = vld [vmem:[#allocation12 + $0x88] sm:$0xff]
    %v3226 = vld [vmem:[#allocation12 + $0x90] sm:$0xff]
    %v3227 = vld [vmem:[#allocation12 + $0x98] sm:$0xff]
    %v3228 = vld [vmem:[#allocation12 + $0xa0] sm:$0xff]
    %v3229 = vld [vmem:[#allocation12 + $0xa8] sm:$0xff]
    %v3230 = vld [vmem:[#allocation12 + $0xb0] sm:$0xff]
    %v3231 = vld [vmem:[#allocation12 + $0xb8] sm:$0xff]
    %v3232 = vld [vmem:[#allocation12 + $0xc0] sm:$0xff]
    %v3233 = vld [vmem:[#allocation12 + $0xc8] sm:$0xff]
    %v3234 = vld [vmem:[#allocation12 + $0xd0] sm:$0xff]
    %v3235 = vld [vmem:[#allocation12 + $0xd8] sm:$0xff]
    %v3236 = vld [vmem:[#allocation12 + $0xe0] sm:$0xff]
    %v3237 = vld [vmem:[#allocation12 + $0xe8] sm:$0xff]
    %v3238 = vld [vmem:[#allocation12 + $0xf0] sm:$0xff]
    %v3239 = vld [vmem:[#allocation12 + $0xf8] sm:$0xff]
    %v3240 = vld [vmem:[#allocation12 + $0x100] sm:$0xff]
    %v3241 = vld [vmem:[#allocation12 + $0x108] sm:$0xff]
    %v3242 = vld [vmem:[#allocation12 + $0x110] sm:$0xff]
    %v3243 = vld [vmem:[#allocation12 + $0x118] sm:$0xff]
    %v3244 = vld [vmem:[#allocation12 + $0x120] sm:$0xff]
    %v3245 = vld [vmem:[#allocation12 + $0x128] sm:$0xff]
    %v3246 = vld [vmem:[#allocation12 + $0x130] sm:$0xff]
    %v3247 = vld [vmem:[#allocation12 + $0x138] sm:$0xff]
    %v3248 = vld [vmem:[#allocation12 + $0x140] sm:$0xff]
    %v3249 = vld [vmem:[#allocation12 + $0x148] sm:$0xff]
    %v3250 = vld [vmem:[#allocation12 + $0x150] sm:$0xff]
    %v3251 = vld [vmem:[#allocation12 + $0x158] sm:$0xff]
    %v3252 = vld [vmem:[#allocation12 + $0x160] sm:$0xff]
    %v3253 = vld [vmem:[#allocation12 + $0x168] sm:$0xff]
    %v3254 = vld [vmem:[#allocation12 + $0x170] sm:$0xff]
    %v3255 = vld [vmem:[#allocation12 + $0x178] sm:$0xff]
    %v3256 = vld [vmem:[#allocation12 + $0x180] sm:$0xff]
    %v3257 = vld [vmem:[#allocation12 + $0x188] sm:$0xff]
    %v3258 = vld [vmem:[#allocation12 + $0x190] sm:$0xff]
    %v3259 = vld [vmem:[#allocation12 + $0x198] sm:$0xff]
    %v3260 = vld [vmem:[#allocation12 + $0x1a0] sm:$0xff]
    %v3261 = vld [vmem:[#allocation12 + $0x1a8] sm:$0xff]
    %v3262 = vld [vmem:[#allocation12 + $0x1b0] sm:$0xff]
    %v3263 = vld [vmem:[#allocation12 + $0x1b8] sm:$0xff]
    %v3264 = vld [vmem:[#allocation12 + $0x1c0] sm:$0xff]
    %v3265 = vld [vmem:[#allocation12 + $0x1c8] sm:$0xff]
    %v3266 = vld [vmem:[#allocation12 + $0x1d0] sm:$0xff]
    %v3267 = vld [vmem:[#allocation12 + $0x1d8] sm:$0xff]
    %v3268 = vld [vmem:[#allocation12 + $0x1e0] sm:$0xff]
    %v3269 = vld [vmem:[#allocation12 + $0x1e8] sm:$0xff]
    %v3270 = vld [vmem:[#allocation12 + $0x1f0] sm:$0xff]
    %v3271 = vld [vmem:[#allocation12 + $0x1f8] sm:$0xff]
    %3272 = vmatprep.subr.mxu0 %v3269
    %3273 = vmatpush1.msra.mxu0 %v3268
    %3274 = vmatprep.subr.mxu0 %v3265
    %3275 = vmatpush1.msra.mxu0 %v3264
    %3276 = vmatprep.subr.mxu0 %v3261
    %3277 = vmatpush1.msra.mxu0 %v3260
    %3278 = vmatprep.subr.mxu0 %v3257
    %3279 = vmatpush1.msra.mxu0 %v3256
    %3280 = vmatprep.subr.mxu0 %v3253
    %3281 = vmatpush1.msra.mxu0 %v3252
    %3282 = vmatprep.subr.mxu0 %v3249
    %3283 = vmatpush1.msra.mxu0 %v3248
    %3284 = vmatprep.subr.mxu0 %v3245
    %3285 = vmatpush1.msra.mxu0 %v3244
    %3286 = vmatprep.subr.mxu0 %v3241
    %3287 = vmatpush1.msra.mxu0 %v3240
    %3288 = vmatprep.subr.mxu0 %v3237
    %3289 = vmatpush1.msra.mxu0 %v3236
    %3290 = vmatprep.subr.mxu0 %v3233
    %3291 = vmatpush1.msra.mxu0 %v3232
    %3292 = vmatprep.subr.mxu0 %v3229
    %3293 = vmatpush1.msra.mxu0 %v3228
    %3294 = vmatprep.subr.mxu0 %v3225
    %3295 = vmatpush1.msra.mxu0 %v3224
    %3296 = vmatprep.subr.mxu0 %v3221
    %3297 = vmatpush1.msra.mxu0 %v3220
    %3298 = vmatprep.subr.mxu0 %v3217
    %3299 = vmatpush1.msra.mxu0 %v3216
    %3300 = vmatprep.subr.mxu0 %v3213
    %3301 = vmatpush1.msra.mxu0 %v3212
    %3302 = vmatprep.subr.mxu0 %v3209
    %3303 = vmatpush1.msra.mxu0 %v3208
    %3304 = vmatprep.subr.mxu0 0.0
    %3305 = vmatpush2.msra.mxu0 0.0
    %3306 = vmatprep.subr.mxu0 0.0
    %3307 = vmatpush2.msra.mxu0 0.0
    %3308 = vmatprep.subr.mxu0 0.0
    %3309 = vmatpush2.msra.mxu0 0.0
    %3310 = vmatprep.subr.mxu0 0.0
    %3311 = vmatpush2.msra.mxu0 0.0
    %3312 = vmatprep.subr.mxu0 0.0
    %3313 = vmatpush2.msra.mxu0 0.0
    %3314 = vmatprep.subr.mxu0 0.0
    %3315 = vmatpush2.msra.mxu0 0.0
    %3316 = vmatprep.subr.mxu0 0.0
    %3317 = vmatpush2.msra.mxu0 0.0
    %3318 = vmatprep.subr.mxu0 0.0
    %3319 = vmatpush2.msra.mxu0 0.0
    %3320 = vmatprep.subr.mxu0 0.0
    %3321 = vmatpush2.msra.mxu0 0.0
    %3322 = vmatprep.subr.mxu0 0.0
    %3323 = vmatpush2.msra.mxu0 0.0
    %3324 = vmatprep.subr.mxu0 0.0
    %3325 = vmatpush2.msra.mxu0 0.0
    %3326 = vmatprep.subr.mxu0 0.0
    %3327 = vmatpush2.msra.mxu0 0.0
    %3328 = vmatprep.subr.mxu0 0.0
    %3329 = vmatpush2.msra.mxu0 0.0
    %3330 = vmatprep.subr.mxu0 0.0
    %3331 = vmatpush2.msra.mxu0 0.0
    %3332 = vmatprep.subr.mxu0 0.0
    %3333 = vmatpush2.msra.mxu0 0.0
    %3334 = vmatprep.subr.mxu0 0.0
    %3335 = vmatpush2.msra.mxu0 0.0
    %3336 = vmatprep.mubr.f32.mxu0 0.0
    %3337 = vmatmul.mubr.f32.gmra.mxu0 %v3201
    %v3338 = vpop.f32.mrf.mxu0
    %v3339 = vadd.f32 0.0, %v3338
    %v3340 = vpop.f32.mrf.mxu0
    %v3341 = vadd.f32 0.0, %v3340
    %3342 = vdwg.mxu0
    %3343 = vmatprep.subr.mxu0 %v3271
    %3344 = vmatpush1.msra.mxu0 %v3270
    %3345 = vmatprep.subr.mxu0 %v3267
    %3346 = vmatpush1.msra.mxu0 %v3266
    %3347 = vmatprep.subr.mxu0 %v3263
    %3348 = vmatpush1.msra.mxu0 %v3262
    %3349 = vmatprep.subr.mxu0 %v3259
    %3350 = vmatpush1.msra.mxu0 %v3258
    %3351 = vmatprep.subr.mxu0 %v3255
    %3352 = vmatpush1.msra.mxu0 %v3254
    %3353 = vmatprep.subr.mxu0 %v3251
    %3354 = vmatpush1.msra.mxu0 %v3250
    %3355 = vmatprep.subr.mxu0 %v3247
    %3356 = vmatpush1.msra.mxu0 %v3246
    %3357 = vmatprep.subr.mxu0 %v3243
    %3358 = vmatpush1.msra.mxu0 %v3242
    %3359 = vmatprep.subr.mxu0 %v3239
    %3360 = vmatpush1.msra.mxu0 %v3238
    %3361 = vmatprep.subr.mxu0 %v3235
    %3362 = vmatpush1.msra.mxu0 %v3234
    %3363 = vmatprep.subr.mxu0 %v3231
    %3364 = vmatpush1.msra.mxu0 %v3230
    %3365 = vmatprep.subr.mxu0 %v3227
    %3366 = vmatpush1.msra.mxu0 %v3226
    %3367 = vmatprep.subr.mxu0 %v3223
    %3368 = vmatpush1.msra.mxu0 %v3222
    %3369 = vmatprep.subr.mxu0 %v3219
    %3370 = vmatpush1.msra.mxu0 %v3218
    %3371 = vmatprep.subr.mxu0 %v3215
    %3372 = vmatpush1.msra.mxu0 %v3214
    %3373 = vmatprep.subr.mxu0 %v3211
    %3374 = vmatpush1.msra.mxu0 %v3210
    %3375 = vmatprep.subr.mxu0 0.0
    %3376 = vmatpush2.msra.mxu0 0.0
    %3377 = vmatprep.subr.mxu0 0.0
    %3378 = vmatpush2.msra.mxu0 0.0
    %3379 = vmatprep.subr.mxu0 0.0
    %3380 = vmatpush2.msra.mxu0 0.0
    %3381 = vmatprep.subr.mxu0 0.0
    %3382 = vmatpush2.msra.mxu0 0.0
    %3383 = vmatprep.subr.mxu0 0.0
    %3384 = vmatpush2.msra.mxu0 0.0
    %3385 = vmatprep.subr.mxu0 0.0
    %3386 = vmatpush2.msra.mxu0 0.0
    %3387 = vmatprep.subr.mxu0 0.0
    %3388 = vmatpush2.msra.mxu0 0.0
    %3389 = vmatprep.subr.mxu0 0.0
    %3390 = vmatpush2.msra.mxu0 0.0
    %3391 = vmatprep.subr.mxu0 0.0
    %3392 = vmatpush2.msra.mxu0 0.0
    %3393 = vmatprep.subr.mxu0 0.0
    %3394 = vmatpush2.msra.mxu0 0.0
    %3395 = vmatprep.subr.mxu0 0.0
    %3396 = vmatpush2.msra.mxu0 0.0
    %3397 = vmatprep.subr.mxu0 0.0
    %3398 = vmatpush2.msra.mxu0 0.0
    %3399 = vmatprep.subr.mxu0 0.0
    %3400 = vmatpush2.msra.mxu0 0.0
    %3401 = vmatprep.subr.mxu0 0.0
    %3402 = vmatpush2.msra.mxu0 0.0
    %3403 = vmatprep.subr.mxu0 0.0
    %3404 = vmatpush2.msra.mxu0 0.0
    %3405 = vmatprep.subr.mxu0 0.0
    %3406 = vmatpush2.msra.mxu0 0.0
    %3407 = vmatprep.mubr.f32.mxu0 0.0
    %3408 = vmatmul.mubr.f32.gmra.mxu0 %v3201
    %v3409 = vpop.f32.mrf.mxu0
    %v3410 = vadd.f32 0.0, %v3409
    %v3411 = vpop.f32.mrf.mxu0
    %v3412 = vadd.f32 0.0, %v3411
    %3413 = vdwg.mxu0
    %v3414 = vadd.f32 %v3204, %v3339
    %v3415 = vadd.f32 %v3205, %v3341
    %v3416 = vadd.f32 %v3206, %v3410
    %v3417 = vadd.f32 %v3207, %v3412
    %v3418 = vxor.u32 %v3414, 2147483648
    %v3419 = vmul.f32 %v3418, 1.442695
    %v3420 = vpow.pop %v3419
    %v3421 = vadd.f32 %v3420, 1.0
    %v3422 = vrcp.pop %v3421
    %v3423 = vmul.f32 1.0, %v3422
    %v3424 = vxor.u32 %v3415, 2147483648
    %v3425 = vmul.f32 %v3424, 1.442695
    %v3426 = vpow.pop %v3425
    %v3427 = vadd.f32 %v3426, 1.0
    %v3428 = vrcp.pop %v3427
    %v3429 = vmul.f32 1.0, %v3428
    %v3430 = vtanh.pop %v3416
    %v3431 = vxor.u32 %v3417, 2147483648
    %v3432 = vmul.f32 %v3431, 1.442695
    %v3433 = vpow.pop %v3432
    %v3434 = vadd.f32 %v3433, 1.0
    %v3435 = vrcp.pop %v3434
    %v3436 = vmul.f32 1.0, %v3435
    %v3437 = vmul.f32 %v3429, %v3199
    %v3438 = vmul.f32 %v3423, %v3430
    %v3439 = vadd.f32 %v3437, %v3438
    %v3440 = vtanh.pop %v3439
    %v3441 = vmul.f32 %v3436, %v3440
    %s3442 = scalar_lea.vmem [#allocation13], 16
    %3443 = vst [vmem:[%s3442] sm:$0xff] %v3441
    %v3444 = vld [vmem:[%s1168] sm:$0xff]
    %v3445 = vld [vmem:[%s1168 + $0x8] sm:$0xff]
    %v3446 = vld [vmem:[%s1168 + $0x10] sm:$0xff]
    %v3447 = vld [vmem:[%s1168 + $0x18] sm:$0xff]
    %v3448 = vld [vmem:[#allocation12] sm:$0xff]
    %v3449 = vld [vmem:[#allocation12 + $0x8] sm:$0xff]
    %v3450 = vld [vmem:[#allocation12 + $0x10] sm:$0xff]
    %v3451 = vld [vmem:[#allocation12 + $0x18] sm:$0xff]
    %v3452 = vld [vmem:[#allocation12 + $0x20] sm:$0xff]
    %v3453 = vld [vmem:[#allocation12 + $0x28] sm:$0xff]
    %v3454 = vld [vmem:[#allocation12 + $0x30] sm:$0xff]
    %v3455 = vld [vmem:[#allocation12 + $0x38] sm:$0xff]
    %v3456 = vld [vmem:[#allocation12 + $0x40] sm:$0xff]
    %v3457 = vld [vmem:[#allocation12 + $0x48] sm:$0xff]
    %v3458 = vld [vmem:[#allocation12 + $0x50] sm:$0xff]
    %v3459 = vld [vmem:[#allocation12 + $0x58] sm:$0xff]
    %v3460 = vld [vmem:[#allocation12 + $0x60] sm:$0xff]
    %v3461 = vld [vmem:[#allocation12 + $0x68] sm:$0xff]
    %v3462 = vld [vmem:[#allocation12 + $0x70] sm:$0xff]
    %v3463 = vld [vmem:[#allocation12 + $0x78] sm:$0xff]
    %v3464 = vld [vmem:[#allocation12 + $0x80] sm:$0xff]
    %v3465 = vld [vmem:[#allocation12 + $0x88] sm:$0xff]
    %v3466 = vld [vmem:[#allocation12 + $0x90] sm:$0xff]
    %v3467 = vld [vmem:[#allocation12 + $0x98] sm:$0xff]
    %v3468 = vld [vmem:[#allocation12 + $0xa0] sm:$0xff]
    %v3469 = vld [vmem:[#allocation12 + $0xa8] sm:$0xff]
    %v3470 = vld [vmem:[#allocation12 + $0xb0] sm:$0xff]
    %v3471 = vld [vmem:[#allocation12 + $0xb8] sm:$0xff]
    %v3472 = vld [vmem:[#allocation12 + $0xc0] sm:$0xff]
    %v3473 = vld [vmem:[#allocation12 + $0xc8] sm:$0xff]
    %v3474 = vld [vmem:[#allocation12 + $0xd0] sm:$0xff]
    %v3475 = vld [vmem:[#allocation12 + $0xd8] sm:$0xff]
    %v3476 = vld [vmem:[#allocation12 + $0xe0] sm:$0xff]
    %v3477 = vld [vmem:[#allocation12 + $0xe8] sm:$0xff]
    %v3478 = vld [vmem:[#allocation12 + $0xf0] sm:$0xff]
    %v3479 = vld [vmem:[#allocation12 + $0xf8] sm:$0xff]
    %v3480 = vld [vmem:[#allocation12 + $0x100] sm:$0xff]
    %v3481 = vld [vmem:[#allocation12 + $0x108] sm:$0xff]
    %v3482 = vld [vmem:[#allocation12 + $0x110] sm:$0xff]
    %v3483 = vld [vmem:[#allocation12 + $0x118] sm:$0xff]
    %v3484 = vld [vmem:[#allocation12 + $0x120] sm:$0xff]
    %v3485 = vld [vmem:[#allocation12 + $0x128] sm:$0xff]
    %v3486 = vld [vmem:[#allocation12 + $0x130] sm:$0xff]
    %v3487 = vld [vmem:[#allocation12 + $0x138] sm:$0xff]
    %v3488 = vld [vmem:[#allocation12 + $0x140] sm:$0xff]
    %v3489 = vld [vmem:[#allocation12 + $0x148] sm:$0xff]
    %v3490 = vld [vmem:[#allocation12 + $0x150] sm:$0xff]
    %v3491 = vld [vmem:[#allocation12 + $0x158] sm:$0xff]
    %v3492 = vld [vmem:[#allocation12 + $0x160] sm:$0xff]
    %v3493 = vld [vmem:[#allocation12 + $0x168] sm:$0xff]
    %v3494 = vld [vmem:[#allocation12 + $0x170] sm:$0xff]
    %v3495 = vld [vmem:[#allocation12 + $0x178] sm:$0xff]
    %v3496 = vld [vmem:[#allocation12 + $0x180] sm:$0xff]
    %v3497 = vld [vmem:[#allocation12 + $0x188] sm:$0xff]
    %v3498 = vld [vmem:[#allocation12 + $0x190] sm:$0xff]
    %v3499 = vld [vmem:[#allocation12 + $0x198] sm:$0xff]
    %v3500 = vld [vmem:[#allocation12 + $0x1a0] sm:$0xff]
    %v3501 = vld [vmem:[#allocation12 + $0x1a8] sm:$0xff]
    %v3502 = vld [vmem:[#allocation12 + $0x1b0] sm:$0xff]
    %v3503 = vld [vmem:[#allocation12 + $0x1b8] sm:$0xff]
    %v3504 = vld [vmem:[#allocation12 + $0x1c0] sm:$0xff]
    %v3505 = vld [vmem:[#allocation12 + $0x1c8] sm:$0xff]
    %v3506 = vld [vmem:[#allocation12 + $0x1d0] sm:$0xff]
    %v3507 = vld [vmem:[#allocation12 + $0x1d8] sm:$0xff]
    %v3508 = vld [vmem:[#allocation12 + $0x1e0] sm:$0xff]
    %v3509 = vld [vmem:[#allocation12 + $0x1e8] sm:$0xff]
    %v3510 = vld [vmem:[#allocation12 + $0x1f0] sm:$0xff]
    %v3511 = vld [vmem:[#allocation12 + $0x1f8] sm:$0xff]
    %3512 = vmatprep.subr.mxu0 %v3509
    %3513 = vmatpush1.msra.mxu0 %v3508
    %3514 = vmatprep.subr.mxu0 %v3505
    %3515 = vmatpush1.msra.mxu0 %v3504
    %3516 = vmatprep.subr.mxu0 %v3501
    %3517 = vmatpush1.msra.mxu0 %v3500
    %3518 = vmatprep.subr.mxu0 %v3497
    %3519 = vmatpush1.msra.mxu0 %v3496
    %3520 = vmatprep.subr.mxu0 %v3493
    %3521 = vmatpush1.msra.mxu0 %v3492
    %3522 = vmatprep.subr.mxu0 %v3489
    %3523 = vmatpush1.msra.mxu0 %v3488
    %3524 = vmatprep.subr.mxu0 %v3485
    %3525 = vmatpush1.msra.mxu0 %v3484
    %3526 = vmatprep.subr.mxu0 %v3481
    %3527 = vmatpush1.msra.mxu0 %v3480
    %3528 = vmatprep.subr.mxu0 %v3477
    %3529 = vmatpush1.msra.mxu0 %v3476
    %3530 = vmatprep.subr.mxu0 %v3473
    %3531 = vmatpush1.msra.mxu0 %v3472
    %3532 = vmatprep.subr.mxu0 %v3469
    %3533 = vmatpush1.msra.mxu0 %v3468
    %3534 = vmatprep.subr.mxu0 %v3465
    %3535 = vmatpush1.msra.mxu0 %v3464
    %3536 = vmatprep.subr.mxu0 %v3461
    %3537 = vmatpush1.msra.mxu0 %v3460
    %3538 = vmatprep.subr.mxu0 %v3457
    %3539 = vmatpush1.msra.mxu0 %v3456
    %3540 = vmatprep.subr.mxu0 %v3453
    %3541 = vmatpush1.msra.mxu0 %v3452
    %3542 = vmatprep.subr.mxu0 %v3449
    %3543 = vmatpush1.msra.mxu0 %v3448
    %3544 = vmatprep.subr.mxu0 0.0
    %3545 = vmatpush2.msra.mxu0 0.0
    %3546 = vmatprep.subr.mxu0 0.0
    %3547 = vmatpush2.msra.mxu0 0.0
    %3548 = vmatprep.subr.mxu0 0.0
    %3549 = vmatpush2.msra.mxu0 0.0
    %3550 = vmatprep.subr.mxu0 0.0
    %3551 = vmatpush2.msra.mxu0 0.0
    %3552 = vmatprep.subr.mxu0 0.0
    %3553 = vmatpush2.msra.mxu0 0.0
    %3554 = vmatprep.subr.mxu0 0.0
    %3555 = vmatpush2.msra.mxu0 0.0
    %3556 = vmatprep.subr.mxu0 0.0
    %3557 = vmatpush2.msra.mxu0 0.0
    %3558 = vmatprep.subr.mxu0 0.0
    %3559 = vmatpush2.msra.mxu0 0.0
    %3560 = vmatprep.subr.mxu0 0.0
    %3561 = vmatpush2.msra.mxu0 0.0
    %3562 = vmatprep.subr.mxu0 0.0
    %3563 = vmatpush2.msra.mxu0 0.0
    %3564 = vmatprep.subr.mxu0 0.0
    %3565 = vmatpush2.msra.mxu0 0.0
    %3566 = vmatprep.subr.mxu0 0.0
    %3567 = vmatpush2.msra.mxu0 0.0
    %3568 = vmatprep.subr.mxu0 0.0
    %3569 = vmatpush2.msra.mxu0 0.0
    %3570 = vmatprep.subr.mxu0 0.0
    %3571 = vmatpush2.msra.mxu0 0.0
    %3572 = vmatprep.subr.mxu0 0.0
    %3573 = vmatpush2.msra.mxu0 0.0
    %3574 = vmatprep.subr.mxu0 0.0
    %3575 = vmatpush2.msra.mxu0 0.0
    %3576 = vmatprep.mubr.f32.mxu0 0.0
    %3577 = vmatmul.mubr.f32.gmra.mxu0 %v3441
    %v3578 = vpop.f32.mrf.mxu0
    %v3579 = vadd.f32 0.0, %v3578
    %v3580 = vpop.f32.mrf.mxu0
    %v3581 = vadd.f32 0.0, %v3580
    %3582 = vdwg.mxu0
    %3583 = vmatprep.subr.mxu0 %v3511
    %3584 = vmatpush1.msra.mxu0 %v3510
    %3585 = vmatprep.subr.mxu0 %v3507
    %3586 = vmatpush1.msra.mxu0 %v3506
    %3587 = vmatprep.subr.mxu0 %v3503
    %3588 = vmatpush1.msra.mxu0 %v3502
    %3589 = vmatprep.subr.mxu0 %v3499
    %3590 = vmatpush1.msra.mxu0 %v3498
    %3591 = vmatprep.subr.mxu0 %v3495
    %3592 = vmatpush1.msra.mxu0 %v3494
    %3593 = vmatprep.subr.mxu0 %v3491
    %3594 = vmatpush1.msra.mxu0 %v3490
    %3595 = vmatprep.subr.mxu0 %v3487
    %3596 = vmatpush1.msra.mxu0 %v3486
    %3597 = vmatprep.subr.mxu0 %v3483
    %3598 = vmatpush1.msra.mxu0 %v3482
    %3599 = vmatprep.subr.mxu0 %v3479
    %3600 = vmatpush1.msra.mxu0 %v3478
    %3601 = vmatprep.subr.mxu0 %v3475
    %3602 = vmatpush1.msra.mxu0 %v3474
    %3603 = vmatprep.subr.mxu0 %v3471
    %3604 = vmatpush1.msra.mxu0 %v3470
    %3605 = vmatprep.subr.mxu0 %v3467
    %3606 = vmatpush1.msra.mxu0 %v3466
    %3607 = vmatprep.subr.mxu0 %v3463
    %3608 = vmatpush1.msra.mxu0 %v3462
    %3609 = vmatprep.subr.mxu0 %v3459
    %3610 = vmatpush1.msra.mxu0 %v3458
    %3611 = vmatprep.subr.mxu0 %v3455
    %3612 = vmatpush1.msra.mxu0 %v3454
    %3613 = vmatprep.subr.mxu0 %v3451
    %3614 = vmatpush1.msra.mxu0 %v3450
    %3615 = vmatprep.subr.mxu0 0.0
    %3616 = vmatpush2.msra.mxu0 0.0
    %3617 = vmatprep.subr.mxu0 0.0
    %3618 = vmatpush2.msra.mxu0 0.0
    %3619 = vmatprep.subr.mxu0 0.0
    %3620 = vmatpush2.msra.mxu0 0.0
    %3621 = vmatprep.subr.mxu0 0.0
    %3622 = vmatpush2.msra.mxu0 0.0
    %3623 = vmatprep.subr.mxu0 0.0
    %3624 = vmatpush2.msra.mxu0 0.0
    %3625 = vmatprep.subr.mxu0 0.0
    %3626 = vmatpush2.msra.mxu0 0.0
    %3627 = vmatprep.subr.mxu0 0.0
    %3628 = vmatpush2.msra.mxu0 0.0
    %3629 = vmatprep.subr.mxu0 0.0
    %3630 = vmatpush2.msra.mxu0 0.0
    %3631 = vmatprep.subr.mxu0 0.0
    %3632 = vmatpush2.msra.mxu0 0.0
    %3633 = vmatprep.subr.mxu0 0.0
    %3634 = vmatpush2.msra.mxu0 0.0
    %3635 = vmatprep.subr.mxu0 0.0
    %3636 = vmatpush2.msra.mxu0 0.0
    %3637 = vmatprep.subr.mxu0 0.0
    %3638 = vmatpush2.msra.mxu0 0.0
    %3639 = vmatprep.subr.mxu0 0.0
    %3640 = vmatpush2.msra.mxu0 0.0
    %3641 = vmatprep.subr.mxu0 0.0
    %3642 = vmatpush2.msra.mxu0 0.0
    %3643 = vmatprep.subr.mxu0 0.0
    %3644 = vmatpush2.msra.mxu0 0.0
    %3645 = vmatprep.subr.mxu0 0.0
    %3646 = vmatpush2.msra.mxu0 0.0
    %3647 = vmatprep.mubr.f32.mxu0 0.0
    %3648 = vmatmul.mubr.f32.gmra.mxu0 %v3441
    %v3649 = vpop.f32.mrf.mxu0
    %v3650 = vadd.f32 0.0, %v3649
    %v3651 = vpop.f32.mrf.mxu0
    %v3652 = vadd.f32 0.0, %v3651
    %3653 = vdwg.mxu0
    %v3654 = vadd.f32 %v3444, %v3579
    %v3655 = vadd.f32 %v3445, %v3581
    %v3656 = vadd.f32 %v3446, %v3650
    %v3657 = vadd.f32 %v3447, %v3652
    %v3658 = vxor.u32 %v3654, 2147483648
    %v3659 = vmul.f32 %v3658, 1.442695
    %v3660 = vpow.pop %v3659
    %v3661 = vadd.f32 %v3660, 1.0
    %v3662 = vrcp.pop %v3661
    %v3663 = vmul.f32 1.0, %v3662
    %v3664 = vxor.u32 %v3655, 2147483648
    %v3665 = vmul.f32 %v3664, 1.442695
    %v3666 = vpow.pop %v3665
    %v3667 = vadd.f32 %v3666, 1.0
    %v3668 = vrcp.pop %v3667
    %v3669 = vmul.f32 1.0, %v3668
    %v3670 = vtanh.pop %v3656
    %v3671 = vxor.u32 %v3657, 2147483648
    %v3672 = vmul.f32 %v3671, 1.442695
    %v3673 = vpow.pop %v3672
    %v3674 = vadd.f32 %v3673, 1.0
    %v3675 = vrcp.pop %v3674
    %v3676 = vmul.f32 1.0, %v3675
    %v3677 = vmul.f32 %v3669, %v3439
    %v3678 = vmul.f32 %v3663, %v3670
    %v3679 = vadd.f32 %v3677, %v3678
    %v3680 = vtanh.pop %v3679
    %v3681 = vmul.f32 %v3676, %v3680
    %s3682 = scalar_lea.vmem [#allocation13], 24
    %3683 = vst [vmem:[%s3682] sm:$0xff] %v3681
    %v3684 = vld [vmem:[%s1409] sm:$0xff]
    %v3685 = vld [vmem:[%s1409 + $0x8] sm:$0xff]
    %v3686 = vld [vmem:[%s1409 + $0x10] sm:$0xff]
    %v3687 = vld [vmem:[%s1409 + $0x18] sm:$0xff]
    %v3688 = vld [vmem:[#allocation12] sm:$0xff]
    %v3689 = vld [vmem:[#allocation12 + $0x8] sm:$0xff]
    %v3690 = vld [vmem:[#allocation12 + $0x10] sm:$0xff]
    %v3691 = vld [vmem:[#allocation12 + $0x18] sm:$0xff]
    %v3692 = vld [vmem:[#allocation12 + $0x20] sm:$0xff]
    %v3693 = vld [vmem:[#allocation12 + $0x28] sm:$0xff]
    %v3694 = vld [vmem:[#allocation12 + $0x30] sm:$0xff]
    %v3695 = vld [vmem:[#allocation12 + $0x38] sm:$0xff]
    %v3696 = vld [vmem:[#allocation12 + $0x40] sm:$0xff]
    %v3697 = vld [vmem:[#allocation12 + $0x48] sm:$0xff]
    %v3698 = vld [vmem:[#allocation12 + $0x50] sm:$0xff]
    %v3699 = vld [vmem:[#allocation12 + $0x58] sm:$0xff]
    %v3700 = vld [vmem:[#allocation12 + $0x60] sm:$0xff]
    %v3701 = vld [vmem:[#allocation12 + $0x68] sm:$0xff]
    %v3702 = vld [vmem:[#allocation12 + $0x70] sm:$0xff]
    %v3703 = vld [vmem:[#allocation12 + $0x78] sm:$0xff]
    %v3704 = vld [vmem:[#allocation12 + $0x80] sm:$0xff]
    %v3705 = vld [vmem:[#allocation12 + $0x88] sm:$0xff]
    %v3706 = vld [vmem:[#allocation12 + $0x90] sm:$0xff]
    %v3707 = vld [vmem:[#allocation12 + $0x98] sm:$0xff]
    %v3708 = vld [vmem:[#allocation12 + $0xa0] sm:$0xff]
    %v3709 = vld [vmem:[#allocation12 + $0xa8] sm:$0xff]
    %v3710 = vld [vmem:[#allocation12 + $0xb0] sm:$0xff]
    %v3711 = vld [vmem:[#allocation12 + $0xb8] sm:$0xff]
    %v3712 = vld [vmem:[#allocation12 + $0xc0] sm:$0xff]
    %v3713 = vld [vmem:[#allocation12 + $0xc8] sm:$0xff]
    %v3714 = vld [vmem:[#allocation12 + $0xd0] sm:$0xff]
    %v3715 = vld [vmem:[#allocation12 + $0xd8] sm:$0xff]
    %v3716 = vld [vmem:[#allocation12 + $0xe0] sm:$0xff]
    %v3717 = vld [vmem:[#allocation12 + $0xe8] sm:$0xff]
    %v3718 = vld [vmem:[#allocation12 + $0xf0] sm:$0xff]
    %v3719 = vld [vmem:[#allocation12 + $0xf8] sm:$0xff]
    %v3720 = vld [vmem:[#allocation12 + $0x100] sm:$0xff]
    %v3721 = vld [vmem:[#allocation12 + $0x108] sm:$0xff]
    %v3722 = vld [vmem:[#allocation12 + $0x110] sm:$0xff]
    %v3723 = vld [vmem:[#allocation12 + $0x118] sm:$0xff]
    %v3724 = vld [vmem:[#allocation12 + $0x120] sm:$0xff]
    %v3725 = vld [vmem:[#allocation12 + $0x128] sm:$0xff]
    %v3726 = vld [vmem:[#allocation12 + $0x130] sm:$0xff]
    %v3727 = vld [vmem:[#allocation12 + $0x138] sm:$0xff]
    %v3728 = vld [vmem:[#allocation12 + $0x140] sm:$0xff]
    %v3729 = vld [vmem:[#allocation12 + $0x148] sm:$0xff]
    %v3730 = vld [vmem:[#allocation12 + $0x150] sm:$0xff]
    %v3731 = vld [vmem:[#allocation12 + $0x158] sm:$0xff]
    %v3732 = vld [vmem:[#allocation12 + $0x160] sm:$0xff]
    %v3733 = vld [vmem:[#allocation12 + $0x168] sm:$0xff]
    %v3734 = vld [vmem:[#allocation12 + $0x170] sm:$0xff]
    %v3735 = vld [vmem:[#allocation12 + $0x178] sm:$0xff]
    %v3736 = vld [vmem:[#allocation12 + $0x180] sm:$0xff]
    %v3737 = vld [vmem:[#allocation12 + $0x188] sm:$0xff]
    %v3738 = vld [vmem:[#allocation12 + $0x190] sm:$0xff]
    %v3739 = vld [vmem:[#allocation12 + $0x198] sm:$0xff]
    %v3740 = vld [vmem:[#allocation12 + $0x1a0] sm:$0xff]
    %v3741 = vld [vmem:[#allocation12 + $0x1a8] sm:$0xff]
    %v3742 = vld [vmem:[#allocation12 + $0x1b0] sm:$0xff]
    %v3743 = vld [vmem:[#allocation12 + $0x1b8] sm:$0xff]
    %v3744 = vld [vmem:[#allocation12 + $0x1c0] sm:$0xff]
    %v3745 = vld [vmem:[#allocation12 + $0x1c8] sm:$0xff]
    %v3746 = vld [vmem:[#allocation12 + $0x1d0] sm:$0xff]
    %v3747 = vld [vmem:[#allocation12 + $0x1d8] sm:$0xff]
    %v3748 = vld [vmem:[#allocation12 + $0x1e0] sm:$0xff]
    %v3749 = vld [vmem:[#allocation12 + $0x1e8] sm:$0xff]
    %v3750 = vld [vmem:[#allocation12 + $0x1f0] sm:$0xff]
    %v3751 = vld [vmem:[#allocation12 + $0x1f8] sm:$0xff]
    %3752 = vmatprep.subr.mxu0 %v3749
    %3753 = vmatpush1.msra.mxu0 %v3748
    %3754 = vmatprep.subr.mxu0 %v3745
    %3755 = vmatpush1.msra.mxu0 %v3744
    %3756 = vmatprep.subr.mxu0 %v3741
    %3757 = vmatpush1.msra.mxu0 %v3740
    %3758 = vmatprep.subr.mxu0 %v3737
    %3759 = vmatpush1.msra.mxu0 %v3736
    %3760 = vmatprep.subr.mxu0 %v3733
    %3761 = vmatpush1.msra.mxu0 %v3732
    %3762 = vmatprep.subr.mxu0 %v3729
    %3763 = vmatpush1.msra.mxu0 %v3728
    %3764 = vmatprep.subr.mxu0 %v3725
    %3765 = vmatpush1.msra.mxu0 %v3724
    %3766 = vmatprep.subr.mxu0 %v3721
    %3767 = vmatpush1.msra.mxu0 %v3720
    %3768 = vmatprep.subr.mxu0 %v3717
    %3769 = vmatpush1.msra.mxu0 %v3716
    %3770 = vmatprep.subr.mxu0 %v3713
    %3771 = vmatpush1.msra.mxu0 %v3712
    %3772 = vmatprep.subr.mxu0 %v3709
    %3773 = vmatpush1.msra.mxu0 %v3708
    %3774 = vmatprep.subr.mxu0 %v3705
    %3775 = vmatpush1.msra.mxu0 %v3704
    %3776 = vmatprep.subr.mxu0 %v3701
    %3777 = vmatpush1.msra.mxu0 %v3700
    %3778 = vmatprep.subr.mxu0 %v3697
    %3779 = vmatpush1.msra.mxu0 %v3696
    %3780 = vmatprep.subr.mxu0 %v3693
    %3781 = vmatpush1.msra.mxu0 %v3692
    %3782 = vmatprep.subr.mxu0 %v3689
    %3783 = vmatpush1.msra.mxu0 %v3688
    %3784 = vmatprep.subr.mxu0 0.0
    %3785 = vmatpush2.msra.mxu0 0.0
    %3786 = vmatprep.subr.mxu0 0.0
    %3787 = vmatpush2.msra.mxu0 0.0
    %3788 = vmatprep.subr.mxu0 0.0
    %3789 = vmatpush2.msra.mxu0 0.0
    %3790 = vmatprep.subr.mxu0 0.0
    %3791 = vmatpush2.msra.mxu0 0.0
    %3792 = vmatprep.subr.mxu0 0.0
    %3793 = vmatpush2.msra.mxu0 0.0
    %3794 = vmatprep.subr.mxu0 0.0
    %3795 = vmatpush2.msra.mxu0 0.0
    %3796 = vmatprep.subr.mxu0 0.0
    %3797 = vmatpush2.msra.mxu0 0.0
    %3798 = vmatprep.subr.mxu0 0.0
    %3799 = vmatpush2.msra.mxu0 0.0
    %3800 = vmatprep.subr.mxu0 0.0
    %3801 = vmatpush2.msra.mxu0 0.0
    %3802 = vmatprep.subr.mxu0 0.0
    %3803 = vmatpush2.msra.mxu0 0.0
    %3804 = vmatprep.subr.mxu0 0.0
    %3805 = vmatpush2.msra.mxu0 0.0
    %3806 = vmatprep.subr.mxu0 0.0
    %3807 = vmatpush2.msra.mxu0 0.0
    %3808 = vmatprep.subr.mxu0 0.0
    %3809 = vmatpush2.msra.mxu0 0.0
    %3810 = vmatprep.subr.mxu0 0.0
    %3811 = vmatpush2.msra.mxu0 0.0
    %3812 = vmatprep.subr.mxu0 0.0
    %3813 = vmatpush2.msra.mxu0 0.0
    %3814 = vmatprep.subr.mxu0 0.0
    %3815 = vmatpush2.msra.mxu0 0.0
    %3816 = vmatprep.mubr.f32.mxu0 0.0
    %3817 = vmatmul.mubr.f32.gmra.mxu0 %v3681
    %v3818 = vpop.f32.mrf.mxu0
    %v3819 = vadd.f32 0.0, %v3818
    %v3820 = vpop.f32.mrf.mxu0
    %v3821 = vadd.f32 0.0, %v3820
    %3822 = vdwg.mxu0
    %3823 = vmatprep.subr.mxu0 %v3751
    %3824 = vmatpush1.msra.mxu0 %v3750
    %3825 = vmatprep.subr.mxu0 %v3747
    %3826 = vmatpush1.msra.mxu0 %v3746
    %3827 = vmatprep.subr.mxu0 %v3743
    %3828 = vmatpush1.msra.mxu0 %v3742
    %3829 = vmatprep.subr.mxu0 %v3739
    %3830 = vmatpush1.msra.mxu0 %v3738
    %3831 = vmatprep.subr.mxu0 %v3735
    %3832 = vmatpush1.msra.mxu0 %v3734
    %3833 = vmatprep.subr.mxu0 %v3731
    %3834 = vmatpush1.msra.mxu0 %v3730
    %3835 = vmatprep.subr.mxu0 %v3727
    %3836 = vmatpush1.msra.mxu0 %v3726
    %3837 = vmatprep.subr.mxu0 %v3723
    %3838 = vmatpush1.msra.mxu0 %v3722
    %3839 = vmatprep.subr.mxu0 %v3719
    %3840 = vmatpush1.msra.mxu0 %v3718
    %3841 = vmatprep.subr.mxu0 %v3715
    %3842 = vmatpush1.msra.mxu0 %v3714
    %3843 = vmatprep.subr.mxu0 %v3711
    %3844 = vmatpush1.msra.mxu0 %v3710
    %3845 = vmatprep.subr.mxu0 %v3707
    %3846 = vmatpush1.msra.mxu0 %v3706
    %3847 = vmatprep.subr.mxu0 %v3703
    %3848 = vmatpush1.msra.mxu0 %v3702
    %3849 = vmatprep.subr.mxu0 %v3699
    %3850 = vmatpush1.msra.mxu0 %v3698
    %3851 = vmatprep.subr.mxu0 %v3695
    %3852 = vmatpush1.msra.mxu0 %v3694
    %3853 = vmatprep.subr.mxu0 %v3691
    %3854 = vmatpush1.msra.mxu0 %v3690
    %3855 = vmatprep.subr.mxu0 0.0
    %3856 = vmatpush2.msra.mxu0 0.0
    %3857 = vmatprep.subr.mxu0 0.0
    %3858 = vmatpush2.msra.mxu0 0.0
    %3859 = vmatprep.subr.mxu0 0.0
    %3860 = vmatpush2.msra.mxu0 0.0
    %3861 = vmatprep.subr.mxu0 0.0
    %3862 = vmatpush2.msra.mxu0 0.0
    %3863 = vmatprep.subr.mxu0 0.0
    %3864 = vmatpush2.msra.mxu0 0.0
    %3865 = vmatprep.subr.mxu0 0.0
    %3866 = vmatpush2.msra.mxu0 0.0
    %3867 = vmatprep.subr.mxu0 0.0
    %3868 = vmatpush2.msra.mxu0 0.0
    %3869 = vmatprep.subr.mxu0 0.0
    %3870 = vmatpush2.msra.mxu0 0.0
    %3871 = vmatprep.subr.mxu0 0.0
    %3872 = vmatpush2.msra.mxu0 0.0
    %3873 = vmatprep.subr.mxu0 0.0
    %3874 = vmatpush2.msra.mxu0 0.0
    %3875 = vmatprep.subr.mxu0 0.0
    %3876 = vmatpush2.msra.mxu0 0.0
    %3877 = vmatprep.subr.mxu0 0.0
    %3878 = vmatpush2.msra.mxu0 0.0
    %3879 = vmatprep.subr.mxu0 0.0
    %3880 = vmatpush2.msra.mxu0 0.0
    %3881 = vmatprep.subr.mxu0 0.0
    %3882 = vmatpush2.msra.mxu0 0.0
    %3883 = vmatprep.subr.mxu0 0.0
    %3884 = vmatpush2.msra.mxu0 0.0
    %3885 = vmatprep.subr.mxu0 0.0
    %3886 = vmatpush2.msra.mxu0 0.0
    %3887 = vmatprep.mubr.f32.mxu0 0.0
    %3888 = vmatmul.mubr.f32.gmra.mxu0 %v3681
    %v3889 = vpop.f32.mrf.mxu0
    %v3890 = vadd.f32 0.0, %v3889
    %v3891 = vpop.f32.mrf.mxu0
    %v3892 = vadd.f32 0.0, %v3891
    %3893 = vdwg.mxu0
    %v3894 = vadd.f32 %v3684, %v3819
    %v3895 = vadd.f32 %v3685, %v3821
    %v3896 = vadd.f32 %v3686, %v3890
    %v3897 = vadd.f32 %v3687, %v3892
    %v3898 = vxor.u32 %v3894, 2147483648
    %v3899 = vmul.f32 %v3898, 1.442695
    %v3900 = vpow.pop %v3899
    %v3901 = vadd.f32 %v3900, 1.0
    %v3902 = vrcp.pop %v3901
    %v3903 = vmul.f32 1.0, %v3902
    %v3904 = vxor.u32 %v3895, 2147483648
    %v3905 = vmul.f32 %v3904, 1.442695
    %v3906 = vpow.pop %v3905
    %v3907 = vadd.f32 %v3906, 1.0
    %v3908 = vrcp.pop %v3907
    %v3909 = vmul.f32 1.0, %v3908
    %v3910 = vtanh.pop %v3896
    %v3911 = vxor.u32 %v3897, 2147483648
    %v3912 = vmul.f32 %v3911, 1.442695
    %v3913 = vpow.pop %v3912
    %v3914 = vadd.f32 %v3913, 1.0
    %v3915 = vrcp.pop %v3914
    %v3916 = vmul.f32 1.0, %v3915
    %v3917 = vmul.f32 %v3909, %v3679
    %v3918 = vmul.f32 %v3903, %v3910
    %v3919 = vadd.f32 %v3917, %v3918
    %v3920 = vtanh.pop %v3919
    %v3921 = vmul.f32 %v3916, %v3920
    %s3922 = scalar_lea.vmem [#allocation13], 32
    %3923 = vst [vmem:[%s3922] sm:$0xff] %v3921
    %v3924 = vld [vmem:[%s1650] sm:$0xff]
    %v3925 = vld [vmem:[%s1650 + $0x8] sm:$0xff]
    %v3926 = vld [vmem:[%s1650 + $0x10] sm:$0xff]
    %v3927 = vld [vmem:[%s1650 + $0x18] sm:$0xff]
    %v3928 = vld [vmem:[#allocation12] sm:$0xff]
    %v3929 = vld [vmem:[#allocation12 + $0x8] sm:$0xff]
    %v3930 = vld [vmem:[#allocation12 + $0x10] sm:$0xff]
    %v3931 = vld [vmem:[#allocation12 + $0x18] sm:$0xff]
    %v3932 = vld [vmem:[#allocation12 + $0x20] sm:$0xff]
    %v3933 = vld [vmem:[#allocation12 + $0x28] sm:$0xff]
    %v3934 = vld [vmem:[#allocation12 + $0x30] sm:$0xff]
    %v3935 = vld [vmem:[#allocation12 + $0x38] sm:$0xff]
    %v3936 = vld [vmem:[#allocation12 + $0x40] sm:$0xff]
    %v3937 = vld [vmem:[#allocation12 + $0x48] sm:$0xff]
    %v3938 = vld [vmem:[#allocation12 + $0x50] sm:$0xff]
    %v3939 = vld [vmem:[#allocation12 + $0x58] sm:$0xff]
    %v3940 = vld [vmem:[#allocation12 + $0x60] sm:$0xff]
    %v3941 = vld [vmem:[#allocation12 + $0x68] sm:$0xff]
    %v3942 = vld [vmem:[#allocation12 + $0x70] sm:$0xff]
    %v3943 = vld [vmem:[#allocation12 + $0x78] sm:$0xff]
    %v3944 = vld [vmem:[#allocation12 + $0x80] sm:$0xff]
    %v3945 = vld [vmem:[#allocation12 + $0x88] sm:$0xff]
    %v3946 = vld [vmem:[#allocation12 + $0x90] sm:$0xff]
    %v3947 = vld [vmem:[#allocation12 + $0x98] sm:$0xff]
    %v3948 = vld [vmem:[#allocation12 + $0xa0] sm:$0xff]
    %v3949 = vld [vmem:[#allocation12 + $0xa8] sm:$0xff]
    %v3950 = vld [vmem:[#allocation12 + $0xb0] sm:$0xff]
    %v3951 = vld [vmem:[#allocation12 + $0xb8] sm:$0xff]
    %v3952 = vld [vmem:[#allocation12 + $0xc0] sm:$0xff]
    %v3953 = vld [vmem:[#allocation12 + $0xc8] sm:$0xff]
    %v3954 = vld [vmem:[#allocation12 + $0xd0] sm:$0xff]
    %v3955 = vld [vmem:[#allocation12 + $0xd8] sm:$0xff]
    %v3956 = vld [vmem:[#allocation12 + $0xe0] sm:$0xff]
    %v3957 = vld [vmem:[#allocation12 + $0xe8] sm:$0xff]
    %v3958 = vld [vmem:[#allocation12 + $0xf0] sm:$0xff]
    %v3959 = vld [vmem:[#allocation12 + $0xf8] sm:$0xff]
    %v3960 = vld [vmem:[#allocation12 + $0x100] sm:$0xff]
    %v3961 = vld [vmem:[#allocation12 + $0x108] sm:$0xff]
    %v3962 = vld [vmem:[#allocation12 + $0x110] sm:$0xff]
    %v3963 = vld [vmem:[#allocation12 + $0x118] sm:$0xff]
    %v3964 = vld [vmem:[#allocation12 + $0x120] sm:$0xff]
    %v3965 = vld [vmem:[#allocation12 + $0x128] sm:$0xff]
    %v3966 = vld [vmem:[#allocation12 + $0x130] sm:$0xff]
    %v3967 = vld [vmem:[#allocation12 + $0x138] sm:$0xff]
    %v3968 = vld [vmem:[#allocation12 + $0x140] sm:$0xff]
    %v3969 = vld [vmem:[#allocation12 + $0x148] sm:$0xff]
    %v3970 = vld [vmem:[#allocation12 + $0x150] sm:$0xff]
    %v3971 = vld [vmem:[#allocation12 + $0x158] sm:$0xff]
    %v3972 = vld [vmem:[#allocation12 + $0x160] sm:$0xff]
    %v3973 = vld [vmem:[#allocation12 + $0x168] sm:$0xff]
    %v3974 = vld [vmem:[#allocation12 + $0x170] sm:$0xff]
    %v3975 = vld [vmem:[#allocation12 + $0x178] sm:$0xff]
    %v3976 = vld [vmem:[#allocation12 + $0x180] sm:$0xff]
    %v3977 = vld [vmem:[#allocation12 + $0x188] sm:$0xff]
    %v3978 = vld [vmem:[#allocation12 + $0x190] sm:$0xff]
    %v3979 = vld [vmem:[#allocation12 + $0x198] sm:$0xff]
    %v3980 = vld [vmem:[#allocation12 + $0x1a0] sm:$0xff]
    %v3981 = vld [vmem:[#allocation12 + $0x1a8] sm:$0xff]
    %v3982 = vld [vmem:[#allocation12 + $0x1b0] sm:$0xff]
    %v3983 = vld [vmem:[#allocation12 + $0x1b8] sm:$0xff]
    %v3984 = vld [vmem:[#allocation12 + $0x1c0] sm:$0xff]
    %v3985 = vld [vmem:[#allocation12 + $0x1c8] sm:$0xff]
    %v3986 = vld [vmem:[#allocation12 + $0x1d0] sm:$0xff]
    %v3987 = vld [vmem:[#allocation12 + $0x1d8] sm:$0xff]
    %v3988 = vld [vmem:[#allocation12 + $0x1e0] sm:$0xff]
    %v3989 = vld [vmem:[#allocation12 + $0x1e8] sm:$0xff]
    %v3990 = vld [vmem:[#allocation12 + $0x1f0] sm:$0xff]
    %v3991 = vld [vmem:[#allocation12 + $0x1f8] sm:$0xff]
    %3992 = vmatprep.subr.mxu0 %v3989
    %3993 = vmatpush1.msra.mxu0 %v3988
    %3994 = vmatprep.subr.mxu0 %v3985
    %3995 = vmatpush1.msra.mxu0 %v3984
    %3996 = vmatprep.subr.mxu0 %v3981
    %3997 = vmatpush1.msra.mxu0 %v3980
    %3998 = vmatprep.subr.mxu0 %v3977
    %3999 = vmatpush1.msra.mxu0 %v3976
    %4000 = vmatprep.subr.mxu0 %v3973
    %4001 = vmatpush1.msra.mxu0 %v3972
    %4002 = vmatprep.subr.mxu0 %v3969
    %4003 = vmatpush1.msra.mxu0 %v3968
    %4004 = vmatprep.subr.mxu0 %v3965
    %4005 = vmatpush1.msra.mxu0 %v3964
    %4006 = vmatprep.subr.mxu0 %v3961
    %4007 = vmatpush1.msra.mxu0 %v3960
    %4008 = vmatprep.subr.mxu0 %v3957
    %4009 = vmatpush1.msra.mxu0 %v3956
    %4010 = vmatprep.subr.mxu0 %v3953
    %4011 = vmatpush1.msra.mxu0 %v3952
    %4012 = vmatprep.subr.mxu0 %v3949
    %4013 = vmatpush1.msra.mxu0 %v3948
    %4014 = vmatprep.subr.mxu0 %v3945
    %4015 = vmatpush1.msra.mxu0 %v3944
    %4016 = vmatprep.subr.mxu0 %v3941
    %4017 = vmatpush1.msra.mxu0 %v3940
    %4018 = vmatprep.subr.mxu0 %v3937
    %4019 = vmatpush1.msra.mxu0 %v3936
    %4020 = vmatprep.subr.mxu0 %v3933
    %4021 = vmatpush1.msra.mxu0 %v3932
    %4022 = vmatprep.subr.mxu0 %v3929
    %4023 = vmatpush1.msra.mxu0 %v3928
    %4024 = vmatprep.subr.mxu0 0.0
    %4025 = vmatpush2.msra.mxu0 0.0
    %4026 = vmatprep.subr.mxu0 0.0
    %4027 = vmatpush2.msra.mxu0 0.0
    %4028 = vmatprep.subr.mxu0 0.0
    %4029 = vmatpush2.msra.mxu0 0.0
    %4030 = vmatprep.subr.mxu0 0.0
    %4031 = vmatpush2.msra.mxu0 0.0
    %4032 = vmatprep.subr.mxu0 0.0
    %4033 = vmatpush2.msra.mxu0 0.0
    %4034 = vmatprep.subr.mxu0 0.0
    %4035 = vmatpush2.msra.mxu0 0.0
    %4036 = vmatprep.subr.mxu0 0.0
    %4037 = vmatpush2.msra.mxu0 0.0
    %4038 = vmatprep.subr.mxu0 0.0
    %4039 = vmatpush2.msra.mxu0 0.0
    %4040 = vmatprep.subr.mxu0 0.0
    %4041 = vmatpush2.msra.mxu0 0.0
    %4042 = vmatprep.subr.mxu0 0.0
    %4043 = vmatpush2.msra.mxu0 0.0
    %4044 = vmatprep.subr.mxu0 0.0
    %4045 = vmatpush2.msra.mxu0 0.0
    %4046 = vmatprep.subr.mxu0 0.0
    %4047 = vmatpush2.msra.mxu0 0.0
    %4048 = vmatprep.subr.mxu0 0.0
    %4049 = vmatpush2.msra.mxu0 0.0
    %4050 = vmatprep.subr.mxu0 0.0
    %4051 = vmatpush2.msra.mxu0 0.0
    %4052 = vmatprep.subr.mxu0 0.0
    %4053 = vmatpush2.msra.mxu0 0.0
    %4054 = vmatprep.subr.mxu0 0.0
    %4055 = vmatpush2.msra.mxu0 0.0
    %4056 = vmatprep.mubr.f32.mxu0 0.0
    %4057 = vmatmul.mubr.f32.gmra.mxu0 %v3921
    %v4058 = vpop.f32.mrf.mxu0
    %v4059 = vadd.f32 0.0, %v4058
    %v4060 = vpop.f32.mrf.mxu0
    %v4061 = vadd.f32 0.0, %v4060
    %4062 = vdwg.mxu0
    %4063 = vmatprep.subr.mxu0 %v3991
    %4064 = vmatpush1.msra.mxu0 %v3990
    %4065 = vmatprep.subr.mxu0 %v3987
    %4066 = vmatpush1.msra.mxu0 %v3986
    %4067 = vmatprep.subr.mxu0 %v3983
    %4068 = vmatpush1.msra.mxu0 %v3982
    %4069 = vmatprep.subr.mxu0 %v3979
    %4070 = vmatpush1.msra.mxu0 %v3978
    %4071 = vmatprep.subr.mxu0 %v3975
    %4072 = vmatpush1.msra.mxu0 %v3974
    %4073 = vmatprep.subr.mxu0 %v3971
    %4074 = vmatpush1.msra.mxu0 %v3970
    %4075 = vmatprep.subr.mxu0 %v3967
    %4076 = vmatpush1.msra.mxu0 %v3966
    %4077 = vmatprep.subr.mxu0 %v3963
    %4078 = vmatpush1.msra.mxu0 %v3962
    %4079 = vmatprep.subr.mxu0 %v3959
    %4080 = vmatpush1.msra.mxu0 %v3958
    %4081 = vmatprep.subr.mxu0 %v3955
    %4082 = vmatpush1.msra.mxu0 %v3954
    %4083 = vmatprep.subr.mxu0 %v3951
    %4084 = vmatpush1.msra.mxu0 %v3950
    %4085 = vmatprep.subr.mxu0 %v3947
    %4086 = vmatpush1.msra.mxu0 %v3946
    %4087 = vmatprep.subr.mxu0 %v3943
    %4088 = vmatpush1.msra.mxu0 %v3942
    %4089 = vmatprep.subr.mxu0 %v3939
    %4090 = vmatpush1.msra.mxu0 %v3938
    %4091 = vmatprep.subr.mxu0 %v3935
    %4092 = vmatpush1.msra.mxu0 %v3934
    %4093 = vmatprep.subr.mxu0 %v3931
    %4094 = vmatpush1.msra.mxu0 %v3930
    %4095 = vmatprep.subr.mxu0 0.0
    %4096 = vmatpush2.msra.mxu0 0.0
    %4097 = vmatprep.subr.mxu0 0.0
    %4098 = vmatpush2.msra.mxu0 0.0
    %4099 = vmatprep.subr.mxu0 0.0
    %4100 = vmatpush2.msra.mxu0 0.0
    %4101 = vmatprep.subr.mxu0 0.0
    %4102 = vmatpush2.msra.mxu0 0.0
    %4103 = vmatprep.subr.mxu0 0.0
    %4104 = vmatpush2.msra.mxu0 0.0
    %4105 = vmatprep.subr.mxu0 0.0
    %4106 = vmatpush2.msra.mxu0 0.0
    %4107 = vmatprep.subr.mxu0 0.0
    %4108 = vmatpush2.msra.mxu0 0.0
    %4109 = vmatprep.subr.mxu0 0.0
    %4110 = vmatpush2.msra.mxu0 0.0
    %4111 = vmatprep.subr.mxu0 0.0
    %4112 = vmatpush2.msra.mxu0 0.0
    %4113 = vmatprep.subr.mxu0 0.0
    %4114 = vmatpush2.msra.mxu0 0.0
    %4115 = vmatprep.subr.mxu0 0.0
    %4116 = vmatpush2.msra.mxu0 0.0
    %4117 = vmatprep.subr.mxu0 0.0
    %4118 = vmatpush2.msra.mxu0 0.0
    %4119 = vmatprep.subr.mxu0 0.0
    %4120 = vmatpush2.msra.mxu0 0.0
    %4121 = vmatprep.subr.mxu0 0.0
    %4122 = vmatpush2.msra.mxu0 0.0
    %4123 = vmatprep.subr.mxu0 0.0
    %4124 = vmatpush2.msra.mxu0 0.0
    %4125 = vmatprep.subr.mxu0 0.0
    %4126 = vmatpush2.msra.mxu0 0.0
    %4127 = vmatprep.mubr.f32.mxu0 0.0
    %4128 = vmatmul.mubr.f32.gmra.mxu0 %v3921
    %v4129 = vpop.f32.mrf.mxu0
    %v4130 = vadd.f32 0.0, %v4129
    %v4131 = vpop.f32.mrf.mxu0
    %v4132 = vadd.f32 0.0, %v4131
    %4133 = vdwg.mxu0
    %v4134 = vadd.f32 %v3924, %v4059
    %v4135 = vadd.f32 %v3925, %v4061
    %v4136 = vadd.f32 %v3926, %v4130
    %v4137 = vadd.f32 %v3927, %v4132
    %v4138 = vxor.u32 %v4134, 2147483648
    %v4139 = vmul.f32 %v4138, 1.442695
    %v4140 = vpow.pop %v4139
    %v4141 = vadd.f32 %v4140, 1.0
    %v4142 = vrcp.pop %v4141
    %v4143 = vmul.f32 1.0, %v4142
    %v4144 = vxor.u32 %v4135, 2147483648
    %v4145 = vmul.f32 %v4144, 1.442695
    %v4146 = vpow.pop %v4145
    %v4147 = vadd.f32 %v4146, 1.0
    %v4148 = vrcp.pop %v4147
    %v4149 = vmul.f32 1.0, %v4148
    %v4150 = vtanh.pop %v4136
    %v4151 = vxor.u32 %v4137, 2147483648
    %v4152 = vmul.f32 %v4151, 1.442695
    %v4153 = vpow.pop %v4152
    %v4154 = vadd.f32 %v4153, 1.0
    %v4155 = vrcp.pop %v4154
    %v4156 = vmul.f32 1.0, %v4155
    %v4157 = vmul.f32 %v4149, %v3919
    %v4158 = vmul.f32 %v4143, %v4150
    %v4159 = vadd.f32 %v4157, %v4158
    %v4160 = vtanh.pop %v4159
    %v4161 = vmul.f32 %v4156, %v4160
    %s4162 = scalar_lea.vmem [#allocation13], 40
    %4163 = vst [vmem:[%s4162] sm:$0xff] %v4161
    %v4164 = vld [vmem:[%s1891] sm:$0xff]
    %v4165 = vld [vmem:[%s1891 + $0x8] sm:$0xff]
    %v4166 = vld [vmem:[%s1891 + $0x10] sm:$0xff]
    %v4167 = vld [vmem:[%s1891 + $0x18] sm:$0xff]
    %v4168 = vld [vmem:[#allocation12] sm:$0xff]
    %v4169 = vld [vmem:[#allocation12 + $0x8] sm:$0xff]
    %v4170 = vld [vmem:[#allocation12 + $0x10] sm:$0xff]
    %v4171 = vld [vmem:[#allocation12 + $0x18] sm:$0xff]
    %v4172 = vld [vmem:[#allocation12 + $0x20] sm:$0xff]
    %v4173 = vld [vmem:[#allocation12 + $0x28] sm:$0xff]
    %v4174 = vld [vmem:[#allocation12 + $0x30] sm:$0xff]
    %v4175 = vld [vmem:[#allocation12 + $0x38] sm:$0xff]
    %v4176 = vld [vmem:[#allocation12 + $0x40] sm:$0xff]
    %v4177 = vld [vmem:[#allocation12 + $0x48] sm:$0xff]
    %v4178 = vld [vmem:[#allocation12 + $0x50] sm:$0xff]
    %v4179 = vld [vmem:[#allocation12 + $0x58] sm:$0xff]
    %v4180 = vld [vmem:[#allocation12 + $0x60] sm:$0xff]
    %v4181 = vld [vmem:[#allocation12 + $0x68] sm:$0xff]
    %v4182 = vld [vmem:[#allocation12 + $0x70] sm:$0xff]
    %v4183 = vld [vmem:[#allocation12 + $0x78] sm:$0xff]
    %v4184 = vld [vmem:[#allocation12 + $0x80] sm:$0xff]
    %v4185 = vld [vmem:[#allocation12 + $0x88] sm:$0xff]
    %v4186 = vld [vmem:[#allocation12 + $0x90] sm:$0xff]
    %v4187 = vld [vmem:[#allocation12 + $0x98] sm:$0xff]
    %v4188 = vld [vmem:[#allocation12 + $0xa0] sm:$0xff]
    %v4189 = vld [vmem:[#allocation12 + $0xa8] sm:$0xff]
    %v4190 = vld [vmem:[#allocation12 + $0xb0] sm:$0xff]
    %v4191 = vld [vmem:[#allocation12 + $0xb8] sm:$0xff]
    %v4192 = vld [vmem:[#allocation12 + $0xc0] sm:$0xff]
    %v4193 = vld [vmem:[#allocation12 + $0xc8] sm:$0xff]
    %v4194 = vld [vmem:[#allocation12 + $0xd0] sm:$0xff]
    %v4195 = vld [vmem:[#allocation12 + $0xd8] sm:$0xff]
    %v4196 = vld [vmem:[#allocation12 + $0xe0] sm:$0xff]
    %v4197 = vld [vmem:[#allocation12 + $0xe8] sm:$0xff]
    %v4198 = vld [vmem:[#allocation12 + $0xf0] sm:$0xff]
    %v4199 = vld [vmem:[#allocation12 + $0xf8] sm:$0xff]
    %v4200 = vld [vmem:[#allocation12 + $0x100] sm:$0xff]
    %v4201 = vld [vmem:[#allocation12 + $0x108] sm:$0xff]
    %v4202 = vld [vmem:[#allocation12 + $0x110] sm:$0xff]
    %v4203 = vld [vmem:[#allocation12 + $0x118] sm:$0xff]
    %v4204 = vld [vmem:[#allocation12 + $0x120] sm:$0xff]
    %v4205 = vld [vmem:[#allocation12 + $0x128] sm:$0xff]
    %v4206 = vld [vmem:[#allocation12 + $0x130] sm:$0xff]
    %v4207 = vld [vmem:[#allocation12 + $0x138] sm:$0xff]
    %v4208 = vld [vmem:[#allocation12 + $0x140] sm:$0xff]
    %v4209 = vld [vmem:[#allocation12 + $0x148] sm:$0xff]
    %v4210 = vld [vmem:[#allocation12 + $0x150] sm:$0xff]
    %v4211 = vld [vmem:[#allocation12 + $0x158] sm:$0xff]
    %v4212 = vld [vmem:[#allocation12 + $0x160] sm:$0xff]
    %v4213 = vld [vmem:[#allocation12 + $0x168] sm:$0xff]
    %v4214 = vld [vmem:[#allocation12 + $0x170] sm:$0xff]
    %v4215 = vld [vmem:[#allocation12 + $0x178] sm:$0xff]
    %v4216 = vld [vmem:[#allocation12 + $0x180] sm:$0xff]
    %v4217 = vld [vmem:[#allocation12 + $0x188] sm:$0xff]
    %v4218 = vld [vmem:[#allocation12 + $0x190] sm:$0xff]
    %v4219 = vld [vmem:[#allocation12 + $0x198] sm:$0xff]
    %v4220 = vld [vmem:[#allocation12 + $0x1a0] sm:$0xff]
    %v4221 = vld [vmem:[#allocation12 + $0x1a8] sm:$0xff]
    %v4222 = vld [vmem:[#allocation12 + $0x1b0] sm:$0xff]
    %v4223 = vld [vmem:[#allocation12 + $0x1b8] sm:$0xff]
    %v4224 = vld [vmem:[#allocation12 + $0x1c0] sm:$0xff]
    %v4225 = vld [vmem:[#allocation12 + $0x1c8] sm:$0xff]
    %v4226 = vld [vmem:[#allocation12 + $0x1d0] sm:$0xff]
    %v4227 = vld [vmem:[#allocation12 + $0x1d8] sm:$0xff]
    %v4228 = vld [vmem:[#allocation12 + $0x1e0] sm:$0xff]
    %v4229 = vld [vmem:[#allocation12 + $0x1e8] sm:$0xff]
    %v4230 = vld [vmem:[#allocation12 + $0x1f0] sm:$0xff]
    %v4231 = vld [vmem:[#allocation12 + $0x1f8] sm:$0xff]
    %4232 = vmatprep.subr.mxu0 %v4229
    %4233 = vmatpush1.msra.mxu0 %v4228
    %4234 = vmatprep.subr.mxu0 %v4225
    %4235 = vmatpush1.msra.mxu0 %v4224
    %4236 = vmatprep.subr.mxu0 %v4221
    %4237 = vmatpush1.msra.mxu0 %v4220
    %4238 = vmatprep.subr.mxu0 %v4217
    %4239 = vmatpush1.msra.mxu0 %v4216
    %4240 = vmatprep.subr.mxu0 %v4213
    %4241 = vmatpush1.msra.mxu0 %v4212
    %4242 = vmatprep.subr.mxu0 %v4209
    %4243 = vmatpush1.msra.mxu0 %v4208
    %4244 = vmatprep.subr.mxu0 %v4205
    %4245 = vmatpush1.msra.mxu0 %v4204
    %4246 = vmatprep.subr.mxu0 %v4201
    %4247 = vmatpush1.msra.mxu0 %v4200
    %4248 = vmatprep.subr.mxu0 %v4197
    %4249 = vmatpush1.msra.mxu0 %v4196
    %4250 = vmatprep.subr.mxu0 %v4193
    %4251 = vmatpush1.msra.mxu0 %v4192
    %4252 = vmatprep.subr.mxu0 %v4189
    %4253 = vmatpush1.msra.mxu0 %v4188
    %4254 = vmatprep.subr.mxu0 %v4185
    %4255 = vmatpush1.msra.mxu0 %v4184
    %4256 = vmatprep.subr.mxu0 %v4181
    %4257 = vmatpush1.msra.mxu0 %v4180
    %4258 = vmatprep.subr.mxu0 %v4177
    %4259 = vmatpush1.msra.mxu0 %v4176
    %4260 = vmatprep.subr.mxu0 %v4173
    %4261 = vmatpush1.msra.mxu0 %v4172
    %4262 = vmatprep.subr.mxu0 %v4169
    %4263 = vmatpush1.msra.mxu0 %v4168
    %4264 = vmatprep.subr.mxu0 0.0
    %4265 = vmatpush2.msra.mxu0 0.0
    %4266 = vmatprep.subr.mxu0 0.0
    %4267 = vmatpush2.msra.mxu0 0.0
    %4268 = vmatprep.subr.mxu0 0.0
    %4269 = vmatpush2.msra.mxu0 0.0
    %4270 = vmatprep.subr.mxu0 0.0
    %4271 = vmatpush2.msra.mxu0 0.0
    %4272 = vmatprep.subr.mxu0 0.0
    %4273 = vmatpush2.msra.mxu0 0.0
    %4274 = vmatprep.subr.mxu0 0.0
    %4275 = vmatpush2.msra.mxu0 0.0
    %4276 = vmatprep.subr.mxu0 0.0
    %4277 = vmatpush2.msra.mxu0 0.0
    %4278 = vmatprep.subr.mxu0 0.0
    %4279 = vmatpush2.msra.mxu0 0.0
    %4280 = vmatprep.subr.mxu0 0.0
    %4281 = vmatpush2.msra.mxu0 0.0
    %4282 = vmatprep.subr.mxu0 0.0
    %4283 = vmatpush2.msra.mxu0 0.0
    %4284 = vmatprep.subr.mxu0 0.0
    %4285 = vmatpush2.msra.mxu0 0.0
    %4286 = vmatprep.subr.mxu0 0.0
    %4287 = vmatpush2.msra.mxu0 0.0
    %4288 = vmatprep.subr.mxu0 0.0
    %4289 = vmatpush2.msra.mxu0 0.0
    %4290 = vmatprep.subr.mxu0 0.0
    %4291 = vmatpush2.msra.mxu0 0.0
    %4292 = vmatprep.subr.mxu0 0.0
    %4293 = vmatpush2.msra.mxu0 0.0
    %4294 = vmatprep.subr.mxu0 0.0
    %4295 = vmatpush2.msra.mxu0 0.0
    %4296 = vmatprep.mubr.f32.mxu0 0.0
    %4297 = vmatmul.mubr.f32.gmra.mxu0 %v4161
    %v4298 = vpop.f32.mrf.mxu0
    %v4299 = vadd.f32 0.0, %v4298
    %v4300 = vpop.f32.mrf.mxu0
    %v4301 = vadd.f32 0.0, %v4300
    %4302 = vdwg.mxu0
    %4303 = vmatprep.subr.mxu0 %v4231
    %4304 = vmatpush1.msra.mxu0 %v4230
    %4305 = vmatprep.subr.mxu0 %v4227
    %4306 = vmatpush1.msra.mxu0 %v4226
    %4307 = vmatprep.subr.mxu0 %v4223
    %4308 = vmatpush1.msra.mxu0 %v4222
    %4309 = vmatprep.subr.mxu0 %v4219
    %4310 = vmatpush1.msra.mxu0 %v4218
    %4311 = vmatprep.subr.mxu0 %v4215
    %4312 = vmatpush1.msra.mxu0 %v4214
    %4313 = vmatprep.subr.mxu0 %v4211
    %4314 = vmatpush1.msra.mxu0 %v4210
    %4315 = vmatprep.subr.mxu0 %v4207
    %4316 = vmatpush1.msra.mxu0 %v4206
    %4317 = vmatprep.subr.mxu0 %v4203
    %4318 = vmatpush1.msra.mxu0 %v4202
    %4319 = vmatprep.subr.mxu0 %v4199
    %4320 = vmatpush1.msra.mxu0 %v4198
    %4321 = vmatprep.subr.mxu0 %v4195
    %4322 = vmatpush1.msra.mxu0 %v4194
    %4323 = vmatprep.subr.mxu0 %v4191
    %4324 = vmatpush1.msra.mxu0 %v4190
    %4325 = vmatprep.subr.mxu0 %v4187
    %4326 = vmatpush1.msra.mxu0 %v4186
    %4327 = vmatprep.subr.mxu0 %v4183
    %4328 = vmatpush1.msra.mxu0 %v4182
    %4329 = vmatprep.subr.mxu0 %v4179
    %4330 = vmatpush1.msra.mxu0 %v4178
    %4331 = vmatprep.subr.mxu0 %v4175
    %4332 = vmatpush1.msra.mxu0 %v4174
    %4333 = vmatprep.subr.mxu0 %v4171
    %4334 = vmatpush1.msra.mxu0 %v4170
    %4335 = vmatprep.subr.mxu0 0.0
    %4336 = vmatpush2.msra.mxu0 0.0
    %4337 = vmatprep.subr.mxu0 0.0
    %4338 = vmatpush2.msra.mxu0 0.0
    %4339 = vmatprep.subr.mxu0 0.0
    %4340 = vmatpush2.msra.mxu0 0.0
    %4341 = vmatprep.subr.mxu0 0.0
    %4342 = vmatpush2.msra.mxu0 0.0
    %4343 = vmatprep.subr.mxu0 0.0
    %4344 = vmatpush2.msra.mxu0 0.0
    %4345 = vmatprep.subr.mxu0 0.0
    %4346 = vmatpush2.msra.mxu0 0.0
    %4347 = vmatprep.subr.mxu0 0.0
    %4348 = vmatpush2.msra.mxu0 0.0
    %4349 = vmatprep.subr.mxu0 0.0
    %4350 = vmatpush2.msra.mxu0 0.0
    %4351 = vmatprep.subr.mxu0 0.0
    %4352 = vmatpush2.msra.mxu0 0.0
    %4353 = vmatprep.subr.mxu0 0.0
    %4354 = vmatpush2.msra.mxu0 0.0
    %4355 = vmatprep.subr.mxu0 0.0
    %4356 = vmatpush2.msra.mxu0 0.0
    %4357 = vmatprep.subr.mxu0 0.0
    %4358 = vmatpush2.msra.mxu0 0.0
    %4359 = vmatprep.subr.mxu0 0.0
    %4360 = vmatpush2.msra.mxu0 0.0
    %4361 = vmatprep.subr.mxu0 0.0
    %4362 = vmatpush2.msra.mxu0 0.0
    %4363 = vmatprep.subr.mxu0 0.0
    %4364 = vmatpush2.msra.mxu0 0.0
    %4365 = vmatprep.subr.mxu0 0.0
    %4366 = vmatpush2.msra.mxu0 0.0
    %4367 = vmatprep.mubr.f32.mxu0 0.0
    %4368 = vmatmul.mubr.f32.gmra.mxu0 %v4161
    %v4369 = vpop.f32.mrf.mxu0
    %v4370 = vadd.f32 0.0, %v4369
    %v4371 = vpop.f32.mrf.mxu0
    %v4372 = vadd.f32 0.0, %v4371
    %4373 = vdwg.mxu0
    %v4374 = vadd.f32 %v4164, %v4299
    %v4375 = vadd.f32 %v4165, %v4301
    %v4376 = vadd.f32 %v4166, %v4370
    %v4377 = vadd.f32 %v4167, %v4372
    %v4378 = vxor.u32 %v4374, 2147483648
    %v4379 = vmul.f32 %v4378, 1.442695
    %v4380 = vpow.pop %v4379
    %v4381 = vadd.f32 %v4380, 1.0
    %v4382 = vrcp.pop %v4381
    %v4383 = vmul.f32 1.0, %v4382
    %v4384 = vxor.u32 %v4375, 2147483648
    %v4385 = vmul.f32 %v4384, 1.442695
    %v4386 = vpow.pop %v4385
    %v4387 = vadd.f32 %v4386, 1.0
    %v4388 = vrcp.pop %v4387
    %v4389 = vmul.f32 1.0, %v4388
    %v4390 = vtanh.pop %v4376
    %v4391 = vxor.u32 %v4377, 2147483648
    %v4392 = vmul.f32 %v4391, 1.442695
    %v4393 = vpow.pop %v4392
    %v4394 = vadd.f32 %v4393, 1.0
    %v4395 = vrcp.pop %v4394
    %v4396 = vmul.f32 1.0, %v4395
    %v4397 = vmul.f32 %v4389, %v4159
    %v4398 = vmul.f32 %v4383, %v4390
    %v4399 = vadd.f32 %v4397, %v4398
    %v4400 = vtanh.pop %v4399
    %v4401 = vmul.f32 %v4396, %v4400
    %s4402 = scalar_lea.vmem [#allocation13], 48
    %4403 = vst [vmem:[%s4402] sm:$0xff] %v4401
    %v4404 = vld [vmem:[%s2132] sm:$0xff]
    %v4405 = vld [vmem:[%s2132 + $0x8] sm:$0xff]
    %v4406 = vld [vmem:[%s2132 + $0x10] sm:$0xff]
    %v4407 = vld [vmem:[%s2132 + $0x18] sm:$0xff]
    %v4408 = vld [vmem:[#allocation12] sm:$0xff]
    %v4409 = vld [vmem:[#allocation12 + $0x8] sm:$0xff]
    %v4410 = vld [vmem:[#allocation12 + $0x10] sm:$0xff]
    %v4411 = vld [vmem:[#allocation12 + $0x18] sm:$0xff]
    %v4412 = vld [vmem:[#allocation12 + $0x20] sm:$0xff]
    %v4413 = vld [vmem:[#allocation12 + $0x28] sm:$0xff]
    %v4414 = vld [vmem:[#allocation12 + $0x30] sm:$0xff]
    %v4415 = vld [vmem:[#allocation12 + $0x38] sm:$0xff]
    %v4416 = vld [vmem:[#allocation12 + $0x40] sm:$0xff]
    %v4417 = vld [vmem:[#allocation12 + $0x48] sm:$0xff]
    %v4418 = vld [vmem:[#allocation12 + $0x50] sm:$0xff]
    %v4419 = vld [vmem:[#allocation12 + $0x58] sm:$0xff]
    %v4420 = vld [vmem:[#allocation12 + $0x60] sm:$0xff]
    %v4421 = vld [vmem:[#allocation12 + $0x68] sm:$0xff]
    %v4422 = vld [vmem:[#allocation12 + $0x70] sm:$0xff]
    %v4423 = vld [vmem:[#allocation12 + $0x78] sm:$0xff]
    %v4424 = vld [vmem:[#allocation12 + $0x80] sm:$0xff]
    %v4425 = vld [vmem:[#allocation12 + $0x88] sm:$0xff]
    %v4426 = vld [vmem:[#allocation12 + $0x90] sm:$0xff]
    %v4427 = vld [vmem:[#allocation12 + $0x98] sm:$0xff]
    %v4428 = vld [vmem:[#allocation12 + $0xa0] sm:$0xff]
    %v4429 = vld [vmem:[#allocation12 + $0xa8] sm:$0xff]
    %v4430 = vld [vmem:[#allocation12 + $0xb0] sm:$0xff]
    %v4431 = vld [vmem:[#allocation12 + $0xb8] sm:$0xff]
    %v4432 = vld [vmem:[#allocation12 + $0xc0] sm:$0xff]
    %v4433 = vld [vmem:[#allocation12 + $0xc8] sm:$0xff]
    %v4434 = vld [vmem:[#allocation12 + $0xd0] sm:$0xff]
    %v4435 = vld [vmem:[#allocation12 + $0xd8] sm:$0xff]
    %v4436 = vld [vmem:[#allocation12 + $0xe0] sm:$0xff]
    %v4437 = vld [vmem:[#allocation12 + $0xe8] sm:$0xff]
    %v4438 = vld [vmem:[#allocation12 + $0xf0] sm:$0xff]
    %v4439 = vld [vmem:[#allocation12 + $0xf8] sm:$0xff]
    %v4440 = vld [vmem:[#allocation12 + $0x100] sm:$0xff]
    %v4441 = vld [vmem:[#allocation12 + $0x108] sm:$0xff]
    %v4442 = vld [vmem:[#allocation12 + $0x110] sm:$0xff]
    %v4443 = vld [vmem:[#allocation12 + $0x118] sm:$0xff]
    %v4444 = vld [vmem:[#allocation12 + $0x120] sm:$0xff]
    %v4445 = vld [vmem:[#allocation12 + $0x128] sm:$0xff]
    %v4446 = vld [vmem:[#allocation12 + $0x130] sm:$0xff]
    %v4447 = vld [vmem:[#allocation12 + $0x138] sm:$0xff]
    %v4448 = vld [vmem:[#allocation12 + $0x140] sm:$0xff]
    %v4449 = vld [vmem:[#allocation12 + $0x148] sm:$0xff]
    %v4450 = vld [vmem:[#allocation12 + $0x150] sm:$0xff]
    %v4451 = vld [vmem:[#allocation12 + $0x158] sm:$0xff]
    %v4452 = vld [vmem:[#allocation12 + $0x160] sm:$0xff]
    %v4453 = vld [vmem:[#allocation12 + $0x168] sm:$0xff]
    %v4454 = vld [vmem:[#allocation12 + $0x170] sm:$0xff]
    %v4455 = vld [vmem:[#allocation12 + $0x178] sm:$0xff]
    %v4456 = vld [vmem:[#allocation12 + $0x180] sm:$0xff]
    %v4457 = vld [vmem:[#allocation12 + $0x188] sm:$0xff]
    %v4458 = vld [vmem:[#allocation12 + $0x190] sm:$0xff]
    %v4459 = vld [vmem:[#allocation12 + $0x198] sm:$0xff]
    %v4460 = vld [vmem:[#allocation12 + $0x1a0] sm:$0xff]
    %v4461 = vld [vmem:[#allocation12 + $0x1a8] sm:$0xff]
    %v4462 = vld [vmem:[#allocation12 + $0x1b0] sm:$0xff]
    %v4463 = vld [vmem:[#allocation12 + $0x1b8] sm:$0xff]
    %v4464 = vld [vmem:[#allocation12 + $0x1c0] sm:$0xff]
    %v4465 = vld [vmem:[#allocation12 + $0x1c8] sm:$0xff]
    %v4466 = vld [vmem:[#allocation12 + $0x1d0] sm:$0xff]
    %v4467 = vld [vmem:[#allocation12 + $0x1d8] sm:$0xff]
    %v4468 = vld [vmem:[#allocation12 + $0x1e0] sm:$0xff]
    %v4469 = vld [vmem:[#allocation12 + $0x1e8] sm:$0xff]
    %v4470 = vld [vmem:[#allocation12 + $0x1f0] sm:$0xff]
    %v4471 = vld [vmem:[#allocation12 + $0x1f8] sm:$0xff]
    %4472 = vmatprep.subr.mxu0 %v4469
    %4473 = vmatpush1.msra.mxu0 %v4468
    %4474 = vmatprep.subr.mxu0 %v4465
    %4475 = vmatpush1.msra.mxu0 %v4464
    %4476 = vmatprep.subr.mxu0 %v4461
    %4477 = vmatpush1.msra.mxu0 %v4460
    %4478 = vmatprep.subr.mxu0 %v4457
    %4479 = vmatpush1.msra.mxu0 %v4456
    %4480 = vmatprep.subr.mxu0 %v4453
    %4481 = vmatpush1.msra.mxu0 %v4452
    %4482 = vmatprep.subr.mxu0 %v4449
    %4483 = vmatpush1.msra.mxu0 %v4448
    %4484 = vmatprep.subr.mxu0 %v4445
    %4485 = vmatpush1.msra.mxu0 %v4444
    %4486 = vmatprep.subr.mxu0 %v4441
    %4487 = vmatpush1.msra.mxu0 %v4440
    %4488 = vmatprep.subr.mxu0 %v4437
    %4489 = vmatpush1.msra.mxu0 %v4436
    %4490 = vmatprep.subr.mxu0 %v4433
    %4491 = vmatpush1.msra.mxu0 %v4432
    %4492 = vmatprep.subr.mxu0 %v4429
    %4493 = vmatpush1.msra.mxu0 %v4428
    %4494 = vmatprep.subr.mxu0 %v4425
    %4495 = vmatpush1.msra.mxu0 %v4424
    %4496 = vmatprep.subr.mxu0 %v4421
    %4497 = vmatpush1.msra.mxu0 %v4420
    %4498 = vmatprep.subr.mxu0 %v4417
    %4499 = vmatpush1.msra.mxu0 %v4416
    %4500 = vmatprep.subr.mxu0 %v4413
    %4501 = vmatpush1.msra.mxu0 %v4412
    %4502 = vmatprep.subr.mxu0 %v4409
    %4503 = vmatpush1.msra.mxu0 %v4408
    %4504 = vmatprep.subr.mxu0 0.0
    %4505 = vmatpush2.msra.mxu0 0.0
    %4506 = vmatprep.subr.mxu0 0.0
    %4507 = vmatpush2.msra.mxu0 0.0
    %4508 = vmatprep.subr.mxu0 0.0
    %4509 = vmatpush2.msra.mxu0 0.0
    %4510 = vmatprep.subr.mxu0 0.0
    %4511 = vmatpush2.msra.mxu0 0.0
    %4512 = vmatprep.subr.mxu0 0.0
    %4513 = vmatpush2.msra.mxu0 0.0
    %4514 = vmatprep.subr.mxu0 0.0
    %4515 = vmatpush2.msra.mxu0 0.0
    %4516 = vmatprep.subr.mxu0 0.0
    %4517 = vmatpush2.msra.mxu0 0.0
    %4518 = vmatprep.subr.mxu0 0.0
    %4519 = vmatpush2.msra.mxu0 0.0
    %4520 = vmatprep.subr.mxu0 0.0
    %4521 = vmatpush2.msra.mxu0 0.0
    %4522 = vmatprep.subr.mxu0 0.0
    %4523 = vmatpush2.msra.mxu0 0.0
    %4524 = vmatprep.subr.mxu0 0.0
    %4525 = vmatpush2.msra.mxu0 0.0
    %4526 = vmatprep.subr.mxu0 0.0
    %4527 = vmatpush2.msra.mxu0 0.0
    %4528 = vmatprep.subr.mxu0 0.0
    %4529 = vmatpush2.msra.mxu0 0.0
    %4530 = vmatprep.subr.mxu0 0.0
    %4531 = vmatpush2.msra.mxu0 0.0
    %4532 = vmatprep.subr.mxu0 0.0
    %4533 = vmatpush2.msra.mxu0 0.0
    %4534 = vmatprep.subr.mxu0 0.0
    %4535 = vmatpush2.msra.mxu0 0.0
    %4536 = vmatprep.mubr.f32.mxu0 0.0
    %4537 = vmatmul.mubr.f32.gmra.mxu0 %v4401
    %v4538 = vpop.f32.mrf.mxu0
    %v4539 = vadd.f32 0.0, %v4538
    %v4540 = vpop.f32.mrf.mxu0
    %v4541 = vadd.f32 0.0, %v4540
    %4542 = vdwg.mxu0
    %4543 = vmatprep.subr.mxu0 %v4471
    %4544 = vmatpush1.msra.mxu0 %v4470
    %4545 = vmatprep.subr.mxu0 %v4467
    %4546 = vmatpush1.msra.mxu0 %v4466
    %4547 = vmatprep.subr.mxu0 %v4463
    %4548 = vmatpush1.msra.mxu0 %v4462
    %4549 = vmatprep.subr.mxu0 %v4459
    %4550 = vmatpush1.msra.mxu0 %v4458
    %4551 = vmatprep.subr.mxu0 %v4455
    %4552 = vmatpush1.msra.mxu0 %v4454
    %4553 = vmatprep.subr.mxu0 %v4451
    %4554 = vmatpush1.msra.mxu0 %v4450
    %4555 = vmatprep.subr.mxu0 %v4447
    %4556 = vmatpush1.msra.mxu0 %v4446
    %4557 = vmatprep.subr.mxu0 %v4443
    %4558 = vmatpush1.msra.mxu0 %v4442
    %4559 = vmatprep.subr.mxu0 %v4439
    %4560 = vmatpush1.msra.mxu0 %v4438
    %4561 = vmatprep.subr.mxu0 %v4435
    %4562 = vmatpush1.msra.mxu0 %v4434
    %4563 = vmatprep.subr.mxu0 %v4431
    %4564 = vmatpush1.msra.mxu0 %v4430
    %4565 = vmatprep.subr.mxu0 %v4427
    %4566 = vmatpush1.msra.mxu0 %v4426
    %4567 = vmatprep.subr.mxu0 %v4423
    %4568 = vmatpush1.msra.mxu0 %v4422
    %4569 = vmatprep.subr.mxu0 %v4419
    %4570 = vmatpush1.msra.mxu0 %v4418
    %4571 = vmatprep.subr.mxu0 %v4415
    %4572 = vmatpush1.msra.mxu0 %v4414
    %4573 = vmatprep.subr.mxu0 %v4411
    %4574 = vmatpush1.msra.mxu0 %v4410
    %4575 = vmatprep.subr.mxu0 0.0
    %4576 = vmatpush2.msra.mxu0 0.0
    %4577 = vmatprep.subr.mxu0 0.0
    %4578 = vmatpush2.msra.mxu0 0.0
    %4579 = vmatprep.subr.mxu0 0.0
    %4580 = vmatpush2.msra.mxu0 0.0
    %4581 = vmatprep.subr.mxu0 0.0
    %4582 = vmatpush2.msra.mxu0 0.0
    %4583 = vmatprep.subr.mxu0 0.0
    %4584 = vmatpush2.msra.mxu0 0.0
    %4585 = vmatprep.subr.mxu0 0.0
    %4586 = vmatpush2.msra.mxu0 0.0
    %4587 = vmatprep.subr.mxu0 0.0
    %4588 = vmatpush2.msra.mxu0 0.0
    %4589 = vmatprep.subr.mxu0 0.0
    %4590 = vmatpush2.msra.mxu0 0.0
    %4591 = vmatprep.subr.mxu0 0.0
    %4592 = vmatpush2.msra.mxu0 0.0
    %4593 = vmatprep.subr.mxu0 0.0
    %4594 = vmatpush2.msra.mxu0 0.0
    %4595 = vmatprep.subr.mxu0 0.0
    %4596 = vmatpush2.msra.mxu0 0.0
    %4597 = vmatprep.subr.mxu0 0.0
    %4598 = vmatpush2.msra.mxu0 0.0
    %4599 = vmatprep.subr.mxu0 0.0
    %4600 = vmatpush2.msra.mxu0 0.0
    %4601 = vmatprep.subr.mxu0 0.0
    %4602 = vmatpush2.msra.mxu0 0.0
    %4603 = vmatprep.subr.mxu0 0.0
    %4604 = vmatpush2.msra.mxu0 0.0
    %4605 = vmatprep.subr.mxu0 0.0
    %4606 = vmatpush2.msra.mxu0 0.0
    %4607 = vmatprep.mubr.f32.mxu0 0.0
    %4608 = vmatmul.mubr.f32.gmra.mxu0 %v4401
    %v4609 = vpop.f32.mrf.mxu0
    %v4610 = vadd.f32 0.0, %v4609
    %v4611 = vpop.f32.mrf.mxu0
    %v4612 = vadd.f32 0.0, %v4611
    %4613 = vdwg.mxu0
    %v4614 = vadd.f32 %v4404, %v4539
    %v4615 = vadd.f32 %v4405, %v4541
    %v4616 = vadd.f32 %v4406, %v4610
    %v4617 = vadd.f32 %v4407, %v4612
    %v4618 = vxor.u32 %v4614, 2147483648
    %v4619 = vmul.f32 %v4618, 1.442695
    %v4620 = vpow.pop %v4619
    %v4621 = vadd.f32 %v4620, 1.0
    %v4622 = vrcp.pop %v4621
    %v4623 = vmul.f32 1.0, %v4622
    %v4624 = vxor.u32 %v4615, 2147483648
    %v4625 = vmul.f32 %v4624, 1.442695
    %v4626 = vpow.pop %v4625
    %v4627 = vadd.f32 %v4626, 1.0
    %v4628 = vrcp.pop %v4627
    %v4629 = vmul.f32 1.0, %v4628
    %v4630 = vtanh.pop %v4616
    %v4631 = vxor.u32 %v4617, 2147483648
    %v4632 = vmul.f32 %v4631, 1.442695
    %v4633 = vpow.pop %v4632
    %v4634 = vadd.f32 %v4633, 1.0
    %v4635 = vrcp.pop %v4634
    %v4636 = vmul.f32 1.0, %v4635
    %v4637 = vmul.f32 %v4629, %v4399
    %v4638 = vmul.f32 %v4623, %v4630
    %v4639 = vadd.f32 %v4637, %v4638
    %v4640 = vtanh.pop %v4639
    %v4641 = vmul.f32 %v4636, %v4640
    %s4642 = scalar_lea.vmem [#allocation13], 56
    %4643 = vst [vmem:[%s4642] sm:$0xff] %v4641
    // Predicated region
    $region50: #{tpu_custom_call.1} parent=1 // pred_check
      _
    $region51: #{tpu_custom_call.1} parent=1 // pred_check_branch
      %4645 = sbr.rel (0) target = $region53
    $region52: #{tpu_custom_call.1} parent=1 // pred_region
      %s4647 = ssub.s32 1024, 1024
      %4648 = vsyncadd [#allocation6], %s4647
      %s4649 = sshll.u32 [#allocation13], 4
      %s4650 = int_to_ptr.vmem [resolvable:$true] %s4649
      %4655 = dma.vmem_to_hbm [thread:$0]  %s4650, 1024, %s7, [#allocation6], 128, 128, 8
    $region53: #{tpu_custom_call.1} parent=1 // pred_fallthru
      _
    // Predicated region
    $region54: #{tpu_custom_call.1} parent=1 // pred_check
      _
    $region55: #{tpu_custom_call.1} parent=1 // pred_check_branch
      %4657 = sbr.rel (0) target = $region57
    $region56: #{tpu_custom_call.1} parent=1 // pred_region
      %4658 = dma.done [#allocation6], 1024
    $region57: #{tpu_custom_call.1} parent=1 // pred_fallthru
      _
    %4659 = vsyncpa [#allocation5], 1
    %4660 = vsyncpa [#allocation8], 1
    %4661 = vsyncpa [#allocation11], 1
    %4662 = vsyncpa [#allocation6], 1

</llo_original>
